<compile_context>
chip_gen: v6e
topology: v6e:2x2x1
jax: 0.10.0
libtpu: 0.0.40
codegen_flags: <defaults>
</compile_context>

<pallas_src>
from functools import partial, lru_cache

import numpy as np
import jax
import jax.numpy as jnp
from jax.experimental import pallas as pl
from jax.experimental.pallas import tpu as pltpu


def _mm(a, b):
    return jnp.dot(a, b, preferred_element_type=jnp.float32)


# =============================================================================
# Host-side constants (built once per (H, W), cached)
# =============================================================================
def _gauss_reflect_mats(n, ksize=5, sigma=0.5):
    """Row/col matrices implementing reflect-101 pad + separable 5x5 Gaussian."""
    g = np.exp(-((np.arange(ksize) - ksize // 2) ** 2) / (2.0 * sigma * sigma))
    g = g / g.sum()

    def refl(i):                      # cv2 BORDER_REFLECT_101
        if i < 0:
            return -i
        if i > n - 1:
            return 2 * (n - 1) - i
        return i

    brow = np.zeros((n, n), np.float32)
    bcol = np.zeros((n, n), np.float32)
    for i in range(n):
        for p in range(ksize):
            brow[i, refl(i + p - ksize // 2)] += g[p]
            bcol[refl(i + p - ksize // 2), i] += g[p]
    return brow, bcol


@lru_cache(maxsize=None)
def _dwt_constants(H, W):
    assert H == W and H % 2 == 0
    HW = H * W
    H2, W2 = H // 2, W // 2
    HB, WB = H + 4, W + 4            # PixelShuffled / blurred map size
    HC, WC = H - 1, W - 1            # cat_conv (6x6 valid) output size

    idx = np.arange(HW)
    # flat-row <-> 2D helpers:  mh[h,i] = [i//W == h],  qw[i,w] = [i%W == w]
    mh = (idx[None, :] // W == np.arange(H)[:, None]).astype(np.float32)
    qw = (idx[:, None] % W == np.arange(W)[None, :]).astype(np.float32)

    # Haar de-interleave selectors: rows [ra0; ra1], cols [cb0 | cb1]
    dwt_r = np.zeros((H, H), np.float32)
    dwt_c = np.zeros((W, W), np.float32)
    for a in range(2):
        for r in range(H2):
            dwt_r[a * H2 + r, 2 * r + a] = 1.0
        for c in range(W2):
            dwt_c[2 * c + a, a * W2 + c] = 1.0

    # zero-pad (k=1, padding=1) + PixelShuffle(2) scatter, PRE-COMPOSED:
    #   RZ_a = rs[a] @ zr  (HB, H2),   ZC_b = zc @ cs[b]  (W2, WB)
    rz = np.zeros((2, HB, H2), np.float32)
    zc = np.zeros((2, W2, WB), np.float32)
    for a in range(2):
        for m in range(H2):
            rz[a, 2 * (m + 1) + a, m] = 1.0
        for m in range(W2):
            zc[a, m, 2 * (m + 1) + a] = 1.0

    # border masks: positions that come from the zero-padding of the 1x1 conv
    # (their value is relu(bias_k)), already scattered by PixelShuffle.
    bord = np.zeros((4, HB, WB), np.float32)
    yy = np.arange(HB)[:, None]
    xx = np.arange(WB)[None, :]
    is_border = ((yy // 2 == 0) | (yy // 2 == H2 + 1) |
                 (xx // 2 == 0) | (xx // 2 == W2 + 1))
    for k in range(4):
        a, b = k // 2, k % 2
        bord[k] = (((yy % 2) == a) & ((xx % 2) == b) & is_border
                   ).astype(np.float32)

    # cv2.GaussianBlur((5,5), 0.5) with BORDER_REFLECT_101 folded into matrices
    brow, bcol = _gauss_reflect_mats(HB)
    blur = np.stack([brow, bcol]).astype(np.float32)

    # zero-pad (HC,WC)->(H,W) for the residual add + flatten-to-row helper
    pr = np.eye(H, HC, dtype=np.float32)                 # (H, HC)
    pc = np.eye(WC, W, dtype=np.float32)                 # (WC, W)
    pcq = (pc @ qw.T).astype(np.float32)                 # (WC, HW)

    j = lambda a: jnp.asarray(a, jnp.float32)
    return dict(mh=j(mh), qw=j(qw), dwt_r=j(dwt_r), dwt_c=j(dwt_c),
                rz=j(rz), zc=j(zc), bord=j(bord), blur=j(blur),
                pr=j(pr), pcq=j(pcq))


# =============================================================================
# The fused kernel
# =============================================================================
def _dwt_fused_kernel(
        # input (channels-major)
        x_ref,
        # x_conv1/2/3 (1x1 convs + ReLU)
        xc1_wt_ref, xc1_b_ref, xc2_wt_ref, xc2_b_ref, xc3_wt_ref, xc3_b_ref,
        # host-precomputed constants
        mh_ref, qw_ref, dwt_r_ref, dwt_c_ref, rz_ref, zc_ref, bord_ref,
        blur_ref, pr_ref, pcq_ref,
        # scalar-ish params (SMEM)
        hc_w_ref, hc_b_ref, ca_ref, cat_w_ref, cat_b_ref,
        # conv9 params
        c9_w1t_ref, c9_b1_ref, c9_w2t_ref, c9_b2_ref,
        # output
        o_ref,
        # scratch
        fpad_ref, ypad_ref, imt_ref,
        *, H, W, PADL):
    f32 = jnp.float32
    HW = H * W
    H2, W2 = H // 2, W // 2
    HB, WB = H + 4, W + 4
    HC, WC = H - 1, W - 1

    # ---- head: x_conv1 -> x_conv2 -> x_conv3 (1x1 convs + ReLU), (C, HW) ----
    h = jnp.maximum(_mm(xc1_wt_ref[...], x_ref[...]) + xc1_b_ref[...], 0.0)
    h = jnp.maximum(_mm(xc2_wt_ref[...], h) + xc2_b_ref[...], 0.0)
    t_row = jnp.maximum(_mm(xc3_wt_ref[...], h) + xc3_b_ref[...], 0.0)  # (1,HW)

    # ---- flat row -> 2D (H, W) via selector matmul --------------------------
    mh = mh_ref[...]                                     # (H, HW)
    t2d = _mm(t_row * mh, qw_ref[...])                   # (H, W)

    # ---- Haar DWT (J=1, 'zero' mode): de-interleave with selector matmuls ---
    ra0 = dwt_r_ref[0:H2, :]
    ra1 = dwt_r_ref[H2:H, :]
    cb0 = dwt_c_ref[:, 0:W2]
    cb1 = dwt_c_ref[:, W2:W]
    ta0 = _mm(ra0, t2d)
    ta1 = _mm(ra1, t2d)
    x00 = _mm(ta0, cb0)
    x01 = _mm(ta0, cb1)
    x10 = _mm(ta1, cb0)
    x11 = _mm(ta1, cb1)
    cA = (x00 + x01 + x10 + x11) * 0.5
    cHh = (x00 + x01 - x10 - x11) * 0.5
    cVv = (x00 - x01 + x10 - x11) * 0.5
    cDd = (x00 - x01 - x10 + x11) * 0.5
    del cA  # TODO(synk): low-frequency path (low_conv/ca2) elided -- alpha==1.0
    #         in the reference makes its contribution exactly zero.

    # ---- high_conv: 1x1 conv (padding=1) + ReLU + PixelShuffle(2) -----------
    # interior via pre-composed scatter matrices; padded border = relu(bias_k)
    hf = jnp.zeros((HB, WB), f32)
    for k in range(4):
        a, b = k // 2, k % 2
        inner = (cHh * hc_w_ref[0, k] + cVv * hc_w_ref[1, k]
                 + cDd * hc_w_ref[2, k])
        core = jnp.maximum(inner + hc_b_ref[0, k], 0.0)           # (H2, W2)
        hf = hf + _mm(_mm(rz_ref[a], core), zc_ref[b])
        hf = hf + jnp.maximum(hc_b_ref[0, k], 0.0) * bord_ref[k]

    # ---- cv2.GaussianBlur((5,5), 0.5), BORDER_REFLECT_101 -------------------
    hf = _mm(_mm(blur_ref[0], hf), blur_ref[1])

    # ---- ChannelAttention (ca1): single channel, ratio=1 -> scalar fc1/fc2 --
    avg = jnp.mean(jnp.mean(hf, axis=1, keepdims=True), axis=0, keepdims=True)
    mx = jnp.max(jnp.max(hf, axis=1, keepdims=True), axis=0, keepdims=True)
    w_fc1 = ca_ref[0, 0]
    w_fc2 = ca_ref[0, 1]
    att = jax.nn.sigmoid(w_fc2 * jnp.maximum(w_fc1 * avg, 0.0)
                         + w_fc2 * jnp.maximum(w_fc1 * mx, 0.0))
    hf = att * hf

    # ---- cat_conv: 6x6 valid conv on (alpha*hf, (1-alpha)*lf); lf term == 0 -
    acc = jnp.zeros((HC, WC), f32)
    for p in range(6):
        rows = hf[p:p + HC, :]                     # hoist row slice per p
        for q in range(6):
            acc = acc + rows[:, q:q + WC] * cat_w_ref[0, p * 6 + q]
    cat_out = jnp.maximum(acc + cat_b_ref[0, 0], 0.0)             # (HC, WC)

    # ---- residual add, back to a flat row ------------------------------------
    # TODO(synk): the original PyTorch adds (H,W)+(H-1,W-1), which raises; here
    # cat_out is zero-padded on the bottom/right so the residual is well-defined.
    cat_flat = jnp.sum(mh * _mm(_mm(pr_ref[...], cat_out), pcq_ref[...]),
                       axis=0, keepdims=True)                     # (1, HW)
    f12_row = t_row + cat_flat

    # ---- conv9, first 3x3 conv (1 -> 32), zero-padded flat row + lane shifts -
    lane = jax.lax.broadcasted_iota(jnp.int32, (1, HW), 1)
    wcol = lane % W
    mask_l = (wcol >= 1).astype(f32)
    mask_r = (wcol <= W - 2).astype(f32)

    fpad_ref[...] = jnp.zeros(fpad_ref.shape, f32)
    fpad_ref[:, pl.ds(PADL, HW)] = f12_row

    w1t = c9_w1t_ref[...]                              # (32, 9)
    acc1 = jnp.zeros((w1t.shape[0], HW), f32)
    for k in range(9):
        di, dj = k // 3, k % 3
        off = (di - 1) * W + (dj - 1)
        tap = fpad_ref[:, pl.ds(PADL + off, HW)]       # (1, HW)
        if dj == 0:
            tap = tap * mask_l
        elif dj == 2:
            tap = tap * mask_r
        acc1 = acc1 + w1t[:, k:k + 1] * tap
    y1t = jnp.maximum(acc1 + c9_b1_ref[...], 0.0)      # (32, HW)

    # ---- conv9, second 3x3 conv (32 -> 64): in-kernel im2col + one matmul ----
    C1 = w1t.shape[0]
    ypad_ref[...] = jnp.zeros(ypad_ref.shape, f32)
    ypad_ref[:, pl.ds(PADL, HW)] = y1t
    for k in range(9):
        di, dj = k // 3, k % 3
        off = (di - 1) * W + (dj - 1)
        sh = ypad_ref[:, pl.ds(PADL + off, HW)]        # (32, HW)
        if dj == 0:
            sh = sh * mask_l
        elif dj == 2:
            sh = sh * mask_r
        imt_ref[k * C1:(k + 1) * C1, :] = sh
    y2t = _mm(c9_w2t_ref[...], imt_ref[...]) + c9_b2_ref[...]     # (64, HW)
    o_ref[...] = jnp.maximum(y2t, 0.0)                 # lane-dense store


# =============================================================================
# Forward wrapper (only layout-trivial reshapes outside the kernel)
# =============================================================================
def dwt_block_forward(params, x):
    """DWT_block.forward: x (1, Cin, H, W) -> (1, 64, H, W)."""
    B, Cin, H, W = x.shape
    assert B == 1, "cv2.GaussianBlur squeeze() in the original assumes batch==1"
    assert H == W and H % 2 == 0
    HW = H * W
    PADL = 128                          # zero-pad width in the flattened row
    assert W + 1 <= PADL

    c = _dwt_constants(H, W)
    vmem = pl.BlockSpec(memory_space=pltpu.MemorySpace.VMEM)
    smem = pl.BlockSpec(memory_space=pltpu.MemorySpace.SMEM)

    x2d = x.reshape(Cin, HW)            # channels-major, layout-trivial

    out = pl.pallas_call(
        partial(_dwt_fused_kernel, H=H, W=W, PADL=PADL),
        out_shape=jax.ShapeDtypeStruct((64, HW), jnp.float32),
        in_specs=[vmem] * 17 + [smem] * 5 + [vmem] * 4,
        out_specs=vmem,
        scratch_shapes=[
            pltpu.VMEM((1, HW + 2 * PADL), jnp.float32),    # padded f12 row
            pltpu.VMEM((32, HW + 2 * PADL), jnp.float32),   # padded y1 (32ch)
            pltpu.VMEM((288, HW), jnp.float32),             # conv9 im2col^T
        ],
    )(x2d,
      params["xc1_wt"], params["xc1_b"], params["xc2_wt"], params["xc2_b"],
      params["xc3_wt"], params["xc3_b"],
      c["mh"], c["qw"], c["dwt_r"], c["dwt_c"], c["rz"], c["zc"],
      c["bord"], c["blur"], c["pr"], c["pcq"],
      params["hc_w"], params["hc_b"], params["ca_w"],
      params["cat_w"], params["cat_b"],
      params["c9_w1t"], params["c9_b1"], params["c9_w2t"], params["c9_b2"])

    return out.reshape(1, 64, H, W)     # (64, HW) row-major == (64, H, W)


# =============================================================================
# Deterministic parameter init (packed into matmul-ready layouts at init time)
# =============================================================================
def init_dwt_block_params(key, in_ch=64):
    ks = iter(jax.random.split(key, 32))
    dim = 4

    def nrm(shape, fan_in):
        return jax.random.normal(next(ks), shape, jnp.float32) / np.sqrt(fan_in)

    return {
        # x_conv1/2/3: (Cout, Cin) == torch (Cout,Cin,1,1) squeezed; bias (Cout,1)
        "xc1_wt": nrm((16, in_ch), in_ch), "xc1_b": nrm((16, 1), 16),
        "xc2_wt": nrm((8, 16), 16),        "xc2_b": nrm((8, 1), 8),
        "xc3_wt": nrm((1, 8), 8),          "xc3_b": nrm((1, 1), 1),
        # high_conv / low_conv 1x1 convs: (Cin, Cout) scalar taps
        "hc_w": nrm((3, dim), 3),  "hc_b": nrm((1, dim), dim),
        "lc_w": nrm((1, dim), 1),  "lc_b": nrm((1, dim), dim),   # dead (alpha=1)
        # ChannelAttention fc1/fc2 scalars: [ca1_fc1, ca1_fc2, ca2_fc1, ca2_fc2]
        "ca_w": nrm((1, 4), 1),
        # cat_conv Conv2d(2,1,6): (in_ch, 36) taps + scalar bias (row 1 unused)
        "cat_w": nrm((2, 36), 72), "cat_b": nrm((1, 1), 1),
        # conv9: w1t[c, 3*di+dj] == torch_w1[c,0,di,dj]
        #        w2t[o, (3*di+dj)*32 + c] == torch_w2[o,c,di,dj]
        "c9_w1t": nrm((32, 9), 9),      "c9_b1": nrm((32, 1), 32),
        "c9_w2t": nrm((64, 288), 288),  "c9_b2": nrm((64, 1), 64),
    }


# =============================================================================
if __name__ == "__main__":
    key = jax.random.PRNGKey(0)
    pkey, xkey = jax.random.split(key)

    params = init_dwt_block_params(pkey, in_ch=64)
    # batch=1 is required by the original forward (cv2 blur squeezes to 2D).
    x = jax.random.normal(xkey, (1, 64, 16, 16), jnp.float32)

    fwd = jax.jit(dwt_block_forward)
    out = jax.block_until_ready(fwd(params, x))

    assert out.shape == (1, 64, 16, 16), out.shape
    assert bool(jnp.all(jnp.isfinite(out)))
    print("KERNEL_OK")
</pallas_src>

<mosaic_0001>
module attributes {stable_mosaic.version = 11 : i64} {
  func.func @_dwt_fused_kernel(%arg0: memref<64x256xf32, #tpu.memory_space<vmem>>, %arg1: memref<16x64xf32, #tpu.memory_space<vmem>>, %arg2: memref<16x1xf32, #tpu.memory_space<vmem>>, %arg3: memref<8x16xf32, #tpu.memory_space<vmem>>, %arg4: memref<8x1xf32, #tpu.memory_space<vmem>>, %arg5: memref<1x8xf32, #tpu.memory_space<vmem>>, %arg6: memref<1x1xf32, #tpu.memory_space<vmem>>, %arg7: memref<16x256xf32, #tpu.memory_space<vmem>>, %arg8: memref<256x16xf32, #tpu.memory_space<vmem>>, %arg9: memref<16x16xf32, #tpu.memory_space<vmem>>, %arg10: memref<16x16xf32, #tpu.memory_space<vmem>>, %arg11: memref<2x20x8xf32, #tpu.memory_space<vmem>>, %arg12: memref<2x8x20xf32, #tpu.memory_space<vmem>>, %arg13: memref<4x20x20xf32, #tpu.memory_space<vmem>>, %arg14: memref<2x20x20xf32, #tpu.memory_space<vmem>>, %arg15: memref<16x15xf32, #tpu.memory_space<vmem>>, %arg16: memref<15x256xf32, #tpu.memory_space<vmem>>, %arg17: memref<3x4xf32, #tpu.memory_space<smem>>, %arg18: memref<1x4xf32, #tpu.memory_space<smem>>, %arg19: memref<1x4xf32, #tpu.memory_space<smem>>, %arg20: memref<2x36xf32, #tpu.memory_space<smem>>, %arg21: memref<1x1xf32, #tpu.memory_space<smem>>, %arg22: memref<32x9xf32, #tpu.memory_space<vmem>>, %arg23: memref<32x1xf32, #tpu.memory_space<vmem>>, %arg24: memref<64x288xf32, #tpu.memory_space<vmem>>, %arg25: memref<64x1xf32, #tpu.memory_space<vmem>>, %arg26: memref<64x256xf32, #tpu.memory_space<vmem>>, %arg27: memref<1x512xf32, #tpu.memory_space<vmem>>, %arg28: memref<32x512xf32, #tpu.memory_space<vmem>>, %arg29: memref<288x256xf32, #tpu.memory_space<vmem>>) attributes {dimension_semantics = [], scalar_prefetch = 0 : i64, scratch_operands = 3 : i64, tpu.core_type = #tpu.core_type<tc>} {
    %c0 = arith.constant 0 : index
    %c0_0 = arith.constant 0 : index
    %0 = vector.load %arg1[%c0, %c0_0] : memref<16x64xf32, #tpu.memory_space<vmem>>, vector<16x64xf32>
    %c0_1 = arith.constant 0 : index
    %c0_2 = arith.constant 0 : index
    %1 = vector.load %arg0[%c0_1, %c0_2] : memref<64x256xf32, #tpu.memory_space<vmem>>, vector<64x256xf32>
    %cst = arith.constant dense<0.000000e+00> : vector<16x256xf32>
    %2 = tpu.matmul %0, %1, %cst {dimension_numbers = #tpu.dot_dimension_numbers<[1], [0], [0], [1], [0, 0, 1, 1], [], []>} : vector<16x64xf32>, vector<64x256xf32>, vector<16x256xf32> -> vector<16x256xf32>
    %c0_3 = arith.constant 0 : index
    %c0_4 = arith.constant 0 : index
    %3 = vector.load %arg2[%c0_3, %c0_4] : memref<16x1xf32, #tpu.memory_space<vmem>>, vector<16x1xf32>
    %4 = vector.broadcast %3 : vector<16x1xf32> to vector<16x256xf32>
    %5 = arith.addf %2, %4 : vector<16x256xf32>
    %cst_5 = arith.constant 0.000000e+00 : f32
    %6 = vector.broadcast %cst_5 : f32 to vector<16x256xf32>
    %7 = arith.maximumf %5, %6 : vector<16x256xf32>
    %c0_6 = arith.constant 0 : index
    %c0_7 = arith.constant 0 : index
    %8 = vector.load %arg3[%c0_6, %c0_7] : memref<8x16xf32, #tpu.memory_space<vmem>>, vector<8x16xf32>
    %cst_8 = arith.constant dense<0.000000e+00> : vector<8x256xf32>
    %9 = tpu.matmul %8, %7, %cst_8 {dimension_numbers = #tpu.dot_dimension_numbers<[1], [0], [0], [1], [0, 0, 1, 1], [], []>} : vector<8x16xf32>, vector<16x256xf32>, vector<8x256xf32> -> vector<8x256xf32>
    %c0_9 = arith.constant 0 : index
    %c0_10 = arith.constant 0 : index
    %10 = vector.load %arg4[%c0_9, %c0_10] : memref<8x1xf32, #tpu.memory_space<vmem>>, vector<8x1xf32>
    %11 = vector.broadcast %10 : vector<8x1xf32> to vector<8x256xf32>
    %12 = arith.addf %9, %11 : vector<8x256xf32>
    %cst_11 = arith.constant 0.000000e+00 : f32
    %13 = vector.broadcast %cst_11 : f32 to vector<8x256xf32>
    %14 = arith.maximumf %12, %13 : vector<8x256xf32>
    %c0_12 = arith.constant 0 : index
    %c0_13 = arith.constant 0 : index
    %15 = vector.load %arg5[%c0_12, %c0_13] : memref<1x8xf32, #tpu.memory_space<vmem>>, vector<1x8xf32>
    %cst_14 = arith.constant dense<0.000000e+00> : vector<1x256xf32>
    %16 = tpu.matmul %15, %14, %cst_14 {dimension_numbers = #tpu.dot_dimension_numbers<[1], [0], [0], [1], [0, 0, 1, 1], [], []>} : vector<1x8xf32>, vector<8x256xf32>, vector<1x256xf32> -> vector<1x256xf32>
    %c0_15 = arith.constant 0 : index
    %c0_16 = arith.constant 0 : index
    %17 = vector.load %arg6[%c0_15, %c0_16] : memref<1x1xf32, #tpu.memory_space<vmem>>, vector<1x1xf32>
    %18 = vector.broadcast %17 : vector<1x1xf32> to vector<1x256xf32>
    %19 = arith.addf %16, %18 : vector<1x256xf32>
    %cst_17 = arith.constant 0.000000e+00 : f32
    %20 = vector.broadcast %cst_17 : f32 to vector<1x256xf32>
    %21 = arith.maximumf %19, %20 : vector<1x256xf32>
    %c0_18 = arith.constant 0 : index
    %c0_19 = arith.constant 0 : index
    %22 = vector.load %arg7[%c0_18, %c0_19] : memref<16x256xf32, #tpu.memory_space<vmem>>, vector<16x256xf32>
    %23 = vector.broadcast %21 : vector<1x256xf32> to vector<16x256xf32>
    %24 = arith.mulf %23, %22 : vector<16x256xf32>
    %c0_20 = arith.constant 0 : index
    %c0_21 = arith.constant 0 : index
    %25 = vector.load %arg8[%c0_20, %c0_21] : memref<256x16xf32, #tpu.memory_space<vmem>>, vector<256x16xf32>
    %cst_22 = arith.constant dense<0.000000e+00> : vector<16x16xf32>
    %26 = tpu.matmul %24, %25, %cst_22 {dimension_numbers = #tpu.dot_dimension_numbers<[1], [0], [0], [1], [0, 0, 1, 1], [], []>} : vector<16x256xf32>, vector<256x16xf32>, vector<16x16xf32> -> vector<16x16xf32>
    %c0_23 = arith.constant 0 : index
    %c0_24 = arith.constant 0 : index
    %27 = vector.load %arg9[%c0_23, %c0_24] : memref<16x16xf32, #tpu.memory_space<vmem>>, vector<8x16xf32>
    %c8 = arith.constant 8 : index
    %c0_25 = arith.constant 0 : index
    %28 = vector.load %arg9[%c8, %c0_25] : memref<16x16xf32, #tpu.memory_space<vmem>>, vector<8x16xf32>
    %c0_26 = arith.constant 0 : index
    %c0_27 = arith.constant 0 : index
    %29 = vector.load %arg10[%c0_26, %c0_27] : memref<16x16xf32, #tpu.memory_space<vmem>>, vector<16x8xf32>
    %c0_28 = arith.constant 0 : index
    %c8_29 = arith.constant 8 : index
    %30 = vector.load %arg10[%c0_28, %c8_29] : memref<16x16xf32, #tpu.memory_space<vmem>>, vector<16x8xf32>
    %cst_30 = arith.constant dense<0.000000e+00> : vector<8x16xf32>
    %31 = tpu.matmul %27, %26, %cst_30 {dimension_numbers = #tpu.dot_dimension_numbers<[1], [0], [0], [1], [0, 0, 1, 1], [], []>} : vector<8x16xf32>, vector<16x16xf32>, vector<8x16xf32> -> vector<8x16xf32>
    %cst_31 = arith.constant dense<0.000000e+00> : vector<8x16xf32>
    %32 = tpu.matmul %28, %26, %cst_31 {dimension_numbers = #tpu.dot_dimension_numbers<[1], [0], [0], [1], [0, 0, 1, 1], [], []>} : vector<8x16xf32>, vector<16x16xf32>, vector<8x16xf32> -> vector<8x16xf32>
    %cst_32 = arith.constant dense<0.000000e+00> : vector<8x8xf32>
    %33 = tpu.matmul %31, %29, %cst_32 {dimension_numbers = #tpu.dot_dimension_numbers<[1], [0], [0], [1], [0, 0, 1, 1], [], []>} : vector<8x16xf32>, vector<16x8xf32>, vector<8x8xf32> -> vector<8x8xf32>
    %cst_33 = arith.constant dense<0.000000e+00> : vector<8x8xf32>
    %34 = tpu.matmul %31, %30, %cst_33 {dimension_numbers = #tpu.dot_dimension_numbers<[1], [0], [0], [1], [0, 0, 1, 1], [], []>} : vector<8x16xf32>, vector<16x8xf32>, vector<8x8xf32> -> vector<8x8xf32>
    %cst_34 = arith.constant dense<0.000000e+00> : vector<8x8xf32>
    %35 = tpu.matmul %32, %29, %cst_34 {dimension_numbers = #tpu.dot_dimension_numbers<[1], [0], [0], [1], [0, 0, 1, 1], [], []>} : vector<8x16xf32>, vector<16x8xf32>, vector<8x8xf32> -> vector<8x8xf32>
    %cst_35 = arith.constant dense<0.000000e+00> : vector<8x8xf32>
    %36 = tpu.matmul %32, %30, %cst_35 {dimension_numbers = #tpu.dot_dimension_numbers<[1], [0], [0], [1], [0, 0, 1, 1], [], []>} : vector<8x16xf32>, vector<16x8xf32>, vector<8x8xf32> -> vector<8x8xf32>
    %37 = arith.addf %33, %34 : vector<8x8xf32>
    %38 = arith.subf %37, %35 : vector<8x8xf32>
    %39 = arith.subf %38, %36 : vector<8x8xf32>
    %cst_36 = arith.constant 5.000000e-01 : f32
    %40 = vector.broadcast %cst_36 : f32 to vector<8x8xf32>
    %41 = arith.mulf %39, %40 : vector<8x8xf32>
    %42 = arith.subf %33, %34 : vector<8x8xf32>
    %43 = arith.addf %42, %35 : vector<8x8xf32>
    %44 = arith.subf %43, %36 : vector<8x8xf32>
    %cst_37 = arith.constant 5.000000e-01 : f32
    %45 = vector.broadcast %cst_37 : f32 to vector<8x8xf32>
    %46 = arith.mulf %44, %45 : vector<8x8xf32>
    %47 = arith.subf %33, %34 : vector<8x8xf32>
    %48 = arith.subf %47, %35 : vector<8x8xf32>
    %49 = arith.addf %48, %36 : vector<8x8xf32>
    %cst_38 = arith.constant 5.000000e-01 : f32
    %50 = vector.broadcast %cst_38 : f32 to vector<8x8xf32>
    %51 = arith.mulf %49, %50 : vector<8x8xf32>
    %cst_39 = arith.constant 0.000000e+00 : f32
    %52 = vector.broadcast %cst_39 : f32 to vector<20x20xf32>
    %c0_40 = arith.constant 0 : index
    %c0_41 = arith.constant 0 : index
    %53 = memref.load %arg17[%c0_40, %c0_41] : memref<3x4xf32, #tpu.memory_space<smem>>
    %54 = vector.broadcast %53 : f32 to vector<8x8xf32>
    %55 = arith.mulf %41, %54 : vector<8x8xf32>
    %c1 = arith.constant 1 : index
    %c0_42 = arith.constant 0 : index
    %56 = memref.load %arg17[%c1, %c0_42] : memref<3x4xf32, #tpu.memory_space<smem>>
    %57 = vector.broadcast %56 : f32 to vector<8x8xf32>
    %58 = arith.mulf %46, %57 : vector<8x8xf32>
    %59 = arith.addf %55, %58 : vector<8x8xf32>
    %c2 = arith.constant 2 : index
    %c0_43 = arith.constant 0 : index
    %60 = memref.load %arg17[%c2, %c0_43] : memref<3x4xf32, #tpu.memory_space<smem>>
    %61 = vector.broadcast %60 : f32 to vector<8x8xf32>
    %62 = arith.mulf %51, %61 : vector<8x8xf32>
    %63 = arith.addf %59, %62 : vector<8x8xf32>
    %c0_44 = arith.constant 0 : index
    %c0_45 = arith.constant 0 : index
    %64 = memref.load %arg18[%c0_44, %c0_45] : memref<1x4xf32, #tpu.memory_space<smem>>
    %65 = vector.broadcast %64 : f32 to vector<8x8xf32>
    %66 = arith.addf %63, %65 : vector<8x8xf32>
    %cst_46 = arith.constant 0.000000e+00 : f32
    %67 = vector.broadcast %cst_46 : f32 to vector<8x8xf32>
    %68 = arith.maximumf %66, %67 : vector<8x8xf32>
    %c0_47 = arith.constant 0 : index
    %c0_48 = arith.constant 0 : index
    %c0_49 = arith.constant 0 : index
    %69 = vector.load %arg11[%c0_47, %c0_48, %c0_49] : memref<2x20x8xf32, #tpu.memory_space<vmem>>, vector<1x20x8xf32>
    %70 = vector.shape_cast %69 : vector<1x20x8xf32> to vector<20x8xf32>
    %cst_50 = arith.constant dense<0.000000e+00> : vector<20x8xf32>
    %71 = tpu.matmul %70, %68, %cst_50 {dimension_numbers = #tpu.dot_dimension_numbers<[1], [0], [0], [1], [0, 0, 1, 1], [], []>} : vector<20x8xf32>, vector<8x8xf32>, vector<20x8xf32> -> vector<20x8xf32>
    %c0_51 = arith.constant 0 : index
    %c0_52 = arith.constant 0 : index
    %c0_53 = arith.constant 0 : index
    %72 = vector.load %arg12[%c0_51, %c0_52, %c0_53] : memref<2x8x20xf32, #tpu.memory_space<vmem>>, vector<1x8x20xf32>
    %73 = vector.shape_cast %72 : vector<1x8x20xf32> to vector<8x20xf32>
    %cst_54 = arith.constant dense<0.000000e+00> : vector<20x20xf32>
    %74 = tpu.matmul %71, %73, %cst_54 {dimension_numbers = #tpu.dot_dimension_numbers<[1], [0], [0], [1], [0, 0, 1, 1], [], []>} : vector<20x8xf32>, vector<8x20xf32>, vector<20x20xf32> -> vector<20x20xf32>
    %75 = arith.addf %52, %74 : vector<20x20xf32>
    %c0_55 = arith.constant 0 : index
    %c0_56 = arith.constant 0 : index
    %76 = memref.load %arg18[%c0_55, %c0_56] : memref<1x4xf32, #tpu.memory_space<smem>>
    %cst_57 = arith.constant 0.000000e+00 : f32
    %77 = arith.maximumf %76, %cst_57 : f32
    %c0_58 = arith.constant 0 : index
    %c0_59 = arith.constant 0 : index
    %c0_60 = arith.constant 0 : index
    %78 = vector.load %arg13[%c0_58, %c0_59, %c0_60] : memref<4x20x20xf32, #tpu.memory_space<vmem>>, vector<1x20x20xf32>
    %79 = vector.shape_cast %78 : vector<1x20x20xf32> to vector<20x20xf32>
    %80 = vector.broadcast %77 : f32 to vector<20x20xf32>
    %81 = arith.mulf %80, %79 : vector<20x20xf32>
    %82 = arith.addf %75, %81 : vector<20x20xf32>
    %c0_61 = arith.constant 0 : index
    %c1_62 = arith.constant 1 : index
    %83 = memref.load %arg17[%c0_61, %c1_62] : memref<3x4xf32, #tpu.memory_space<smem>>
    %84 = vector.broadcast %83 : f32 to vector<8x8xf32>
    %85 = arith.mulf %41, %84 : vector<8x8xf32>
    %c1_63 = arith.constant 1 : index
    %c1_64 = arith.constant 1 : index
    %86 = memref.load %arg17[%c1_63, %c1_64] : memref<3x4xf32, #tpu.memory_space<smem>>
    %87 = vector.broadcast %86 : f32 to vector<8x8xf32>
    %88 = arith.mulf %46, %87 : vector<8x8xf32>
    %89 = arith.addf %85, %88 : vector<8x8xf32>
    %c2_65 = arith.constant 2 : index
    %c1_66 = arith.constant 1 : index
    %90 = memref.load %arg17[%c2_65, %c1_66] : memref<3x4xf32, #tpu.memory_space<smem>>
    %91 = vector.broadcast %90 : f32 to vector<8x8xf32>
    %92 = arith.mulf %51, %91 : vector<8x8xf32>
    %93 = arith.addf %89, %92 : vector<8x8xf32>
    %c0_67 = arith.constant 0 : index
    %c1_68 = arith.constant 1 : index
    %94 = memref.load %arg18[%c0_67, %c1_68] : memref<1x4xf32, #tpu.memory_space<smem>>
    %95 = vector.broadcast %94 : f32 to vector<8x8xf32>
    %96 = arith.addf %93, %95 : vector<8x8xf32>
    %cst_69 = arith.constant 0.000000e+00 : f32
    %97 = vector.broadcast %cst_69 : f32 to vector<8x8xf32>
    %98 = arith.maximumf %96, %97 : vector<8x8xf32>
    %c0_70 = arith.constant 0 : index
    %c0_71 = arith.constant 0 : index
    %c0_72 = arith.constant 0 : index
    %99 = vector.load %arg11[%c0_70, %c0_71, %c0_72] : memref<2x20x8xf32, #tpu.memory_space<vmem>>, vector<1x20x8xf32>
    %100 = vector.shape_cast %99 : vector<1x20x8xf32> to vector<20x8xf32>
    %cst_73 = arith.constant dense<0.000000e+00> : vector<20x8xf32>
    %101 = tpu.matmul %100, %98, %cst_73 {dimension_numbers = #tpu.dot_dimension_numbers<[1], [0], [0], [1], [0, 0, 1, 1], [], []>} : vector<20x8xf32>, vector<8x8xf32>, vector<20x8xf32> -> vector<20x8xf32>
    %c1_74 = arith.constant 1 : index
    %c0_75 = arith.constant 0 : index
    %c0_76 = arith.constant 0 : index
    %102 = vector.load %arg12[%c1_74, %c0_75, %c0_76] : memref<2x8x20xf32, #tpu.memory_space<vmem>>, vector<1x8x20xf32>
    %103 = vector.shape_cast %102 : vector<1x8x20xf32> to vector<8x20xf32>
    %cst_77 = arith.constant dense<0.000000e+00> : vector<20x20xf32>
    %104 = tpu.matmul %101, %103, %cst_77 {dimension_numbers = #tpu.dot_dimension_numbers<[1], [0], [0], [1], [0, 0, 1, 1], [], []>} : vector<20x8xf32>, vector<8x20xf32>, vector<20x20xf32> -> vector<20x20xf32>
    %105 = arith.addf %82, %104 : vector<20x20xf32>
    %c0_78 = arith.constant 0 : index
    %c1_79 = arith.constant 1 : index
    %106 = memref.load %arg18[%c0_78, %c1_79] : memref<1x4xf32, #tpu.memory_space<smem>>
    %cst_80 = arith.constant 0.000000e+00 : f32
    %107 = arith.maximumf %106, %cst_80 : f32
    %c1_81 = arith.constant 1 : index
    %c0_82 = arith.constant 0 : index
    %c0_83 = arith.constant 0 : index
    %108 = vector.load %arg13[%c1_81, %c0_82, %c0_83] : memref<4x20x20xf32, #tpu.memory_space<vmem>>, vector<1x20x20xf32>
    %109 = vector.shape_cast %108 : vector<1x20x20xf32> to vector<20x20xf32>
    %110 = vector.broadcast %107 : f32 to vector<20x20xf32>
    %111 = arith.mulf %110, %109 : vector<20x20xf32>
    %112 = arith.addf %105, %111 : vector<20x20xf32>
    %c0_84 = arith.constant 0 : index
    %c2_85 = arith.constant 2 : index
    %113 = memref.load %arg17[%c0_84, %c2_85] : memref<3x4xf32, #tpu.memory_space<smem>>
    %114 = vector.broadcast %113 : f32 to vector<8x8xf32>
    %115 = arith.mulf %41, %114 : vector<8x8xf32>
    %c1_86 = arith.constant 1 : index
    %c2_87 = arith.constant 2 : index
    %116 = memref.load %arg17[%c1_86, %c2_87] : memref<3x4xf32, #tpu.memory_space<smem>>
    %117 = vector.broadcast %116 : f32 to vector<8x8xf32>
    %118 = arith.mulf %46, %117 : vector<8x8xf32>
    %119 = arith.addf %115, %118 : vector<8x8xf32>
    %c2_88 = arith.constant 2 : index
    %c2_89 = arith.constant 2 : index
    %120 = memref.load %arg17[%c2_88, %c2_89] : memref<3x4xf32, #tpu.memory_space<smem>>
    %121 = vector.broadcast %120 : f32 to vector<8x8xf32>
    %122 = arith.mulf %51, %121 : vector<8x8xf32>
    %123 = arith.addf %119, %122 : vector<8x8xf32>
    %c0_90 = arith.constant 0 : index
    %c2_91 = arith.constant 2 : index
    %124 = memref.load %arg18[%c0_90, %c2_91] : memref<1x4xf32, #tpu.memory_space<smem>>
    %125 = vector.broadcast %124 : f32 to vector<8x8xf32>
    %126 = arith.addf %123, %125 : vector<8x8xf32>
    %cst_92 = arith.constant 0.000000e+00 : f32
    %127 = vector.broadcast %cst_92 : f32 to vector<8x8xf32>
    %128 = arith.maximumf %126, %127 : vector<8x8xf32>
    %c1_93 = arith.constant 1 : index
    %c0_94 = arith.constant 0 : index
    %c0_95 = arith.constant 0 : index
    %129 = vector.load %arg11[%c1_93, %c0_94, %c0_95] : memref<2x20x8xf32, #tpu.memory_space<vmem>>, vector<1x20x8xf32>
    %130 = vector.shape_cast %129 : vector<1x20x8xf32> to vector<20x8xf32>
    %cst_96 = arith.constant dense<0.000000e+00> : vector<20x8xf32>
    %131 = tpu.matmul %130, %128, %cst_96 {dimension_numbers = #tpu.dot_dimension_numbers<[1], [0], [0], [1], [0, 0, 1, 1], [], []>} : vector<20x8xf32>, vector<8x8xf32>, vector<20x8xf32> -> vector<20x8xf32>
    %c0_97 = arith.constant 0 : index
    %c0_98 = arith.constant 0 : index
    %c0_99 = arith.constant 0 : index
    %132 = vector.load %arg12[%c0_97, %c0_98, %c0_99] : memref<2x8x20xf32, #tpu.memory_space<vmem>>, vector<1x8x20xf32>
    %133 = vector.shape_cast %132 : vector<1x8x20xf32> to vector<8x20xf32>
    %cst_100 = arith.constant dense<0.000000e+00> : vector<20x20xf32>
    %134 = tpu.matmul %131, %133, %cst_100 {dimension_numbers = #tpu.dot_dimension_numbers<[1], [0], [0], [1], [0, 0, 1, 1], [], []>} : vector<20x8xf32>, vector<8x20xf32>, vector<20x20xf32> -> vector<20x20xf32>
    %135 = arith.addf %112, %134 : vector<20x20xf32>
    %c0_101 = arith.constant 0 : index
    %c2_102 = arith.constant 2 : index
    %136 = memref.load %arg18[%c0_101, %c2_102] : memref<1x4xf32, #tpu.memory_space<smem>>
    %cst_103 = arith.constant 0.000000e+00 : f32
    %137 = arith.maximumf %136, %cst_103 : f32
    %c2_104 = arith.constant 2 : index
    %c0_105 = arith.constant 0 : index
    %c0_106 = arith.constant 0 : index
    %138 = vector.load %arg13[%c2_104, %c0_105, %c0_106] : memref<4x20x20xf32, #tpu.memory_space<vmem>>, vector<1x20x20xf32>
    %139 = vector.shape_cast %138 : vector<1x20x20xf32> to vector<20x20xf32>
    %140 = vector.broadcast %137 : f32 to vector<20x20xf32>
    %141 = arith.mulf %140, %139 : vector<20x20xf32>
    %142 = arith.addf %135, %141 : vector<20x20xf32>
    %c0_107 = arith.constant 0 : index
    %c3 = arith.constant 3 : index
    %143 = memref.load %arg17[%c0_107, %c3] : memref<3x4xf32, #tpu.memory_space<smem>>
    %144 = vector.broadcast %143 : f32 to vector<8x8xf32>
    %145 = arith.mulf %41, %144 : vector<8x8xf32>
    %c1_108 = arith.constant 1 : index
    %c3_109 = arith.constant 3 : index
    %146 = memref.load %arg17[%c1_108, %c3_109] : memref<3x4xf32, #tpu.memory_space<smem>>
    %147 = vector.broadcast %146 : f32 to vector<8x8xf32>
    %148 = arith.mulf %46, %147 : vector<8x8xf32>
    %149 = arith.addf %145, %148 : vector<8x8xf32>
    %c2_110 = arith.constant 2 : index
    %c3_111 = arith.constant 3 : index
    %150 = memref.load %arg17[%c2_110, %c3_111] : memref<3x4xf32, #tpu.memory_space<smem>>
    %151 = vector.broadcast %150 : f32 to vector<8x8xf32>
    %152 = arith.mulf %51, %151 : vector<8x8xf32>
    %153 = arith.addf %149, %152 : vector<8x8xf32>
    %c0_112 = arith.constant 0 : index
    %c3_113 = arith.constant 3 : index
    %154 = memref.load %arg18[%c0_112, %c3_113] : memref<1x4xf32, #tpu.memory_space<smem>>
    %155 = vector.broadcast %154 : f32 to vector<8x8xf32>
    %156 = arith.addf %153, %155 : vector<8x8xf32>
    %cst_114 = arith.constant 0.000000e+00 : f32
    %157 = vector.broadcast %cst_114 : f32 to vector<8x8xf32>
    %158 = arith.maximumf %156, %157 : vector<8x8xf32>
    %c1_115 = arith.constant 1 : index
    %c0_116 = arith.constant 0 : index
    %c0_117 = arith.constant 0 : index
    %159 = vector.load %arg11[%c1_115, %c0_116, %c0_117] : memref<2x20x8xf32, #tpu.memory_space<vmem>>, vector<1x20x8xf32>
    %160 = vector.shape_cast %159 : vector<1x20x8xf32> to vector<20x8xf32>
    %cst_118 = arith.constant dense<0.000000e+00> : vector<20x8xf32>
    %161 = tpu.matmul %160, %158, %cst_118 {dimension_numbers = #tpu.dot_dimension_numbers<[1], [0], [0], [1], [0, 0, 1, 1], [], []>} : vector<20x8xf32>, vector<8x8xf32>, vector<20x8xf32> -> vector<20x8xf32>
    %c1_119 = arith.constant 1 : index
    %c0_120 = arith.constant 0 : index
    %c0_121 = arith.constant 0 : index
    %162 = vector.load %arg12[%c1_119, %c0_120, %c0_121] : memref<2x8x20xf32, #tpu.memory_space<vmem>>, vector<1x8x20xf32>
    %163 = vector.shape_cast %162 : vector<1x8x20xf32> to vector<8x20xf32>
    %cst_122 = arith.constant dense<0.000000e+00> : vector<20x20xf32>
    %164 = tpu.matmul %161, %163, %cst_122 {dimension_numbers = #tpu.dot_dimension_numbers<[1], [0], [0], [1], [0, 0, 1, 1], [], []>} : vector<20x8xf32>, vector<8x20xf32>, vector<20x20xf32> -> vector<20x20xf32>
    %165 = arith.addf %142, %164 : vector<20x20xf32>
    %c0_123 = arith.constant 0 : index
    %c3_124 = arith.constant 3 : index
    %166 = memref.load %arg18[%c0_123, %c3_124] : memref<1x4xf32, #tpu.memory_space<smem>>
    %cst_125 = arith.constant 0.000000e+00 : f32
    %167 = arith.maximumf %166, %cst_125 : f32
    %c3_126 = arith.constant 3 : index
    %c0_127 = arith.constant 0 : index
    %c0_128 = arith.constant 0 : index
    %168 = vector.load %arg13[%c3_126, %c0_127, %c0_128] : memref<4x20x20xf32, #tpu.memory_space<vmem>>, vector<1x20x20xf32>
    %169 = vector.shape_cast %168 : vector<1x20x20xf32> to vector<20x20xf32>
    %170 = vector.broadcast %167 : f32 to vector<20x20xf32>
    %171 = arith.mulf %170, %169 : vector<20x20xf32>
    %172 = arith.addf %165, %171 : vector<20x20xf32>
    %c0_129 = arith.constant 0 : index
    %c0_130 = arith.constant 0 : index
    %c0_131 = arith.constant 0 : index
    %173 = vector.load %arg14[%c0_129, %c0_130, %c0_131] : memref<2x20x20xf32, #tpu.memory_space<vmem>>, vector<1x20x20xf32>
    %174 = vector.shape_cast %173 : vector<1x20x20xf32> to vector<20x20xf32>
    %cst_132 = arith.constant dense<0.000000e+00> : vector<20x20xf32>
    %175 = tpu.matmul %174, %172, %cst_132 {dimension_numbers = #tpu.dot_dimension_numbers<[1], [0], [0], [1], [0, 0, 1, 1], [], []>} : vector<20x20xf32>, vector<20x20xf32>, vector<20x20xf32> -> vector<20x20xf32>
    %c1_133 = arith.constant 1 : index
    %c0_134 = arith.constant 0 : index
    %c0_135 = arith.constant 0 : index
    %176 = vector.load %arg14[%c1_133, %c0_134, %c0_135] : memref<2x20x20xf32, #tpu.memory_space<vmem>>, vector<1x20x20xf32>
    %177 = vector.shape_cast %176 : vector<1x20x20xf32> to vector<20x20xf32>
    %cst_136 = arith.constant dense<0.000000e+00> : vector<20x20xf32>
    %178 = tpu.matmul %175, %177, %cst_136 {dimension_numbers = #tpu.dot_dimension_numbers<[1], [0], [0], [1], [0, 0, 1, 1], [], []>} : vector<20x20xf32>, vector<20x20xf32>, vector<20x20xf32> -> vector<20x20xf32>
    %cst_137 = arith.constant dense<0.000000e+00> : vector<20xf32>
    %179 = vector.multi_reduction <add>, %178, %cst_137 [1] : vector<20x20xf32> to vector<20xf32>
    %180 = vector.shape_cast %179 : vector<20xf32> to vector<20x1xf32>
    %cst_138 = arith.constant 2.000000e+01 : f32
    %181 = vector.broadcast %cst_138 : f32 to vector<20x1xf32>
    %182 = arith.divf %180, %181 : vector<20x1xf32>
    %cst_139 = arith.constant dense<0.000000e+00> : vector<1xf32>
    %183 = vector.multi_reduction <add>, %182, %cst_139 [0] : vector<20x1xf32> to vector<1xf32>
    %184 = vector.shape_cast %183 : vector<1xf32> to vector<1x1xf32>
    %cst_140 = arith.constant 2.000000e+01 : f32
    %185 = vector.broadcast %cst_140 : f32 to vector<1x1xf32>
    %186 = arith.divf %184, %185 : vector<1x1xf32>
    %cst_141 = arith.constant dense<0xFF800000> : vector<20xf32>
    %187 = vector.multi_reduction <maximumf>, %178, %cst_141 [1] : vector<20x20xf32> to vector<20xf32>
    %188 = vector.shape_cast %187 : vector<20xf32> to vector<20x1xf32>
    %cst_142 = arith.constant dense<0xFF800000> : vector<1xf32>
    %189 = vector.multi_reduction <maximumf>, %188, %cst_142 [0] : vector<20x1xf32> to vector<1xf32>
    %190 = vector.shape_cast %189 : vector<1xf32> to vector<1x1xf32>
    %c0_143 = arith.constant 0 : index
    %c0_144 = arith.constant 0 : index
    %191 = memref.load %arg19[%c0_143, %c0_144] : memref<1x4xf32, #tpu.memory_space<smem>>
    %c0_145 = arith.constant 0 : index
    %c1_146 = arith.constant 1 : index
    %192 = memref.load %arg19[%c0_145, %c1_146] : memref<1x4xf32, #tpu.memory_space<smem>>
    %193 = vector.broadcast %191 : f32 to vector<1x1xf32>
    %194 = arith.mulf %193, %186 : vector<1x1xf32>
    %cst_147 = arith.constant 0.000000e+00 : f32
    %195 = vector.broadcast %cst_147 : f32 to vector<1x1xf32>
    %196 = arith.maximumf %194, %195 : vector<1x1xf32>
    %197 = vector.broadcast %192 : f32 to vector<1x1xf32>
    %198 = arith.mulf %197, %196 : vector<1x1xf32>
    %199 = vector.broadcast %191 : f32 to vector<1x1xf32>
    %200 = arith.mulf %199, %190 : vector<1x1xf32>
    %cst_148 = arith.constant 0.000000e+00 : f32
    %201 = vector.broadcast %cst_148 : f32 to vector<1x1xf32>
    %202 = arith.maximumf %200, %201 : vector<1x1xf32>
    %203 = vector.broadcast %192 : f32 to vector<1x1xf32>
    %204 = arith.mulf %203, %202 : vector<1x1xf32>
    %205 = arith.addf %198, %204 : vector<1x1xf32>
    %206 = arith.negf %205 : vector<1x1xf32>
    %207 = math.exp %206 : vector<1x1xf32>
    %cst_149 = arith.constant 1.000000e+00 : f32
    %208 = vector.broadcast %cst_149 : f32 to vector<1x1xf32>
    %209 = arith.addf %208, %207 : vector<1x1xf32>
    %210 = arith.divf %208, %209 : vector<1x1xf32>
    %211 = vector.broadcast %210 : vector<1x1xf32> to vector<20x20xf32>
    %212 = arith.mulf %211, %178 : vector<20x20xf32>
    %cst_150 = arith.constant 0.000000e+00 : f32
    %213 = vector.broadcast %cst_150 : f32 to vector<15x15xf32>
    %214 = vector.extract_strided_slice %212 {offsets = [0, 0], sizes = [15, 20], strides = [1, 1]} : vector<20x20xf32> to vector<15x20xf32>
    %215 = vector.extract_strided_slice %214 {offsets = [0, 0], sizes = [15, 15], strides = [1, 1]} : vector<15x20xf32> to vector<15x15xf32>
    %c0_151 = arith.constant 0 : index
    %c0_152 = arith.constant 0 : index
    %216 = memref.load %arg20[%c0_151, %c0_152] : memref<2x36xf32, #tpu.memory_space<smem>>
    %217 = vector.broadcast %216 : f32 to vector<15x15xf32>
    %218 = arith.mulf %215, %217 : vector<15x15xf32>
    %219 = arith.addf %213, %218 : vector<15x15xf32>
    %220 = vector.extract_strided_slice %214 {offsets = [0, 1], sizes = [15, 15], strides = [1, 1]} : vector<15x20xf32> to vector<15x15xf32>
    %c0_153 = arith.constant 0 : index
    %c1_154 = arith.constant 1 : index
    %221 = memref.load %arg20[%c0_153, %c1_154] : memref<2x36xf32, #tpu.memory_space<smem>>
    %222 = vector.broadcast %221 : f32 to vector<15x15xf32>
    %223 = arith.mulf %220, %222 : vector<15x15xf32>
    %224 = arith.addf %219, %223 : vector<15x15xf32>
    %225 = vector.extract_strided_slice %214 {offsets = [0, 2], sizes = [15, 15], strides = [1, 1]} : vector<15x20xf32> to vector<15x15xf32>
    %c0_155 = arith.constant 0 : index
    %c2_156 = arith.constant 2 : index
    %226 = memref.load %arg20[%c0_155, %c2_156] : memref<2x36xf32, #tpu.memory_space<smem>>
    %227 = vector.broadcast %226 : f32 to vector<15x15xf32>
    %228 = arith.mulf %225, %227 : vector<15x15xf32>
    %229 = arith.addf %224, %228 : vector<15x15xf32>
    %230 = vector.extract_strided_slice %214 {offsets = [0, 3], sizes = [15, 15], strides = [1, 1]} : vector<15x20xf32> to vector<15x15xf32>
    %c0_157 = arith.constant 0 : index
    %c3_158 = arith.constant 3 : index
    %231 = memref.load %arg20[%c0_157, %c3_158] : memref<2x36xf32, #tpu.memory_space<smem>>
    %232 = vector.broadcast %231 : f32 to vector<15x15xf32>
    %233 = arith.mulf %230, %232 : vector<15x15xf32>
    %234 = arith.addf %229, %233 : vector<15x15xf32>
    %235 = vector.extract_strided_slice %214 {offsets = [0, 4], sizes = [15, 15], strides = [1, 1]} : vector<15x20xf32> to vector<15x15xf32>
    %c0_159 = arith.constant 0 : index
    %c4 = arith.constant 4 : index
    %236 = memref.load %arg20[%c0_159, %c4] : memref<2x36xf32, #tpu.memory_space<smem>>
    %237 = vector.broadcast %236 : f32 to vector<15x15xf32>
    %238 = arith.mulf %235, %237 : vector<15x15xf32>
    %239 = arith.addf %234, %238 : vector<15x15xf32>
    %240 = vector.extract_strided_slice %214 {offsets = [0, 5], sizes = [15, 15], strides = [1, 1]} : vector<15x20xf32> to vector<15x15xf32>
    %c0_160 = arith.constant 0 : index
    %c5 = arith.constant 5 : index
    %241 = memref.load %arg20[%c0_160, %c5] : memref<2x36xf32, #tpu.memory_space<smem>>
    %242 = vector.broadcast %241 : f32 to vector<15x15xf32>
    %243 = arith.mulf %240, %242 : vector<15x15xf32>
    %244 = arith.addf %239, %243 : vector<15x15xf32>
    %245 = vector.extract_strided_slice %212 {offsets = [1, 0], sizes = [15, 20], strides = [1, 1]} : vector<20x20xf32> to vector<15x20xf32>
    %246 = vector.extract_strided_slice %245 {offsets = [0, 0], sizes = [15, 15], strides = [1, 1]} : vector<15x20xf32> to vector<15x15xf32>
    %c0_161 = arith.constant 0 : index
    %c6 = arith.constant 6 : index
    %247 = memref.load %arg20[%c0_161, %c6] : memref<2x36xf32, #tpu.memory_space<smem>>
    %248 = vector.broadcast %247 : f32 to vector<15x15xf32>
    %249 = arith.mulf %246, %248 : vector<15x15xf32>
    %250 = arith.addf %244, %249 : vector<15x15xf32>
    %251 = vector.extract_strided_slice %245 {offsets = [0, 1], sizes = [15, 15], strides = [1, 1]} : vector<15x20xf32> to vector<15x15xf32>
    %c0_162 = arith.constant 0 : index
    %c7 = arith.constant 7 : index
    %252 = memref.load %arg20[%c0_162, %c7] : memref<2x36xf32, #tpu.memory_space<smem>>
    %253 = vector.broadcast %252 : f32 to vector<15x15xf32>
    %254 = arith.mulf %251, %253 : vector<15x15xf32>
    %255 = arith.addf %250, %254 : vector<15x15xf32>
    %256 = vector.extract_strided_slice %245 {offsets = [0, 2], sizes = [15, 15], strides = [1, 1]} : vector<15x20xf32> to vector<15x15xf32>
    %c0_163 = arith.constant 0 : index
    %c8_164 = arith.constant 8 : index
    %257 = memref.load %arg20[%c0_163, %c8_164] : memref<2x36xf32, #tpu.memory_space<smem>>
    %258 = vector.broadcast %257 : f32 to vector<15x15xf32>
    %259 = arith.mulf %256, %258 : vector<15x15xf32>
    %260 = arith.addf %255, %259 : vector<15x15xf32>
    %261 = vector.extract_strided_slice %245 {offsets = [0, 3], sizes = [15, 15], strides = [1, 1]} : vector<15x20xf32> to vector<15x15xf32>
    %c0_165 = arith.constant 0 : index
    %c9 = arith.constant 9 : index
    %262 = memref.load %arg20[%c0_165, %c9] : memref<2x36xf32, #tpu.memory_space<smem>>
    %263 = vector.broadcast %262 : f32 to vector<15x15xf32>
    %264 = arith.mulf %261, %263 : vector<15x15xf32>
    %265 = arith.addf %260, %264 : vector<15x15xf32>
    %266 = vector.extract_strided_slice %245 {offsets = [0, 4], sizes = [15, 15], strides = [1, 1]} : vector<15x20xf32> to vector<15x15xf32>
    %c0_166 = arith.constant 0 : index
    %c10 = arith.constant 10 : index
    %267 = memref.load %arg20[%c0_166, %c10] : memref<2x36xf32, #tpu.memory_space<smem>>
    %268 = vector.broadcast %267 : f32 to vector<15x15xf32>
    %269 = arith.mulf %266, %268 : vector<15x15xf32>
    %270 = arith.addf %265, %269 : vector<15x15xf32>
    %271 = vector.extract_strided_slice %245 {offsets = [0, 5], sizes = [15, 15], strides = [1, 1]} : vector<15x20xf32> to vector<15x15xf32>
    %c0_167 = arith.constant 0 : index
    %c11 = arith.constant 11 : index
    %272 = memref.load %arg20[%c0_167, %c11] : memref<2x36xf32, #tpu.memory_space<smem>>
    %273 = vector.broadcast %272 : f32 to vector<15x15xf32>
    %274 = arith.mulf %271, %273 : vector<15x15xf32>
    %275 = arith.addf %270, %274 : vector<15x15xf32>
    %276 = vector.extract_strided_slice %212 {offsets = [2, 0], sizes = [15, 20], strides = [1, 1]} : vector<20x20xf32> to vector<15x20xf32>
    %277 = vector.extract_strided_slice %276 {offsets = [0, 0], sizes = [15, 15], strides = [1, 1]} : vector<15x20xf32> to vector<15x15xf32>
    %c0_168 = arith.constant 0 : index
    %c12 = arith.constant 12 : index
    %278 = memref.load %arg20[%c0_168, %c12] : memref<2x36xf32, #tpu.memory_space<smem>>
    %279 = vector.broadcast %278 : f32 to vector<15x15xf32>
    %280 = arith.mulf %277, %279 : vector<15x15xf32>
    %281 = arith.addf %275, %280 : vector<15x15xf32>
    %282 = vector.extract_strided_slice %276 {offsets = [0, 1], sizes = [15, 15], strides = [1, 1]} : vector<15x20xf32> to vector<15x15xf32>
    %c0_169 = arith.constant 0 : index
    %c13 = arith.constant 13 : index
    %283 = memref.load %arg20[%c0_169, %c13] : memref<2x36xf32, #tpu.memory_space<smem>>
    %284 = vector.broadcast %283 : f32 to vector<15x15xf32>
    %285 = arith.mulf %282, %284 : vector<15x15xf32>
    %286 = arith.addf %281, %285 : vector<15x15xf32>
    %287 = vector.extract_strided_slice %276 {offsets = [0, 2], sizes = [15, 15], strides = [1, 1]} : vector<15x20xf32> to vector<15x15xf32>
    %c0_170 = arith.constant 0 : index
    %c14 = arith.constant 14 : index
    %288 = memref.load %arg20[%c0_170, %c14] : memref<2x36xf32, #tpu.memory_space<smem>>
    %289 = vector.broadcast %288 : f32 to vector<15x15xf32>
    %290 = arith.mulf %287, %289 : vector<15x15xf32>
    %291 = arith.addf %286, %290 : vector<15x15xf32>
    %292 = vector.extract_strided_slice %276 {offsets = [0, 3], sizes = [15, 15], strides = [1, 1]} : vector<15x20xf32> to vector<15x15xf32>
    %c0_171 = arith.constant 0 : index
    %c15 = arith.constant 15 : index
    %293 = memref.load %arg20[%c0_171, %c15] : memref<2x36xf32, #tpu.memory_space<smem>>
    %294 = vector.broadcast %293 : f32 to vector<15x15xf32>
    %295 = arith.mulf %292, %294 : vector<15x15xf32>
    %296 = arith.addf %291, %295 : vector<15x15xf32>
    %297 = vector.extract_strided_slice %276 {offsets = [0, 4], sizes = [15, 15], strides = [1, 1]} : vector<15x20xf32> to vector<15x15xf32>
    %c0_172 = arith.constant 0 : index
    %c16 = arith.constant 16 : index
    %298 = memref.load %arg20[%c0_172, %c16] : memref<2x36xf32, #tpu.memory_space<smem>>
    %299 = vector.broadcast %298 : f32 to vector<15x15xf32>
    %300 = arith.mulf %297, %299 : vector<15x15xf32>
    %301 = arith.addf %296, %300 : vector<15x15xf32>
    %302 = vector.extract_strided_slice %276 {offsets = [0, 5], sizes = [15, 15], strides = [1, 1]} : vector<15x20xf32> to vector<15x15xf32>
    %c0_173 = arith.constant 0 : index
    %c17 = arith.constant 17 : index
    %303 = memref.load %arg20[%c0_173, %c17] : memref<2x36xf32, #tpu.memory_space<smem>>
    %304 = vector.broadcast %303 : f32 to vector<15x15xf32>
    %305 = arith.mulf %302, %304 : vector<15x15xf32>
    %306 = arith.addf %301, %305 : vector<15x15xf32>
    %307 = vector.extract_strided_slice %212 {offsets = [3, 0], sizes = [15, 20], strides = [1, 1]} : vector<20x20xf32> to vector<15x20xf32>
    %308 = vector.extract_strided_slice %307 {offsets = [0, 0], sizes = [15, 15], strides = [1, 1]} : vector<15x20xf32> to vector<15x15xf32>
    %c0_174 = arith.constant 0 : index
    %c18 = arith.constant 18 : index
    %309 = memref.load %arg20[%c0_174, %c18] : memref<2x36xf32, #tpu.memory_space<smem>>
    %310 = vector.broadcast %309 : f32 to vector<15x15xf32>
    %311 = arith.mulf %308, %310 : vector<15x15xf32>
    %312 = arith.addf %306, %311 : vector<15x15xf32>
    %313 = vector.extract_strided_slice %307 {offsets = [0, 1], sizes = [15, 15], strides = [1, 1]} : vector<15x20xf32> to vector<15x15xf32>
    %c0_175 = arith.constant 0 : index
    %c19 = arith.constant 19 : index
    %314 = memref.load %arg20[%c0_175, %c19] : memref<2x36xf32, #tpu.memory_space<smem>>
    %315 = vector.broadcast %314 : f32 to vector<15x15xf32>
    %316 = arith.mulf %313, %315 : vector<15x15xf32>
    %317 = arith.addf %312, %316 : vector<15x15xf32>
    %318 = vector.extract_strided_slice %307 {offsets = [0, 2], sizes = [15, 15], strides = [1, 1]} : vector<15x20xf32> to vector<15x15xf32>
    %c0_176 = arith.constant 0 : index
    %c20 = arith.constant 20 : index
    %319 = memref.load %arg20[%c0_176, %c20] : memref<2x36xf32, #tpu.memory_space<smem>>
    %320 = vector.broadcast %319 : f32 to vector<15x15xf32>
    %321 = arith.mulf %318, %320 : vector<15x15xf32>
    %322 = arith.addf %317, %321 : vector<15x15xf32>
    %323 = vector.extract_strided_slice %307 {offsets = [0, 3], sizes = [15, 15], strides = [1, 1]} : vector<15x20xf32> to vector<15x15xf32>
    %c0_177 = arith.constant 0 : index
    %c21 = arith.constant 21 : index
    %324 = memref.load %arg20[%c0_177, %c21] : memref<2x36xf32, #tpu.memory_space<smem>>
    %325 = vector.broadcast %324 : f32 to vector<15x15xf32>
    %326 = arith.mulf %323, %325 : vector<15x15xf32>
    %327 = arith.addf %322, %326 : vector<15x15xf32>
    %328 = vector.extract_strided_slice %307 {offsets = [0, 4], sizes = [15, 15], strides = [1, 1]} : vector<15x20xf32> to vector<15x15xf32>
    %c0_178 = arith.constant 0 : index
    %c22 = arith.constant 22 : index
    %329 = memref.load %arg20[%c0_178, %c22] : memref<2x36xf32, #tpu.memory_space<smem>>
    %330 = vector.broadcast %329 : f32 to vector<15x15xf32>
    %331 = arith.mulf %328, %330 : vector<15x15xf32>
    %332 = arith.addf %327, %331 : vector<15x15xf32>
    %333 = vector.extract_strided_slice %307 {offsets = [0, 5], sizes = [15, 15], strides = [1, 1]} : vector<15x20xf32> to vector<15x15xf32>
    %c0_179 = arith.constant 0 : index
    %c23 = arith.constant 23 : index
    %334 = memref.load %arg20[%c0_179, %c23] : memref<2x36xf32, #tpu.memory_space<smem>>
    %335 = vector.broadcast %334 : f32 to vector<15x15xf32>
    %336 = arith.mulf %333, %335 : vector<15x15xf32>
    %337 = arith.addf %332, %336 : vector<15x15xf32>
    %338 = vector.extract_strided_slice %212 {offsets = [4, 0], sizes = [15, 20], strides = [1, 1]} : vector<20x20xf32> to vector<15x20xf32>
    %339 = vector.extract_strided_slice %338 {offsets = [0, 0], sizes = [15, 15], strides = [1, 1]} : vector<15x20xf32> to vector<15x15xf32>
    %c0_180 = arith.constant 0 : index
    %c24 = arith.constant 24 : index
    %340 = memref.load %arg20[%c0_180, %c24] : memref<2x36xf32, #tpu.memory_space<smem>>
    %341 = vector.broadcast %340 : f32 to vector<15x15xf32>
    %342 = arith.mulf %339, %341 : vector<15x15xf32>
    %343 = arith.addf %337, %342 : vector<15x15xf32>
    %344 = vector.extract_strided_slice %338 {offsets = [0, 1], sizes = [15, 15], strides = [1, 1]} : vector<15x20xf32> to vector<15x15xf32>
    %c0_181 = arith.constant 0 : index
    %c25 = arith.constant 25 : index
    %345 = memref.load %arg20[%c0_181, %c25] : memref<2x36xf32, #tpu.memory_space<smem>>
    %346 = vector.broadcast %345 : f32 to vector<15x15xf32>
    %347 = arith.mulf %344, %346 : vector<15x15xf32>
    %348 = arith.addf %343, %347 : vector<15x15xf32>
    %349 = vector.extract_strided_slice %338 {offsets = [0, 2], sizes = [15, 15], strides = [1, 1]} : vector<15x20xf32> to vector<15x15xf32>
    %c0_182 = arith.constant 0 : index
    %c26 = arith.constant 26 : index
    %350 = memref.load %arg20[%c0_182, %c26] : memref<2x36xf32, #tpu.memory_space<smem>>
    %351 = vector.broadcast %350 : f32 to vector<15x15xf32>
    %352 = arith.mulf %349, %351 : vector<15x15xf32>
    %353 = arith.addf %348, %352 : vector<15x15xf32>
    %354 = vector.extract_strided_slice %338 {offsets = [0, 3], sizes = [15, 15], strides = [1, 1]} : vector<15x20xf32> to vector<15x15xf32>
    %c0_183 = arith.constant 0 : index
    %c27 = arith.constant 27 : index
    %355 = memref.load %arg20[%c0_183, %c27] : memref<2x36xf32, #tpu.memory_space<smem>>
    %356 = vector.broadcast %355 : f32 to vector<15x15xf32>
    %357 = arith.mulf %354, %356 : vector<15x15xf32>
    %358 = arith.addf %353, %357 : vector<15x15xf32>
    %359 = vector.extract_strided_slice %338 {offsets = [0, 4], sizes = [15, 15], strides = [1, 1]} : vector<15x20xf32> to vector<15x15xf32>
    %c0_184 = arith.constant 0 : index
    %c28 = arith.constant 28 : index
    %360 = memref.load %arg20[%c0_184, %c28] : memref<2x36xf32, #tpu.memory_space<smem>>
    %361 = vector.broadcast %360 : f32 to vector<15x15xf32>
    %362 = arith.mulf %359, %361 : vector<15x15xf32>
    %363 = arith.addf %358, %362 : vector<15x15xf32>
    %364 = vector.extract_strided_slice %338 {offsets = [0, 5], sizes = [15, 15], strides = [1, 1]} : vector<15x20xf32> to vector<15x15xf32>
    %c0_185 = arith.constant 0 : index
    %c29 = arith.constant 29 : index
    %365 = memref.load %arg20[%c0_185, %c29] : memref<2x36xf32, #tpu.memory_space<smem>>
    %366 = vector.broadcast %365 : f32 to vector<15x15xf32>
    %367 = arith.mulf %364, %366 : vector<15x15xf32>
    %368 = arith.addf %363, %367 : vector<15x15xf32>
    %369 = vector.extract_strided_slice %212 {offsets = [5, 0], sizes = [15, 20], strides = [1, 1]} : vector<20x20xf32> to vector<15x20xf32>
    %370 = vector.extract_strided_slice %369 {offsets = [0, 0], sizes = [15, 15], strides = [1, 1]} : vector<15x20xf32> to vector<15x15xf32>
    %c0_186 = arith.constant 0 : index
    %c30 = arith.constant 30 : index
    %371 = memref.load %arg20[%c0_186, %c30] : memref<2x36xf32, #tpu.memory_space<smem>>
    %372 = vector.broadcast %371 : f32 to vector<15x15xf32>
    %373 = arith.mulf %370, %372 : vector<15x15xf32>
    %374 = arith.addf %368, %373 : vector<15x15xf32>
    %375 = vector.extract_strided_slice %369 {offsets = [0, 1], sizes = [15, 15], strides = [1, 1]} : vector<15x20xf32> to vector<15x15xf32>
    %c0_187 = arith.constant 0 : index
    %c31 = arith.constant 31 : index
    %376 = memref.load %arg20[%c0_187, %c31] : memref<2x36xf32, #tpu.memory_space<smem>>
    %377 = vector.broadcast %376 : f32 to vector<15x15xf32>
    %378 = arith.mulf %375, %377 : vector<15x15xf32>
    %379 = arith.addf %374, %378 : vector<15x15xf32>
    %380 = vector.extract_strided_slice %369 {offsets = [0, 2], sizes = [15, 15], strides = [1, 1]} : vector<15x20xf32> to vector<15x15xf32>
    %c0_188 = arith.constant 0 : index
    %c32 = arith.constant 32 : index
    %381 = memref.load %arg20[%c0_188, %c32] : memref<2x36xf32, #tpu.memory_space<smem>>
    %382 = vector.broadcast %381 : f32 to vector<15x15xf32>
    %383 = arith.mulf %380, %382 : vector<15x15xf32>
    %384 = arith.addf %379, %383 : vector<15x15xf32>
    %385 = vector.extract_strided_slice %369 {offsets = [0, 3], sizes = [15, 15], strides = [1, 1]} : vector<15x20xf32> to vector<15x15xf32>
    %c0_189 = arith.constant 0 : index
    %c33 = arith.constant 33 : index
    %386 = memref.load %arg20[%c0_189, %c33] : memref<2x36xf32, #tpu.memory_space<smem>>
    %387 = vector.broadcast %386 : f32 to vector<15x15xf32>
    %388 = arith.mulf %385, %387 : vector<15x15xf32>
    %389 = arith.addf %384, %388 : vector<15x15xf32>
    %390 = vector.extract_strided_slice %369 {offsets = [0, 4], sizes = [15, 15], strides = [1, 1]} : vector<15x20xf32> to vector<15x15xf32>
    %c0_190 = arith.constant 0 : index
    %c34 = arith.constant 34 : index
    %391 = memref.load %arg20[%c0_190, %c34] : memref<2x36xf32, #tpu.memory_space<smem>>
    %392 = vector.broadcast %391 : f32 to vector<15x15xf32>
    %393 = arith.mulf %390, %392 : vector<15x15xf32>
    %394 = arith.addf %389, %393 : vector<15x15xf32>
    %395 = vector.extract_strided_slice %369 {offsets = [0, 5], sizes = [15, 15], strides = [1, 1]} : vector<15x20xf32> to vector<15x15xf32>
    %c0_191 = arith.constant 0 : index
    %c35 = arith.constant 35 : index
    %396 = memref.load %arg20[%c0_191, %c35] : memref<2x36xf32, #tpu.memory_space<smem>>
    %397 = vector.broadcast %396 : f32 to vector<15x15xf32>
    %398 = arith.mulf %395, %397 : vector<15x15xf32>
    %399 = arith.addf %394, %398 : vector<15x15xf32>
    %c0_192 = arith.constant 0 : index
    %c0_193 = arith.constant 0 : index
    %400 = memref.load %arg21[%c0_192, %c0_193] : memref<1x1xf32, #tpu.memory_space<smem>>
    %401 = vector.broadcast %400 : f32 to vector<15x15xf32>
    %402 = arith.addf %399, %401 : vector<15x15xf32>
    %cst_194 = arith.constant 0.000000e+00 : f32
    %403 = vector.broadcast %cst_194 : f32 to vector<15x15xf32>
    %404 = arith.maximumf %402, %403 : vector<15x15xf32>
    %c0_195 = arith.constant 0 : index
    %c0_196 = arith.constant 0 : index
    %405 = vector.load %arg15[%c0_195, %c0_196] : memref<16x15xf32, #tpu.memory_space<vmem>>, vector<16x15xf32>
    %cst_197 = arith.constant dense<0.000000e+00> : vector<16x15xf32>
    %406 = tpu.matmul %405, %404, %cst_197 {dimension_numbers = #tpu.dot_dimension_numbers<[1], [0], [0], [1], [0, 0, 1, 1], [], []>} : vector<16x15xf32>, vector<15x15xf32>, vector<16x15xf32> -> vector<16x15xf32>
    %c0_198 = arith.constant 0 : index
    %c0_199 = arith.constant 0 : index
    %407 = vector.load %arg16[%c0_198, %c0_199] : memref<15x256xf32, #tpu.memory_space<vmem>>, vector<15x256xf32>
    %cst_200 = arith.constant dense<0.000000e+00> : vector<16x256xf32>
    %408 = tpu.matmul %406, %407, %cst_200 {dimension_numbers = #tpu.dot_dimension_numbers<[1], [0], [0], [1], [0, 0, 1, 1], [], []>} : vector<16x15xf32>, vector<15x256xf32>, vector<16x256xf32> -> vector<16x256xf32>
    %409 = arith.mulf %22, %408 : vector<16x256xf32>
    %cst_201 = arith.constant dense<0.000000e+00> : vector<256xf32>
    %410 = vector.multi_reduction <add>, %409, %cst_201 [0] : vector<16x256xf32> to vector<256xf32>
    %411 = vector.shape_cast %410 : vector<256xf32> to vector<1x256xf32>
    %412 = arith.addf %21, %411 : vector<1x256xf32>
    %413 = tpu.iota {dimensions = array<i32: 1>} : vector<1x256xi32>
    %c16_i32 = arith.constant 16 : i32
    %c0_i32 = arith.constant 0 : i32
    %414 = arith.cmpi eq, %c16_i32, %c0_i32 : i32
    %c1_i32 = arith.constant 1 : i32
    %415 = arith.select %414, %c1_i32, %c16_i32 : i32
    %416 = vector.broadcast %415 : i32 to vector<1x256xi32>
    %417 = arith.remsi %413, %416 : vector<1x256xi32>
    %c0_i32_202 = arith.constant 0 : i32
    %418 = vector.broadcast %c0_i32_202 : i32 to vector<1x256xi32>
    %419 = arith.cmpi ne, %417, %418 : vector<1x256xi32>
    %c0_i32_203 = arith.constant 0 : i32
    %420 = vector.broadcast %c0_i32_203 : i32 to vector<1x256xi32>
    %421 = arith.cmpi slt, %417, %420 : vector<1x256xi32>
    %c0_i32_204 = arith.constant 0 : i32
    %422 = arith.cmpi slt, %415, %c0_i32_204 : i32
    %423 = vector.broadcast %422 : i1 to vector<1x256xi1>
    %424 = vector.broadcast %423 : vector<1x256xi1> to vector<1x256xi1>
    %425 = arith.xori %421, %424 : vector<1x256xi1>
    %426 = arith.andi %425, %419 : vector<1x256xi1>
    %427 = vector.broadcast %415 : i32 to vector<1x256xi32>
    %428 = arith.addi %417, %427 : vector<1x256xi32>
    %429 = arith.select %426, %428, %417 : vector<1x256xi1>, vector<1x256xi32>
    %c1_i32_205 = arith.constant 1 : i32
    %430 = vector.broadcast %c1_i32_205 : i32 to vector<1x256xi32>
    %431 = arith.cmpi sge, %429, %430 : vector<1x256xi32>
    %432 = arith.extui %431 : vector<1x256xi1> to vector<1x256xi32>
    %433 = arith.sitofp %432 : vector<1x256xi32> to vector<1x256xf32>
    %c14_i32 = arith.constant 14 : i32
    %434 = vector.broadcast %c14_i32 : i32 to vector<1x256xi32>
    %435 = arith.cmpi sle, %429, %434 : vector<1x256xi32>
    %436 = arith.extui %435 : vector<1x256xi1> to vector<1x256xi32>
    %437 = arith.sitofp %436 : vector<1x256xi32> to vector<1x256xf32>
    %cst_206 = arith.constant 0.000000e+00 : f32
    %438 = vector.broadcast %cst_206 : f32 to vector<1x512xf32>
    %c0_207 = arith.constant 0 : index
    %c0_208 = arith.constant 0 : index
    %439 = vector.load %arg27[%c0_207, %c0_208] : memref<1x512xf32, #tpu.memory_space<vmem>>, vector<1x512xf32>
    tpu.vector_store %arg27[%c0_207, %c0_208], %438 {strides = array<i32>} : memref<1x512xf32, #tpu.memory_space<vmem>>, vector<1x512xf32>,
    %c0_209 = arith.constant 0 : index
    %c128 = arith.constant 128 : index
    %440 = vector.load %arg27[%c0_209, %c128] : memref<1x512xf32, #tpu.memory_space<vmem>>, vector<1x256xf32>
    tpu.vector_store %arg27[%c0_209, %c128], %412 {strides = array<i32>} : memref<1x512xf32, #tpu.memory_space<vmem>>, vector<1x256xf32>,
    %c0_210 = arith.constant 0 : index
    %c0_211 = arith.constant 0 : index
    %441 = vector.load %arg22[%c0_210, %c0_211] : memref<32x9xf32, #tpu.memory_space<vmem>>, vector<32x9xf32>
    %cst_212 = arith.constant 0.000000e+00 : f32
    %442 = vector.broadcast %cst_212 : f32 to vector<32x256xf32>
    %c0_213 = arith.constant 0 : index
    %c111 = arith.constant 111 : index
    %443 = vector.load %arg27[%c0_213, %c111] : memref<1x512xf32, #tpu.memory_space<vmem>>, vector<1x256xf32>
    %444 = arith.mulf %443, %433 : vector<1x256xf32>
    %445 = vector.extract_strided_slice %441 {offsets = [0, 0], sizes = [32, 1], strides = [1, 1]} : vector<32x9xf32> to vector<32x1xf32>
    %446 = vector.broadcast %445 : vector<32x1xf32> to vector<32x256xf32>
    %447 = vector.broadcast %444 : vector<1x256xf32> to vector<32x256xf32>
    %448 = arith.mulf %446, %447 : vector<32x256xf32>
    %449 = arith.addf %442, %448 : vector<32x256xf32>
    %c0_214 = arith.constant 0 : index
    %c112 = arith.constant 112 : index
    %450 = vector.load %arg27[%c0_214, %c112] : memref<1x512xf32, #tpu.memory_space<vmem>>, vector<1x256xf32>
    %451 = vector.extract_strided_slice %441 {offsets = [0, 1], sizes = [32, 1], strides = [1, 1]} : vector<32x9xf32> to vector<32x1xf32>
    %452 = vector.broadcast %451 : vector<32x1xf32> to vector<32x256xf32>
    %453 = vector.broadcast %450 : vector<1x256xf32> to vector<32x256xf32>
    %454 = arith.mulf %452, %453 : vector<32x256xf32>
    %455 = arith.addf %449, %454 : vector<32x256xf32>
    %c0_215 = arith.constant 0 : index
    %c113 = arith.constant 113 : index
    %456 = vector.load %arg27[%c0_215, %c113] : memref<1x512xf32, #tpu.memory_space<vmem>>, vector<1x256xf32>
    %457 = arith.mulf %456, %437 : vector<1x256xf32>
    %458 = vector.extract_strided_slice %441 {offsets = [0, 2], sizes = [32, 1], strides = [1, 1]} : vector<32x9xf32> to vector<32x1xf32>
    %459 = vector.broadcast %458 : vector<32x1xf32> to vector<32x256xf32>
    %460 = vector.broadcast %457 : vector<1x256xf32> to vector<32x256xf32>
    %461 = arith.mulf %459, %460 : vector<32x256xf32>
    %462 = arith.addf %455, %461 : vector<32x256xf32>
    %c0_216 = arith.constant 0 : index
    %c127 = arith.constant 127 : index
    %463 = vector.load %arg27[%c0_216, %c127] : memref<1x512xf32, #tpu.memory_space<vmem>>, vector<1x256xf32>
    %464 = arith.mulf %463, %433 : vector<1x256xf32>
    %465 = vector.extract_strided_slice %441 {offsets = [0, 3], sizes = [32, 1], strides = [1, 1]} : vector<32x9xf32> to vector<32x1xf32>
    %466 = vector.broadcast %465 : vector<32x1xf32> to vector<32x256xf32>
    %467 = vector.broadcast %464 : vector<1x256xf32> to vector<32x256xf32>
    %468 = arith.mulf %466, %467 : vector<32x256xf32>
    %469 = arith.addf %462, %468 : vector<32x256xf32>
    %c0_217 = arith.constant 0 : index
    %c128_218 = arith.constant 128 : index
    %470 = vector.load %arg27[%c0_217, %c128_218] : memref<1x512xf32, #tpu.memory_space<vmem>>, vector<1x256xf32>
    %471 = vector.extract_strided_slice %441 {offsets = [0, 4], sizes = [32, 1], strides = [1, 1]} : vector<32x9xf32> to vector<32x1xf32>
    %472 = vector.broadcast %471 : vector<32x1xf32> to vector<32x256xf32>
    %473 = vector.broadcast %470 : vector<1x256xf32> to vector<32x256xf32>
    %474 = arith.mulf %472, %473 : vector<32x256xf32>
    %475 = arith.addf %469, %474 : vector<32x256xf32>
    %c0_219 = arith.constant 0 : index
    %c129 = arith.constant 129 : index
    %476 = vector.load %arg27[%c0_219, %c129] : memref<1x512xf32, #tpu.memory_space<vmem>>, vector<1x256xf32>
    %477 = arith.mulf %476, %437 : vector<1x256xf32>
    %478 = vector.extract_strided_slice %441 {offsets = [0, 5], sizes = [32, 1], strides = [1, 1]} : vector<32x9xf32> to vector<32x1xf32>
    %479 = vector.broadcast %478 : vector<32x1xf32> to vector<32x256xf32>
    %480 = vector.broadcast %477 : vector<1x256xf32> to vector<32x256xf32>
    %481 = arith.mulf %479, %480 : vector<32x256xf32>
    %482 = arith.addf %475, %481 : vector<32x256xf32>
    %c0_220 = arith.constant 0 : index
    %c143 = arith.constant 143 : index
    %483 = vector.load %arg27[%c0_220, %c143] : memref<1x512xf32, #tpu.memory_space<vmem>>, vector<1x256xf32>
    %484 = arith.mulf %483, %433 : vector<1x256xf32>
    %485 = vector.extract_strided_slice %441 {offsets = [0, 6], sizes = [32, 1], strides = [1, 1]} : vector<32x9xf32> to vector<32x1xf32>
    %486 = vector.broadcast %485 : vector<32x1xf32> to vector<32x256xf32>
    %487 = vector.broadcast %484 : vector<1x256xf32> to vector<32x256xf32>
    %488 = arith.mulf %486, %487 : vector<32x256xf32>
    %489 = arith.addf %482, %488 : vector<32x256xf32>
    %c0_221 = arith.constant 0 : index
    %c144 = arith.constant 144 : index
    %490 = vector.load %arg27[%c0_221, %c144] : memref<1x512xf32, #tpu.memory_space<vmem>>, vector<1x256xf32>
    %491 = vector.extract_strided_slice %441 {offsets = [0, 7], sizes = [32, 1], strides = [1, 1]} : vector<32x9xf32> to vector<32x1xf32>
    %492 = vector.broadcast %491 : vector<32x1xf32> to vector<32x256xf32>
    %493 = vector.broadcast %490 : vector<1x256xf32> to vector<32x256xf32>
    %494 = arith.mulf %492, %493 : vector<32x256xf32>
    %495 = arith.addf %489, %494 : vector<32x256xf32>
    %c0_222 = arith.constant 0 : index
    %c145 = arith.constant 145 : index
    %496 = vector.load %arg27[%c0_222, %c145] : memref<1x512xf32, #tpu.memory_space<vmem>>, vector<1x256xf32>
    %497 = arith.mulf %496, %437 : vector<1x256xf32>
    %498 = vector.extract_strided_slice %441 {offsets = [0, 8], sizes = [32, 1], strides = [1, 1]} : vector<32x9xf32> to vector<32x1xf32>
    %499 = vector.broadcast %498 : vector<32x1xf32> to vector<32x256xf32>
    %500 = vector.broadcast %497 : vector<1x256xf32> to vector<32x256xf32>
    %501 = arith.mulf %499, %500 : vector<32x256xf32>
    %502 = arith.addf %495, %501 : vector<32x256xf32>
    %c0_223 = arith.constant 0 : index
    %c0_224 = arith.constant 0 : index
    %503 = vector.load %arg23[%c0_223, %c0_224] : memref<32x1xf32, #tpu.memory_space<vmem>>, vector<32x1xf32>
    %504 = vector.broadcast %503 : vector<32x1xf32> to vector<32x256xf32>
    %505 = arith.addf %502, %504 : vector<32x256xf32>
    %cst_225 = arith.constant 0.000000e+00 : f32
    %506 = vector.broadcast %cst_225 : f32 to vector<32x256xf32>
    %507 = arith.maximumf %505, %506 : vector<32x256xf32>
    %cst_226 = arith.constant 0.000000e+00 : f32
    %508 = vector.broadcast %cst_226 : f32 to vector<32x512xf32>
    %c0_227 = arith.constant 0 : index
    %c0_228 = arith.constant 0 : index
    %509 = vector.load %arg28[%c0_227, %c0_228] : memref<32x512xf32, #tpu.memory_space<vmem>>, vector<32x512xf32>
    tpu.vector_store %arg28[%c0_227, %c0_228], %508 {strides = array<i32>} : memref<32x512xf32, #tpu.memory_space<vmem>>, vector<32x512xf32>,
    %c0_229 = arith.constant 0 : index
    %c128_230 = arith.constant 128 : index
    %510 = vector.load %arg28[%c0_229, %c128_230] : memref<32x512xf32, #tpu.memory_space<vmem>>, vector<32x256xf32>
    tpu.vector_store %arg28[%c0_229, %c128_230], %507 {strides = array<i32>} : memref<32x512xf32, #tpu.memory_space<vmem>>, vector<32x256xf32>,
    %c0_231 = arith.constant 0 : index
    %c111_232 = arith.constant 111 : index
    %511 = vector.load %arg28[%c0_231, %c111_232] : memref<32x512xf32, #tpu.memory_space<vmem>>, vector<32x256xf32>
    %512 = vector.broadcast %433 : vector<1x256xf32> to vector<32x256xf32>
    %513 = arith.mulf %511, %512 : vector<32x256xf32>
    %c0_233 = arith.constant 0 : index
    %c0_234 = arith.constant 0 : index
    %514 = vector.load %arg29[%c0_233, %c0_234] : memref<288x256xf32, #tpu.memory_space<vmem>>, vector<32x256xf32>
    tpu.vector_store %arg29[%c0_233, %c0_234], %513 {strides = array<i32>} : memref<288x256xf32, #tpu.memory_space<vmem>>, vector<32x256xf32>,
    %c0_235 = arith.constant 0 : index
    %c112_236 = arith.constant 112 : index
    %515 = vector.load %arg28[%c0_235, %c112_236] : memref<32x512xf32, #tpu.memory_space<vmem>>, vector<32x256xf32>
    %c32_237 = arith.constant 32 : index
    %c0_238 = arith.constant 0 : index
    %516 = vector.load %arg29[%c32_237, %c0_238] : memref<288x256xf32, #tpu.memory_space<vmem>>, vector<32x256xf32>
    tpu.vector_store %arg29[%c32_237, %c0_238], %515 {strides = array<i32>} : memref<288x256xf32, #tpu.memory_space<vmem>>, vector<32x256xf32>,
    %c0_239 = arith.constant 0 : index
    %c113_240 = arith.constant 113 : index
    %517 = vector.load %arg28[%c0_239, %c113_240] : memref<32x512xf32, #tpu.memory_space<vmem>>, vector<32x256xf32>
    %518 = vector.broadcast %437 : vector<1x256xf32> to vector<32x256xf32>
    %519 = arith.mulf %517, %518 : vector<32x256xf32>
    %c64 = arith.constant 64 : index
    %c0_241 = arith.constant 0 : index
    %520 = vector.load %arg29[%c64, %c0_241] : memref<288x256xf32, #tpu.memory_space<vmem>>, vector<32x256xf32>
    tpu.vector_store %arg29[%c64, %c0_241], %519 {strides = array<i32>} : memref<288x256xf32, #tpu.memory_space<vmem>>, vector<32x256xf32>,
    %c0_242 = arith.constant 0 : index
    %c127_243 = arith.constant 127 : index
    %521 = vector.load %arg28[%c0_242, %c127_243] : memref<32x512xf32, #tpu.memory_space<vmem>>, vector<32x256xf32>
    %522 = vector.broadcast %433 : vector<1x256xf32> to vector<32x256xf32>
    %523 = arith.mulf %521, %522 : vector<32x256xf32>
    %c96 = arith.constant 96 : index
    %c0_244 = arith.constant 0 : index
    %524 = vector.load %arg29[%c96, %c0_244] : memref<288x256xf32, #tpu.memory_space<vmem>>, vector<32x256xf32>
    tpu.vector_store %arg29[%c96, %c0_244], %523 {strides = array<i32>} : memref<288x256xf32, #tpu.memory_space<vmem>>, vector<32x256xf32>,
    %c0_245 = arith.constant 0 : index
    %c128_246 = arith.constant 128 : index
    %525 = vector.load %arg28[%c0_245, %c128_246] : memref<32x512xf32, #tpu.memory_space<vmem>>, vector<32x256xf32>
    %c128_247 = arith.constant 128 : index
    %c0_248 = arith.constant 0 : index
    %526 = vector.load %arg29[%c128_247, %c0_248] : memref<288x256xf32, #tpu.memory_space<vmem>>, vector<32x256xf32>
    tpu.vector_store %arg29[%c128_247, %c0_248], %525 {strides = array<i32>} : memref<288x256xf32, #tpu.memory_space<vmem>>, vector<32x256xf32>,
    %c0_249 = arith.constant 0 : index
    %c129_250 = arith.constant 129 : index
    %527 = vector.load %arg28[%c0_249, %c129_250] : memref<32x512xf32, #tpu.memory_space<vmem>>, vector<32x256xf32>
    %528 = vector.broadcast %437 : vector<1x256xf32> to vector<32x256xf32>
    %529 = arith.mulf %527, %528 : vector<32x256xf32>
    %c160 = arith.constant 160 : index
    %c0_251 = arith.constant 0 : index
    %530 = vector.load %arg29[%c160, %c0_251] : memref<288x256xf32, #tpu.memory_space<vmem>>, vector<32x256xf32>
    tpu.vector_store %arg29[%c160, %c0_251], %529 {strides = array<i32>} : memref<288x256xf32, #tpu.memory_space<vmem>>, vector<32x256xf32>,
    %c0_252 = arith.constant 0 : index
    %c143_253 = arith.constant 143 : index
    %531 = vector.load %arg28[%c0_252, %c143_253] : memref<32x512xf32, #tpu.memory_space<vmem>>, vector<32x256xf32>
    %532 = vector.broadcast %433 : vector<1x256xf32> to vector<32x256xf32>
    %533 = arith.mulf %531, %532 : vector<32x256xf32>
    %c192 = arith.constant 192 : index
    %c0_254 = arith.constant 0 : index
    %534 = vector.load %arg29[%c192, %c0_254] : memref<288x256xf32, #tpu.memory_space<vmem>>, vector<32x256xf32>
    tpu.vector_store %arg29[%c192, %c0_254], %533 {strides = array<i32>} : memref<288x256xf32, #tpu.memory_space<vmem>>, vector<32x256xf32>,
    %c0_255 = arith.constant 0 : index
    %c144_256 = arith.constant 144 : index
    %535 = vector.load %arg28[%c0_255, %c144_256] : memref<32x512xf32, #tpu.memory_space<vmem>>, vector<32x256xf32>
    %c224 = arith.constant 224 : index
    %c0_257 = arith.constant 0 : index
    %536 = vector.load %arg29[%c224, %c0_257] : memref<288x256xf32, #tpu.memory_space<vmem>>, vector<32x256xf32>
    tpu.vector_store %arg29[%c224, %c0_257], %535 {strides = array<i32>} : memref<288x256xf32, #tpu.memory_space<vmem>>, vector<32x256xf32>,
    %c0_258 = arith.constant 0 : index
    %c145_259 = arith.constant 145 : index
    %537 = vector.load %arg28[%c0_258, %c145_259] : memref<32x512xf32, #tpu.memory_space<vmem>>, vector<32x256xf32>
    %538 = vector.broadcast %437 : vector<1x256xf32> to vector<32x256xf32>
    %539 = arith.mulf %537, %538 : vector<32x256xf32>
    %c256 = arith.constant 256 : index
    %c0_260 = arith.constant 0 : index
    %540 = vector.load %arg29[%c256, %c0_260] : memref<288x256xf32, #tpu.memory_space<vmem>>, vector<32x256xf32>
    tpu.vector_store %arg29[%c256, %c0_260], %539 {strides = array<i32>} : memref<288x256xf32, #tpu.memory_space<vmem>>, vector<32x256xf32>,
    %c0_261 = arith.constant 0 : index
    %c0_262 = arith.constant 0 : index
    %541 = vector.load %arg24[%c0_261, %c0_262] : memref<64x288xf32, #tpu.memory_space<vmem>>, vector<64x288xf32>
    %c0_263 = arith.constant 0 : index
    %c0_264 = arith.constant 0 : index
    %542 = vector.load %arg29[%c0_263, %c0_264] : memref<288x256xf32, #tpu.memory_space<vmem>>, vector<288x256xf32>
    %cst_265 = arith.constant dense<0.000000e+00> : vector<64x256xf32>
    %543 = tpu.matmul %541, %542, %cst_265 {dimension_numbers = #tpu.dot_dimension_numbers<[1], [0], [0], [1], [0, 0, 1, 1], [], []>} : vector<64x288xf32>, vector<288x256xf32>, vector<64x256xf32> -> vector<64x256xf32>
    %c0_266 = arith.constant 0 : index
    %c0_267 = arith.constant 0 : index
    %544 = vector.load %arg25[%c0_266, %c0_267] : memref<64x1xf32, #tpu.memory_space<vmem>>, vector<64x1xf32>
    %545 = vector.broadcast %544 : vector<64x1xf32> to vector<64x256xf32>
    %546 = arith.addf %543, %545 : vector<64x256xf32>
    %cst_268 = arith.constant 0.000000e+00 : f32
    %547 = vector.broadcast %cst_268 : f32 to vector<64x256xf32>
    %548 = arith.maximumf %546, %547 : vector<64x256xf32>
    %c0_269 = arith.constant 0 : index
    %c0_270 = arith.constant 0 : index
    %549 = vector.load %arg26[%c0_269, %c0_270] : memref<64x256xf32, #tpu.memory_space<vmem>>, vector<64x256xf32>
    tpu.vector_store %arg26[%c0_269, %c0_270], %548 {strides = array<i32>} : memref<64x256xf32, #tpu.memory_space<vmem>>, vector<64x256xf32>,
    return
  }
}

</mosaic_0001>

<llo_original>
// kernel: dwt_block_forward.1
$region0: #{dwt_block_forward.1}
  #allocation0 [shape = 'u32[]', space=smem, size = 0x4, offset = 0x4, fixed_abs, tag = 'smem constant byte address 0x4 - core index']
  #allocation1 [shape = 'u32[144,128]{1,0:T(1,128)}', space=vmem, size = 0x12000, scoped, tag = 'internal scratch']
  #allocation2 [shape = 'f32[1,512]{1,0:T(1,128)}', space=vmem, size = 0x800, scoped, tag = 'scratch operand']
  #allocation3 [shape = 'f32[32,512]{1,0:T(8,128)}', space=vmem, size = 0x10000, scoped, tag = 'scratch operand']
  #allocation4 [shape = 'f32[288,256]{1,0:T(8,128)}', space=vmem, size = 0x48000, scoped, tag = 'scratch operand']
  #allocation5 [shape = 'f32[1,1]{1,0:T(1,128)S(1)}', space=vmem, size = 0x200, scoped, tag = 'scoped memory for dwt_block_forward.1']
  #allocation6 [shape = 'f32[1,1]{1,0:T(1,128)S(6)}', space=smem, size = 0x200, scoped, tag = 'scoped memory for dwt_block_forward.1']
  %s0 = inlined_call_operand.vmem [shape: f32[64,256], index: 0, kind: input, shape index: {}]
  %s1 = inlined_call_operand.hbm [shape: f32[16,64], index: 1, kind: input, shape index: {}]
  %s2 = inlined_call_operand.vmem [shape: f32[16,1], index: 2, kind: input, shape index: {}]
  %s3 = inlined_call_operand.hbm [shape: f32[8,16], index: 3, kind: input, shape index: {}]
  %s4 = inlined_call_operand.vmem [shape: f32[8,1], index: 4, kind: input, shape index: {}]
  %s5 = inlined_call_operand.hbm [shape: f32[1,8], index: 5, kind: input, shape index: {}]
  %s6 = inlined_call_operand.<no memory space> [shape: f32[1,1], index: 6, kind: input, shape index: {}]
  %s7 = inlined_call_operand.hbm [shape: f32[16,256], index: 7, kind: input, shape index: {}]
  %s8 = inlined_call_operand.vmem [shape: f32[256,16], index: 8, kind: input, shape index: {}]
  %s9 = inlined_call_operand.hbm [shape: f32[16,16], index: 9, kind: input, shape index: {}]
  %s10 = inlined_call_operand.hbm [shape: f32[16,16], index: 10, kind: input, shape index: {}]
  %s11 = inlined_call_operand.hbm [shape: f32[2,20,8], index: 11, kind: input, shape index: {}]
  %s12 = inlined_call_operand.hbm [shape: f32[2,8,20], index: 12, kind: input, shape index: {}]
  %s13 = inlined_call_operand.vmem [shape: f32[4,20,20], index: 13, kind: input, shape index: {}]
  %s14 = inlined_call_operand.vmem [shape: f32[2,20,20], index: 14, kind: input, shape index: {}]
  %s15 = inlined_call_operand.hbm [shape: f32[16,15], index: 15, kind: input, shape index: {}]
  %s16 = inlined_call_operand.hbm [shape: f32[15,256], index: 16, kind: input, shape index: {}]
  %s17 = inlined_call_operand.hbm [shape: f32[3,4], index: 17, kind: input, shape index: {}]
  %s18 = inlined_call_operand.hbm [shape: f32[1,4], index: 18, kind: input, shape index: {}]
  %s19 = inlined_call_operand.hbm [shape: f32[1,4], index: 19, kind: input, shape index: {}]
  %s20 = inlined_call_operand.hbm [shape: f32[2,36], index: 20, kind: input, shape index: {}]
  %s21 = inlined_call_operand.<no memory space> [shape: f32[1,1], index: 21, kind: input, shape index: {}]
  %s22 = inlined_call_operand.vmem [shape: f32[32,9], index: 22, kind: input, shape index: {}]
  %s23 = inlined_call_operand.vmem [shape: f32[32,1], index: 23, kind: input, shape index: {}]
  %s24 = inlined_call_operand.vmem [shape: f32[64,288], index: 24, kind: input, shape index: {}]
  %s25 = inlined_call_operand.vmem [shape: f32[64,1], index: 25, kind: input, shape index: {}]
  %s26 = inlined_call_operand.vmem [shape: f32[64,256], index: 26, kind: output, shape index: {}]
  %s27 = sld [smem:[#allocation0]]
  $region170: #{dwt_block_forward.1} parent=0
    _
  %s29 = ssub.s32 1, %s27
  %s30 = scalar_select 0, %s29, %s27
  %v31 = vstv %s6
  %32 = vst [vmem:[#allocation5] sm:$0x1] %v31
  %33 = sst [smem:[#allocation6]] %s21
  $region1: #{dwt_block_forward.1} parent=0
    #allocation7 [shape = 'u8[8192]{0}', space=vmem, size = 0x2000, scoped, tag = 'input window, operand 1, single buffered']
    #allocation8 [shape = 's32[1]{0}', space=sflag, size = 0x4, scoped, tag = 'scoped memory for dwt_block_forward.1']
    #allocation9 [shape = 's32[1]{0}', space=sflag, size = 0x4, scoped, tag = 'scoped memory for dwt_block_forward.1']
    #allocation10 [shape = 'u8[4096]{0}', space=vmem, size = 0x1000, scoped, tag = 'input window, operand 3, single buffered']
    #allocation11 [shape = 's32[1]{0}', space=sflag, size = 0x4, scoped, tag = 'scoped memory for dwt_block_forward.1']
    #allocation12 [shape = 'u8[512]{0}', space=vmem, size = 0x400, scoped, tag = 'input window, operand 5, single buffered']
    #allocation13 [shape = 'u8[16384]{0}', space=vmem, size = 0x4000, scoped, tag = 'input window, operand 7, single buffered']
    #allocation14 [shape = 's32[1]{0}', space=sflag, size = 0x4, scoped, tag = 'scoped memory for dwt_block_forward.1']
    #allocation15 [shape = 'u8[8192]{0}', space=vmem, size = 0x2000, scoped, tag = 'input window, operand 9, single buffered']
    #allocation16 [shape = 'u8[8192]{0}', space=vmem, size = 0x2000, scoped, tag = 'input window, operand 10, single buffered']
    #allocation17 [shape = 's32[1]{0}', space=sflag, size = 0x4, scoped, tag = 'scoped memory for dwt_block_forward.1']
    #allocation18 [shape = 'u8[24576]{0}', space=vmem, size = 0x6000, scoped, tag = 'input window, operand 11, single buffered']
    #allocation19 [shape = 'u8[8192]{0}', space=vmem, size = 0x2000, scoped, tag = 'input window, operand 12, single buffered']
    #allocation20 [shape = 's32[1]{0}', space=sflag, size = 0x4, scoped, tag = 'scoped memory for dwt_block_forward.1']
    #allocation21 [shape = 'u8[8192]{0}', space=vmem, size = 0x2000, scoped, tag = 'input window, operand 15, single buffered']
    #allocation22 [shape = 'u8[16384]{0}', space=vmem, size = 0x4000, scoped, tag = 'input window, operand 16, single buffered']
    #allocation23 [shape = 's32[1]{0}', space=sflag, size = 0x4, scoped, tag = 'scoped memory for dwt_block_forward.1']
    #allocation24 [shape = 'u8[2048]{0}', space=smem, size = 0x800, scoped, tag = 'input window, operand 17, single buffered']
    #allocation25 [shape = 'u8[512]{0}', space=smem, size = 0x200, scoped, tag = 'input window, operand 18, single buffered']
    #allocation26 [shape = 's32[1]{0}', space=sflag, size = 0x4, scoped, tag = 'scoped memory for dwt_block_forward.1']
    #allocation27 [shape = 'u8[512]{0}', space=smem, size = 0x200, scoped, tag = 'input window, operand 19, single buffered']
    #allocation28 [shape = 'u8[1024]{0}', space=smem, size = 0x400, scoped, tag = 'input window, operand 20, single buffered']
    #allocation29 [shape = 's32[1]{0}', space=sflag, size = 0x4, scoped, tag = 'scoped memory for dwt_block_forward.1']
    %34 = vsyncpa [#allocation8], 0
    %35 = vsyncpa [#allocation11], 0
    %36 = vsyncpa [#allocation14], 0
    %37 = vsyncpa [#allocation17], 0
    %38 = vsyncpa [#allocation20], 0
    %39 = vsyncpa [#allocation23], 0
    %40 = vsyncpa [#allocation9], 0
    %41 = vsyncpa [#allocation26], 0
    %42 = vsyncpa [#allocation29], 0
    // Predicated region
    $region2: #{dwt_block_forward.1} parent=1 // pred_check
      _
    $region3: #{dwt_block_forward.1} parent=1 // pred_check_branch
      %44 = sbr.rel (0) target = $region5
    $region4: #{dwt_block_forward.1} parent=1 // pred_region
      _
    $region5: #{dwt_block_forward.1} parent=1 // pred_fallthru
      _
    // Predicated region
    $region6: #{dwt_block_forward.1} parent=1 // pred_check
      _
    $region7: #{dwt_block_forward.1} parent=1 // pred_check_branch
      %46 = sbr.rel (0) target = $region9
    $region8: #{dwt_block_forward.1} parent=1 // pred_region
      %s48 = ssub.s32 256, 256
      %49 = vsyncadd [#allocation8], %s48
      %s50 = sshll.u32 [#allocation7], 4
      %s51 = int_to_ptr.vmem [resolvable:$true] %s50
      %56 = dma.hbm_to_vmem [thread:$0]  %s1, 256, %s51, [#allocation8], 128, 128, 8
    $region9: #{dwt_block_forward.1} parent=1 // pred_fallthru
      _
    // Predicated region
    $region10: #{dwt_block_forward.1} parent=1 // pred_check
      _
    $region11: #{dwt_block_forward.1} parent=1 // pred_check_branch
      %58 = sbr.rel (0) target = $region13
    $region12: #{dwt_block_forward.1} parent=1 // pred_region
      _
    $region13: #{dwt_block_forward.1} parent=1 // pred_fallthru
      _
    // Predicated region
    $region14: #{dwt_block_forward.1} parent=1 // pred_check
      _
    $region15: #{dwt_block_forward.1} parent=1 // pred_check_branch
      %60 = sbr.rel (0) target = $region17
    $region16: #{dwt_block_forward.1} parent=1 // pred_region
      %s62 = ssub.s32 128, 128
      %63 = vsyncadd [#allocation11], %s62
      %s65 = sshll.u32 [#allocation10], 4
      %s66 = int_to_ptr.vmem [resolvable:$true] %s65
      %68 = dma.hbm_to_vmem [thread:$0]  %s3, 128, %s66, [#allocation11]
    $region17: #{dwt_block_forward.1} parent=1 // pred_fallthru
      _
    // Predicated region
    $region18: #{dwt_block_forward.1} parent=1 // pred_check
      _
    $region19: #{dwt_block_forward.1} parent=1 // pred_check_branch
      %70 = sbr.rel (0) target = $region21
    $region20: #{dwt_block_forward.1} parent=1 // pred_region
      _
    $region21: #{dwt_block_forward.1} parent=1 // pred_fallthru
      _
    // Predicated region
    $region22: #{dwt_block_forward.1} parent=1 // pred_check
      _
    $region23: #{dwt_block_forward.1} parent=1 // pred_check_branch
      %72 = sbr.rel (0) target = $region25
    $region24: #{dwt_block_forward.1} parent=1 // pred_region
      %s74 = ssub.s32 16, 16
      %75 = vsyncadd [#allocation11], %s74
      %s77 = sshll.u32 [#allocation12], 4
      %s78 = int_to_ptr.vmem [resolvable:$true] %s77
      %80 = dma.hbm_to_vmem [thread:$0]  %s5, 16, %s78, [#allocation11]
    $region25: #{dwt_block_forward.1} parent=1 // pred_fallthru
      _
    // Predicated region
    $region26: #{dwt_block_forward.1} parent=1 // pred_check
      _
    $region27: #{dwt_block_forward.1} parent=1 // pred_check_branch
      %82 = sbr.rel (0) target = $region29
    $region28: #{dwt_block_forward.1} parent=1 // pred_region
      _
    $region29: #{dwt_block_forward.1} parent=1 // pred_fallthru
      _
    // Predicated region
    $region30: #{dwt_block_forward.1} parent=1 // pred_check
      _
    $region31: #{dwt_block_forward.1} parent=1 // pred_check_branch
      %84 = sbr.rel (0) target = $region33
    $region32: #{dwt_block_forward.1} parent=1 // pred_region
      %s86 = ssub.s32 512, 512
      %87 = vsyncadd [#allocation14], %s86
      %s88 = sshll.u32 [#allocation13], 4
      %s89 = int_to_ptr.vmem [resolvable:$true] %s88
      %94 = dma.hbm_to_vmem [thread:$0]  %s7, 512, %s89, [#allocation14], 256, 256, 16
    $region33: #{dwt_block_forward.1} parent=1 // pred_fallthru
      _
    // Predicated region
    $region34: #{dwt_block_forward.1} parent=1 // pred_check
      _
    $region35: #{dwt_block_forward.1} parent=1 // pred_check_branch
      %96 = sbr.rel (0) target = $region37
    $region36: #{dwt_block_forward.1} parent=1 // pred_region
      _
    $region37: #{dwt_block_forward.1} parent=1 // pred_fallthru
      _
    // Predicated region
    $region38: #{dwt_block_forward.1} parent=1 // pred_check
      _
    $region39: #{dwt_block_forward.1} parent=1 // pred_check_branch
      %98 = sbr.rel (0) target = $region41
    $region40: #{dwt_block_forward.1} parent=1 // pred_region
      %s100 = ssub.s32 256, 256
      %101 = vsyncadd [#allocation14], %s100
      %s102 = sshll.u32 [#allocation15], 4
      %s103 = int_to_ptr.vmem [resolvable:$true] %s102
      %108 = dma.hbm_to_vmem [thread:$0]  %s9, 256, %s103, [#allocation14], 128, 128, 8
    $region41: #{dwt_block_forward.1} parent=1 // pred_fallthru
      _
    // Predicated region
    $region42: #{dwt_block_forward.1} parent=1 // pred_check
      _
    $region43: #{dwt_block_forward.1} parent=1 // pred_check_branch
      %110 = sbr.rel (0) target = $region45
    $region44: #{dwt_block_forward.1} parent=1 // pred_region
      %s112 = ssub.s32 256, 256
      %113 = vsyncadd [#allocation17], %s112
      %s114 = sshll.u32 [#allocation16], 4
      %s115 = int_to_ptr.vmem [resolvable:$true] %s114
      %120 = dma.hbm_to_vmem [thread:$0]  %s10, 256, %s115, [#allocation17], 128, 128, 8
    $region45: #{dwt_block_forward.1} parent=1 // pred_fallthru
      _
    // Predicated region
    $region46: #{dwt_block_forward.1} parent=1 // pred_check
      _
    $region47: #{dwt_block_forward.1} parent=1 // pred_check_branch
      %122 = sbr.rel (0) target = $region49
    $region48: #{dwt_block_forward.1} parent=1 // pred_region
      %s124 = ssub.s32 768, 768
      %125 = vsyncadd [#allocation17], %s124
      %s126 = sshll.u32 [#allocation18], 4
      %s127 = int_to_ptr.vmem [resolvable:$true] %s126
      %132 = dma.hbm_to_vmem [thread:$0]  %s11, 768, %s127, [#allocation17], 128, 128, 8
    $region49: #{dwt_block_forward.1} parent=1 // pred_fallthru
      _
    // Predicated region
    $region50: #{dwt_block_forward.1} parent=1 // pred_check
      _
    $region51: #{dwt_block_forward.1} parent=1 // pred_check_branch
      %134 = sbr.rel (0) target = $region53
    $region52: #{dwt_block_forward.1} parent=1 // pred_region
      %s136 = ssub.s32 256, 256
      %137 = vsyncadd [#allocation20], %s136
      %s138 = sshll.u32 [#allocation19], 4
      %s139 = int_to_ptr.vmem [resolvable:$true] %s138
      %144 = dma.hbm_to_vmem [thread:$0]  %s12, 256, %s139, [#allocation20], 128, 128, 8
    $region53: #{dwt_block_forward.1} parent=1 // pred_fallthru
      _
    // Predicated region
    $region54: #{dwt_block_forward.1} parent=1 // pred_check
      _
    $region55: #{dwt_block_forward.1} parent=1 // pred_check_branch
      %146 = sbr.rel (0) target = $region57
    $region56: #{dwt_block_forward.1} parent=1 // pred_region
      _
    $region57: #{dwt_block_forward.1} parent=1 // pred_fallthru
      _
    // Predicated region
    $region58: #{dwt_block_forward.1} parent=1 // pred_check
      _
    $region59: #{dwt_block_forward.1} parent=1 // pred_check_branch
      %148 = sbr.rel (0) target = $region61
    $region60: #{dwt_block_forward.1} parent=1 // pred_region
      _
    $region61: #{dwt_block_forward.1} parent=1 // pred_fallthru
      _
    // Predicated region
    $region62: #{dwt_block_forward.1} parent=1 // pred_check
      _
    $region63: #{dwt_block_forward.1} parent=1 // pred_check_branch
      %150 = sbr.rel (0) target = $region65
    $region64: #{dwt_block_forward.1} parent=1 // pred_region
      %s152 = ssub.s32 256, 256
      %153 = vsyncadd [#allocation20], %s152
      %s154 = sshll.u32 [#allocation21], 4
      %s155 = int_to_ptr.vmem [resolvable:$true] %s154
      %160 = dma.hbm_to_vmem [thread:$0]  %s15, 256, %s155, [#allocation20], 128, 128, 8
    $region65: #{dwt_block_forward.1} parent=1 // pred_fallthru
      _
    // Predicated region
    $region66: #{dwt_block_forward.1} parent=1 // pred_check
      _
    $region67: #{dwt_block_forward.1} parent=1 // pred_check_branch
      %162 = sbr.rel (0) target = $region69
    $region68: #{dwt_block_forward.1} parent=1 // pred_region
      %s164 = ssub.s32 512, 512
      %165 = vsyncadd [#allocation23], %s164
      %s166 = sshll.u32 [#allocation22], 4
      %s167 = int_to_ptr.vmem [resolvable:$true] %s166
      %172 = dma.hbm_to_vmem [thread:$0]  %s16, 512, %s167, [#allocation23], 256, 256, 16
    $region69: #{dwt_block_forward.1} parent=1 // pred_fallthru
      _
    // Predicated region
    $region70: #{dwt_block_forward.1} parent=1 // pred_check
      _
    $region71: #{dwt_block_forward.1} parent=1 // pred_check_branch
      %174 = sbr.rel (0) target = $region73
    $region72: #{dwt_block_forward.1} parent=1 // pred_region
      %s176 = ssub.s32 64, 64
      %177 = vsyncadd [#allocation9], %s176
      %180 = dma.hbm_to_smem %s17, 64, [#allocation24], [#allocation9]
    $region73: #{dwt_block_forward.1} parent=1 // pred_fallthru
      _
    // Predicated region
    $region74: #{dwt_block_forward.1} parent=1 // pred_check
      _
    $region75: #{dwt_block_forward.1} parent=1 // pred_check_branch
      %182 = sbr.rel (0) target = $region77
    $region76: #{dwt_block_forward.1} parent=1 // pred_region
      %s184 = ssub.s32 16, 16
      %185 = vsyncadd [#allocation26], %s184
      %188 = dma.hbm_to_smem %s18, 16, [#allocation25], [#allocation26]
    $region77: #{dwt_block_forward.1} parent=1 // pred_fallthru
      _
    // Predicated region
    $region78: #{dwt_block_forward.1} parent=1 // pred_check
      _
    $region79: #{dwt_block_forward.1} parent=1 // pred_check_branch
      %190 = sbr.rel (0) target = $region81
    $region80: #{dwt_block_forward.1} parent=1 // pred_region
      %s192 = ssub.s32 16, 16
      %193 = vsyncadd [#allocation26], %s192
      %196 = dma.hbm_to_smem %s19, 16, [#allocation27], [#allocation26]
    $region81: #{dwt_block_forward.1} parent=1 // pred_fallthru
      _
    // Predicated region
    $region82: #{dwt_block_forward.1} parent=1 // pred_check
      _
    $region83: #{dwt_block_forward.1} parent=1 // pred_check_branch
      %198 = sbr.rel (0) target = $region85
    $region84: #{dwt_block_forward.1} parent=1 // pred_region
      %s200 = ssub.s32 32, 32
      %201 = vsyncadd [#allocation29], %s200
      %204 = dma.hbm_to_smem %s20, 32, [#allocation28], [#allocation29]
    $region85: #{dwt_block_forward.1} parent=1 // pred_fallthru
      _
    // Predicated region
    $region86: #{dwt_block_forward.1} parent=1 // pred_check
      _
    $region87: #{dwt_block_forward.1} parent=1 // pred_check_branch
      %206 = sbr.rel (0) target = $region89
    $region88: #{dwt_block_forward.1} parent=1 // pred_region
      _
    $region89: #{dwt_block_forward.1} parent=1 // pred_fallthru
      _
    // Predicated region
    $region90: #{dwt_block_forward.1} parent=1 // pred_check
      _
    $region91: #{dwt_block_forward.1} parent=1 // pred_check_branch
      %208 = sbr.rel (0) target = $region93
    $region92: #{dwt_block_forward.1} parent=1 // pred_region
      _
    $region93: #{dwt_block_forward.1} parent=1 // pred_fallthru
      _
    // Predicated region
    $region94: #{dwt_block_forward.1} parent=1 // pred_check
      _
    $region95: #{dwt_block_forward.1} parent=1 // pred_check_branch
      %210 = sbr.rel (0) target = $region97
    $region96: #{dwt_block_forward.1} parent=1 // pred_region
      _
    $region97: #{dwt_block_forward.1} parent=1 // pred_fallthru
      _
    // Predicated region
    $region98: #{dwt_block_forward.1} parent=1 // pred_check
      _
    $region99: #{dwt_block_forward.1} parent=1 // pred_check_branch
      %212 = sbr.rel (0) target = $region101
    $region100: #{dwt_block_forward.1} parent=1 // pred_region
      _
    $region101: #{dwt_block_forward.1} parent=1 // pred_fallthru
      _
    // Predicated region
    $region102: #{dwt_block_forward.1} parent=1 // pred_check
      _
    $region103: #{dwt_block_forward.1} parent=1 // pred_check_branch
      %214 = sbr.rel (0) target = $region105
    $region104: #{dwt_block_forward.1} parent=1 // pred_region
      _
    $region105: #{dwt_block_forward.1} parent=1 // pred_fallthru
      _
    // Predicated region
    $region106: #{dwt_block_forward.1} parent=1 // pred_check
      _
    $region107: #{dwt_block_forward.1} parent=1 // pred_check_branch
      %216 = sbr.rel (0) target = $region109
    $region108: #{dwt_block_forward.1} parent=1 // pred_region
      %217 = dma.done [#allocation8], 256
    $region109: #{dwt_block_forward.1} parent=1 // pred_fallthru
      _
    // Predicated region
    $region110: #{dwt_block_forward.1} parent=1 // pred_check
      _
    $region111: #{dwt_block_forward.1} parent=1 // pred_check_branch
      %219 = sbr.rel (0) target = $region113
    $region112: #{dwt_block_forward.1} parent=1 // pred_region
      %220 = dma.done [#allocation11], 128
    $region113: #{dwt_block_forward.1} parent=1 // pred_fallthru
      _
    // Predicated region
    $region114: #{dwt_block_forward.1} parent=1 // pred_check
      _
    $region115: #{dwt_block_forward.1} parent=1 // pred_check_branch
      %222 = sbr.rel (0) target = $region117
    $region116: #{dwt_block_forward.1} parent=1 // pred_region
      %223 = dma.done [#allocation11], 16
    $region117: #{dwt_block_forward.1} parent=1 // pred_fallthru
      _
    // Predicated region
    $region118: #{dwt_block_forward.1} parent=1 // pred_check
      _
    $region119: #{dwt_block_forward.1} parent=1 // pred_check_branch
      %225 = sbr.rel (0) target = $region121
    $region120: #{dwt_block_forward.1} parent=1 // pred_region
      %226 = dma.done [#allocation14], 512
    $region121: #{dwt_block_forward.1} parent=1 // pred_fallthru
      _
    // Predicated region
    $region122: #{dwt_block_forward.1} parent=1 // pred_check
      _
    $region123: #{dwt_block_forward.1} parent=1 // pred_check_branch
      %228 = sbr.rel (0) target = $region125
    $region124: #{dwt_block_forward.1} parent=1 // pred_region
      %229 = dma.done [#allocation14], 256
    $region125: #{dwt_block_forward.1} parent=1 // pred_fallthru
      _
    // Predicated region
    $region126: #{dwt_block_forward.1} parent=1 // pred_check
      _
    $region127: #{dwt_block_forward.1} parent=1 // pred_check_branch
      %231 = sbr.rel (0) target = $region129
    $region128: #{dwt_block_forward.1} parent=1 // pred_region
      %232 = dma.done [#allocation17], 256
    $region129: #{dwt_block_forward.1} parent=1 // pred_fallthru
      _
    // Predicated region
    $region130: #{dwt_block_forward.1} parent=1 // pred_check
      _
    $region131: #{dwt_block_forward.1} parent=1 // pred_check_branch
      %234 = sbr.rel (0) target = $region133
    $region132: #{dwt_block_forward.1} parent=1 // pred_region
      %235 = dma.done [#allocation17], 768
    $region133: #{dwt_block_forward.1} parent=1 // pred_fallthru
      _
    // Predicated region
    $region134: #{dwt_block_forward.1} parent=1 // pred_check
      _
    $region135: #{dwt_block_forward.1} parent=1 // pred_check_branch
      %237 = sbr.rel (0) target = $region137
    $region136: #{dwt_block_forward.1} parent=1 // pred_region
      %238 = dma.done [#allocation20], 256
    $region137: #{dwt_block_forward.1} parent=1 // pred_fallthru
      _
    // Predicated region
    $region138: #{dwt_block_forward.1} parent=1 // pred_check
      _
    $region139: #{dwt_block_forward.1} parent=1 // pred_check_branch
      %240 = sbr.rel (0) target = $region141
    $region140: #{dwt_block_forward.1} parent=1 // pred_region
      %241 = dma.done [#allocation20], 256
    $region141: #{dwt_block_forward.1} parent=1 // pred_fallthru
      _
    // Predicated region
    $region142: #{dwt_block_forward.1} parent=1 // pred_check
      _
    $region143: #{dwt_block_forward.1} parent=1 // pred_check_branch
      %243 = sbr.rel (0) target = $region145
    $region144: #{dwt_block_forward.1} parent=1 // pred_region
      %244 = dma.done [#allocation23], 512
    $region145: #{dwt_block_forward.1} parent=1 // pred_fallthru
      _
    // Predicated region
    $region146: #{dwt_block_forward.1} parent=1 // pred_check
      _
    $region147: #{dwt_block_forward.1} parent=1 // pred_check_branch
      %246 = sbr.rel (0) target = $region149
    $region148: #{dwt_block_forward.1} parent=1 // pred_region
      %247 = dma.done [#allocation9], 64
    $region149: #{dwt_block_forward.1} parent=1 // pred_fallthru
      _
    // Predicated region
    $region150: #{dwt_block_forward.1} parent=1 // pred_check
      _
    $region151: #{dwt_block_forward.1} parent=1 // pred_check_branch
      %249 = sbr.rel (0) target = $region153
    $region152: #{dwt_block_forward.1} parent=1 // pred_region
      %250 = dma.done [#allocation26], 16
    $region153: #{dwt_block_forward.1} parent=1 // pred_fallthru
      _
    // Predicated region
    $region154: #{dwt_block_forward.1} parent=1 // pred_check
      _
    $region155: #{dwt_block_forward.1} parent=1 // pred_check_branch
      %252 = sbr.rel (0) target = $region157
    $region156: #{dwt_block_forward.1} parent=1 // pred_region
      %253 = dma.done [#allocation26], 16
    $region157: #{dwt_block_forward.1} parent=1 // pred_fallthru
      _
    // Predicated region
    $region158: #{dwt_block_forward.1} parent=1 // pred_check
      _
    $region159: #{dwt_block_forward.1} parent=1 // pred_check_branch
      %255 = sbr.rel (0) target = $region161
    $region160: #{dwt_block_forward.1} parent=1 // pred_region
      %256 = dma.done [#allocation29], 32
    $region161: #{dwt_block_forward.1} parent=1 // pred_fallthru
      _
    %257 = sfence
    %v258 = vld [vmem:[#allocation7] sm:$0xff]
    %v259 = vld [vmem:[#allocation7 + $0x8] sm:$0xff]
    %v260 = vld [vmem:[%s0] sm:$0xff]
    %v261 = vld [vmem:[%s0 + $0x8] sm:$0xff]
    %v262 = vld [vmem:[%s0 + $0x10] sm:$0xff]
    %v263 = vld [vmem:[%s0 + $0x18] sm:$0xff]
    %v264 = vld [vmem:[%s0 + $0x20] sm:$0xff]
    %v265 = vld [vmem:[%s0 + $0x28] sm:$0xff]
    %v266 = vld [vmem:[%s0 + $0x30] sm:$0xff]
    %v267 = vld [vmem:[%s0 + $0x38] sm:$0xff]
    %v268 = vld [vmem:[%s0 + $0x40] sm:$0xff]
    %v269 = vld [vmem:[%s0 + $0x48] sm:$0xff]
    %v270 = vld [vmem:[%s0 + $0x50] sm:$0xff]
    %v271 = vld [vmem:[%s0 + $0x58] sm:$0xff]
    %v272 = vld [vmem:[%s0 + $0x60] sm:$0xff]
    %v273 = vld [vmem:[%s0 + $0x68] sm:$0xff]
    %v274 = vld [vmem:[%s0 + $0x70] sm:$0xff]
    %v275 = vld [vmem:[%s0 + $0x78] sm:$0xff]
    %v276 = vld [vmem:[%s2] sm:$0xff]
    %v277 = vld [vmem:[%s2 + $0x8] sm:$0xff]
    %279 = vset.pattern.permute.xlu0 0
    %280 = vperm.xlu0 %279, %v276
    %v281 = vpop.permute.xlu0 %280
    %284 = vset.pattern.permute.xlu0 0
    %285 = vperm.xlu0 %284, %v277
    %v286 = vpop.permute.xlu0 %285
    %vm288 = vcmask 523264
    %v290 = vsel %vm288, %v258, 0
    %v293 = vsel %vm288, %v259, 0
    %295 = vmatprep.subr.mxu0 0.0
    %296 = vmatpush1.msra.mxu0 0.0
    %297 = vmatprep.subr.mxu0 0.0
    %298 = vmatpush1.msra.mxu0 0.0
    %299 = vmatprep.subr.mxu0 0.0
    %300 = vmatpush1.msra.mxu0 0.0
    %301 = vmatprep.subr.mxu0 0.0
    %302 = vmatpush1.msra.mxu0 0.0
    %303 = vmatprep.subr.mxu0 0.0
    %304 = vmatpush1.msra.mxu0 0.0
    %305 = vmatprep.subr.mxu0 0.0
    %306 = vmatpush1.msra.mxu0 0.0
    %307 = vmatprep.subr.mxu0 0.0
    %308 = vmatpush1.msra.mxu0 0.0
    %309 = vmatprep.subr.mxu0 0.0
    %310 = vmatpush1.msra.mxu0 0.0
    %311 = vmatprep.subr.mxu0 %v275
    %312 = vmatpush1.msra.mxu0 %v274
    %313 = vmatprep.subr.mxu0 %v273
    %314 = vmatpush1.msra.mxu0 %v272
    %315 = vmatprep.subr.mxu0 %v271
    %316 = vmatpush1.msra.mxu0 %v270
    %317 = vmatprep.subr.mxu0 %v269
    %318 = vmatpush1.msra.mxu0 %v268
    %319 = vmatprep.subr.mxu0 %v267
    %320 = vmatpush1.msra.mxu0 %v266
    %321 = vmatprep.subr.mxu0 %v265
    %322 = vmatpush1.msra.mxu0 %v264
    %323 = vmatprep.subr.mxu0 %v263
    %324 = vmatpush1.msra.mxu0 %v262
    %325 = vmatprep.subr.mxu0 %v261
    %326 = vmatpush1.msra.mxu0 %v260
    %327 = vmatprep.subr.mxu0 0.0
    %328 = vmatpush2.msra.mxu0 0.0
    %329 = vmatprep.subr.mxu0 0.0
    %330 = vmatpush2.msra.mxu0 0.0
    %331 = vmatprep.subr.mxu0 0.0
    %332 = vmatpush2.msra.mxu0 0.0
    %333 = vmatprep.subr.mxu0 0.0
    %334 = vmatpush2.msra.mxu0 0.0
    %335 = vmatprep.subr.mxu0 0.0
    %336 = vmatpush2.msra.mxu0 0.0
    %337 = vmatprep.subr.mxu0 0.0
    %338 = vmatpush2.msra.mxu0 0.0
    %339 = vmatprep.subr.mxu0 0.0
    %340 = vmatpush2.msra.mxu0 0.0
    %341 = vmatprep.subr.mxu0 0.0
    %342 = vmatpush2.msra.mxu0 0.0
    %343 = vmatprep.subr.mxu0 0.0
    %344 = vmatpush2.msra.mxu0 0.0
    %345 = vmatprep.subr.mxu0 0.0
    %346 = vmatpush2.msra.mxu0 0.0
    %347 = vmatprep.subr.mxu0 0.0
    %348 = vmatpush2.msra.mxu0 0.0
    %349 = vmatprep.subr.mxu0 0.0
    %350 = vmatpush2.msra.mxu0 0.0
    %351 = vmatprep.subr.mxu0 0.0
    %352 = vmatpush2.msra.mxu0 0.0
    %353 = vmatprep.subr.mxu0 0.0
    %354 = vmatpush2.msra.mxu0 0.0
    %355 = vmatprep.subr.mxu0 0.0
    %356 = vmatpush2.msra.mxu0 0.0
    %357 = vmatprep.subr.mxu0 0.0
    %358 = vmatpush2.msra.mxu0 0.0
    %359 = vmatprep.mubr.f32.mxu0 0.0
    %360 = vmatmul.mubr.f32.gmra.mxu0 %v290
    %v361 = vpop.f32.mrf.mxu0
    %v362 = vadd.f32 %v281, %v361
    %v363 = vpop.f32.mrf.mxu0
    %v364 = vadd.f32 %v281, %v363
    %365 = vmatprep.mubr.f32.mxu0 0.0
    %366 = vmatmul.mubr.f32.gmra.mxu0 %v293
    %v367 = vpop.f32.mrf.mxu0
    %v368 = vadd.f32 %v286, %v367
    %v369 = vpop.f32.mrf.mxu0
    %v370 = vadd.f32 %v286, %v369
    %371 = vdwg.mxu0
    %v372 = vmax.f32 %v362, 0.0
    %v373 = vmax.f32 %v364, 0.0
    %v374 = vmax.f32 %v368, 0.0
    %v375 = vmax.f32 %v370, 0.0
    %v376 = vld [vmem:[#allocation10] sm:$0xff]
    %v377 = vld [vmem:[%s4] sm:$0xff]
    %379 = vset.pattern.permute.xlu0 0
    %380 = vperm.xlu0 %379, %v377
    %v381 = vpop.permute.xlu0 %380
    %vm383 = vcmask 130048
    %v385 = vsel %vm383, %v376, 0
    %387 = vmatprep.subr.mxu0 0.0
    %388 = vmatpush1.msra.mxu0 0.0
    %389 = vmatprep.subr.mxu0 0.0
    %390 = vmatpush1.msra.mxu0 0.0
    %391 = vmatprep.subr.mxu0 0.0
    %392 = vmatpush1.msra.mxu0 0.0
    %393 = vmatprep.subr.mxu0 0.0
    %394 = vmatpush1.msra.mxu0 0.0
    %395 = vmatprep.subr.mxu0 0.0
    %396 = vmatpush1.msra.mxu0 0.0
    %397 = vmatprep.subr.mxu0 0.0
    %398 = vmatpush1.msra.mxu0 0.0
    %399 = vmatprep.subr.mxu0 0.0
    %400 = vmatpush1.msra.mxu0 0.0
    %401 = vmatprep.subr.mxu0 0.0
    %402 = vmatpush1.msra.mxu0 0.0
    %403 = vmatprep.subr.mxu0 0.0
    %404 = vmatpush1.msra.mxu0 0.0
    %405 = vmatprep.subr.mxu0 0.0
    %406 = vmatpush1.msra.mxu0 0.0
    %407 = vmatprep.subr.mxu0 0.0
    %408 = vmatpush1.msra.mxu0 0.0
    %409 = vmatprep.subr.mxu0 0.0
    %410 = vmatpush1.msra.mxu0 0.0
    %411 = vmatprep.subr.mxu0 0.0
    %412 = vmatpush1.msra.mxu0 0.0
    %413 = vmatprep.subr.mxu0 0.0
    %414 = vmatpush1.msra.mxu0 0.0
    %415 = vmatprep.subr.mxu0 %v375
    %416 = vmatpush1.msra.mxu0 %v374
    %417 = vmatprep.subr.mxu0 %v373
    %418 = vmatpush1.msra.mxu0 %v372
    %419 = vmatprep.subr.mxu0 0.0
    %420 = vmatpush2.msra.mxu0 0.0
    %421 = vmatprep.subr.mxu0 0.0
    %422 = vmatpush2.msra.mxu0 0.0
    %423 = vmatprep.subr.mxu0 0.0
    %424 = vmatpush2.msra.mxu0 0.0
    %425 = vmatprep.subr.mxu0 0.0
    %426 = vmatpush2.msra.mxu0 0.0
    %427 = vmatprep.subr.mxu0 0.0
    %428 = vmatpush2.msra.mxu0 0.0
    %429 = vmatprep.subr.mxu0 0.0
    %430 = vmatpush2.msra.mxu0 0.0
    %431 = vmatprep.subr.mxu0 0.0
    %432 = vmatpush2.msra.mxu0 0.0
    %433 = vmatprep.subr.mxu0 0.0
    %434 = vmatpush2.msra.mxu0 0.0
    %435 = vmatprep.subr.mxu0 0.0
    %436 = vmatpush2.msra.mxu0 0.0
    %437 = vmatprep.subr.mxu0 0.0
    %438 = vmatpush2.msra.mxu0 0.0
    %439 = vmatprep.subr.mxu0 0.0
    %440 = vmatpush2.msra.mxu0 0.0
    %441 = vmatprep.subr.mxu0 0.0
    %442 = vmatpush2.msra.mxu0 0.0
    %443 = vmatprep.subr.mxu0 0.0
    %444 = vmatpush2.msra.mxu0 0.0
    %445 = vmatprep.subr.mxu0 0.0
    %446 = vmatpush2.msra.mxu0 0.0
    %447 = vmatprep.subr.mxu0 0.0
    %448 = vmatpush2.msra.mxu0 0.0
    %449 = vmatprep.subr.mxu0 0.0
    %450 = vmatpush2.msra.mxu0 0.0
    %451 = vmatprep.mubr.f32.mxu0 0.0
    %452 = vmatmul.mubr.f32.gmra.mxu0 %v385
    %v453 = vpop.f32.mrf.mxu0
    %v454 = vadd.f32 %v381, %v453
    %v455 = vpop.f32.mrf.mxu0
    %v456 = vadd.f32 %v381, %v455
    %457 = vdwg.mxu0
    %v458 = vmax.f32 %v454, 0.0
    %v459 = vmax.f32 %v456, 0.0
    %v460 = vld [vmem:[#allocation12] sm:$0x1]
    %v461 = vld [vmem:[#allocation5] sm:$0x1]
    %463 = vset.pattern.permute.xlu0 0
    %464 = vperm.xlu0 %463, %v461
    %v465 = vpop.permute.xlu0 %464
    %v467 = vlaneseq
    %v468 = vshrl.u32 %v467, 7
    %v469 = vsub.s32 0, %v468
    %v470 = vrot.slane %v465, %v469
    %vm471 = vcmask 64512
    %v473 = vsel %vm471, %v460, 0
    %475 = vmatprep.subr.mxu0 0.0
    %476 = vmatpush1.msra.mxu0 0.0
    %477 = vmatprep.subr.mxu0 0.0
    %478 = vmatpush1.msra.mxu0 0.0
    %479 = vmatprep.subr.mxu0 0.0
    %480 = vmatpush1.msra.mxu0 0.0
    %481 = vmatprep.subr.mxu0 0.0
    %482 = vmatpush1.msra.mxu0 0.0
    %483 = vmatprep.subr.mxu0 0.0
    %484 = vmatpush1.msra.mxu0 0.0
    %485 = vmatprep.subr.mxu0 0.0
    %486 = vmatpush1.msra.mxu0 0.0
    %487 = vmatprep.subr.mxu0 0.0
    %488 = vmatpush1.msra.mxu0 0.0
    %489 = vmatprep.subr.mxu0 0.0
    %490 = vmatpush1.msra.mxu0 0.0
    %491 = vmatprep.subr.mxu0 0.0
    %492 = vmatpush1.msra.mxu0 0.0
    %493 = vmatprep.subr.mxu0 0.0
    %494 = vmatpush1.msra.mxu0 0.0
    %495 = vmatprep.subr.mxu0 0.0
    %496 = vmatpush1.msra.mxu0 0.0
    %497 = vmatprep.subr.mxu0 0.0
    %498 = vmatpush1.msra.mxu0 0.0
    %499 = vmatprep.subr.mxu0 0.0
    %500 = vmatpush1.msra.mxu0 0.0
    %501 = vmatprep.subr.mxu0 0.0
    %502 = vmatpush1.msra.mxu0 0.0
    %503 = vmatprep.subr.mxu0 0.0
    %504 = vmatpush1.msra.mxu0 0.0
    %505 = vmatprep.subr.mxu0 %v459
    %506 = vmatpush1.msra.mxu0 %v458
    %507 = vmatprep.subr.mxu0 0.0
    %508 = vmatpush2.msra.mxu0 0.0
    %509 = vmatprep.subr.mxu0 0.0
    %510 = vmatpush2.msra.mxu0 0.0
    %511 = vmatprep.subr.mxu0 0.0
    %512 = vmatpush2.msra.mxu0 0.0
    %513 = vmatprep.subr.mxu0 0.0
    %514 = vmatpush2.msra.mxu0 0.0
    %515 = vmatprep.subr.mxu0 0.0
    %516 = vmatpush2.msra.mxu0 0.0
    %517 = vmatprep.subr.mxu0 0.0
    %518 = vmatpush2.msra.mxu0 0.0
    %519 = vmatprep.subr.mxu0 0.0
    %520 = vmatpush2.msra.mxu0 0.0
    %521 = vmatprep.subr.mxu0 0.0
    %522 = vmatpush2.msra.mxu0 0.0
    %523 = vmatprep.subr.mxu0 0.0
    %524 = vmatpush2.msra.mxu0 0.0
    %525 = vmatprep.subr.mxu0 0.0
    %526 = vmatpush2.msra.mxu0 0.0
    %527 = vmatprep.subr.mxu0 0.0
    %528 = vmatpush2.msra.mxu0 0.0
    %529 = vmatprep.subr.mxu0 0.0
    %530 = vmatpush2.msra.mxu0 0.0
    %531 = vmatprep.subr.mxu0 0.0
    %532 = vmatpush2.msra.mxu0 0.0
    %533 = vmatprep.subr.mxu0 0.0
    %534 = vmatpush2.msra.mxu0 0.0
    %535 = vmatprep.subr.mxu0 0.0
    %536 = vmatpush2.msra.mxu0 0.0
    %537 = vmatprep.subr.mxu0 0.0
    %538 = vmatpush2.msra.mxu0 0.0
    %539 = vmatprep.mubr.f32.mxu0 0.0
    %540 = vmatmul.mubr.f32.gmra.mxu0 %v473
    %v541 = vpop.f32.mrf.mxu0
    %v542 = vadd.f32 %v470, %v541
    %v543 = vpop.f32.mrf.mxu0
    %v544 = vadd.f32 %v470, %v543
    %545 = vdwg.mxu0
    %v546 = vmax.f32 %v542, 0.0
    %v547 = vmax.f32 %v544, 0.0
    %v548 = vld [vmem:[#allocation13] sm:$0xff]
    %v549 = vld [vmem:[#allocation13 + $0x8] sm:$0xff]
    %v550 = vld [vmem:[#allocation13 + $0x10] sm:$0xff]
    %v551 = vld [vmem:[#allocation13 + $0x18] sm:$0xff]
    %v552 = vlaneseq
    %v553 = vshrl.u32 %v552, 7
    %v554 = vsub.s32 0, %v553
    %v555 = vrot.slane %v546, %v554
    %v556 = vlaneseq
    %v557 = vshrl.u32 %v556, 7
    %v558 = vsub.s32 0, %v557
    %v559 = vrot.slane %v547, %v558
    %v560 = vmul.f32 %v555, %v548
    %v561 = vmul.f32 %v559, %v549
    %v562 = vmul.f32 %v555, %v550
    %v563 = vmul.f32 %v559, %v551
    %v564 = vld [vmem:[%s8] sm:$0xff]
    %v565 = vld [vmem:[%s8 + $0x8] sm:$0xff]
    %v566 = vld [vmem:[%s8 + $0x10] sm:$0xff]
    %v567 = vld [vmem:[%s8 + $0x18] sm:$0xff]
    %v568 = vld [vmem:[%s8 + $0x20] sm:$0xff]
    %v569 = vld [vmem:[%s8 + $0x28] sm:$0xff]
    %v570 = vld [vmem:[%s8 + $0x30] sm:$0xff]
    %v571 = vld [vmem:[%s8 + $0x38] sm:$0xff]
    %v572 = vld [vmem:[%s8 + $0x40] sm:$0xff]
    %v573 = vld [vmem:[%s8 + $0x48] sm:$0xff]
    %v574 = vld [vmem:[%s8 + $0x50] sm:$0xff]
    %v575 = vld [vmem:[%s8 + $0x58] sm:$0xff]
    %v576 = vld [vmem:[%s8 + $0x60] sm:$0xff]
    %v577 = vld [vmem:[%s8 + $0x68] sm:$0xff]
    %v578 = vld [vmem:[%s8 + $0x70] sm:$0xff]
    %v579 = vld [vmem:[%s8 + $0x78] sm:$0xff]
    %v580 = vld [vmem:[%s8 + $0x80] sm:$0xff]
    %v581 = vld [vmem:[%s8 + $0x88] sm:$0xff]
    %v582 = vld [vmem:[%s8 + $0x90] sm:$0xff]
    %v583 = vld [vmem:[%s8 + $0x98] sm:$0xff]
    %v584 = vld [vmem:[%s8 + $0xa0] sm:$0xff]
    %v585 = vld [vmem:[%s8 + $0xa8] sm:$0xff]
    %v586 = vld [vmem:[%s8 + $0xb0] sm:$0xff]
    %v587 = vld [vmem:[%s8 + $0xb8] sm:$0xff]
    %v588 = vld [vmem:[%s8 + $0xc0] sm:$0xff]
    %v589 = vld [vmem:[%s8 + $0xc8] sm:$0xff]
    %v590 = vld [vmem:[%s8 + $0xd0] sm:$0xff]
    %v591 = vld [vmem:[%s8 + $0xd8] sm:$0xff]
    %v592 = vld [vmem:[%s8 + $0xe0] sm:$0xff]
    %v593 = vld [vmem:[%s8 + $0xe8] sm:$0xff]
    %v594 = vld [vmem:[%s8 + $0xf0] sm:$0xff]
    %v595 = vld [vmem:[%s8 + $0xf8] sm:$0xff]
    %596 = vmatprep.subr.mxu0 0.0
    %597 = vmatpush1.msra.mxu0 %v579
    %598 = vmatprep.subr.mxu0 0.0
    %599 = vmatpush1.msra.mxu0 %v578
    %600 = vmatprep.subr.mxu0 0.0
    %601 = vmatpush1.msra.mxu0 %v577
    %602 = vmatprep.subr.mxu0 0.0
    %603 = vmatpush1.msra.mxu0 %v576
    %604 = vmatprep.subr.mxu0 0.0
    %605 = vmatpush1.msra.mxu0 %v575
    %606 = vmatprep.subr.mxu0 0.0
    %607 = vmatpush1.msra.mxu0 %v574
    %608 = vmatprep.subr.mxu0 0.0
    %609 = vmatpush1.msra.mxu0 %v573
    %610 = vmatprep.subr.mxu0 0.0
    %611 = vmatpush1.msra.mxu0 %v572
    %612 = vmatprep.subr.mxu0 0.0
    %613 = vmatpush1.msra.mxu0 %v571
    %614 = vmatprep.subr.mxu0 0.0
    %615 = vmatpush1.msra.mxu0 %v570
    %616 = vmatprep.subr.mxu0 0.0
    %617 = vmatpush1.msra.mxu0 %v569
    %618 = vmatprep.subr.mxu0 0.0
    %619 = vmatpush1.msra.mxu0 %v568
    %620 = vmatprep.subr.mxu0 0.0
    %621 = vmatpush1.msra.mxu0 %v567
    %622 = vmatprep.subr.mxu0 0.0
    %623 = vmatpush1.msra.mxu0 %v566
    %624 = vmatprep.subr.mxu0 0.0
    %625 = vmatpush1.msra.mxu0 %v565
    %626 = vmatprep.subr.mxu0 0.0
    %627 = vmatpush1.msra.mxu0 %v564
    %628 = vmatprep.subr.mxu0 0.0
    %629 = vmatpush2.msra.mxu0 %v595
    %630 = vmatprep.subr.mxu0 0.0
    %631 = vmatpush2.msra.mxu0 %v594
    %632 = vmatprep.subr.mxu0 0.0
    %633 = vmatpush2.msra.mxu0 %v593
    %634 = vmatprep.subr.mxu0 0.0
    %635 = vmatpush2.msra.mxu0 %v592
    %636 = vmatprep.subr.mxu0 0.0
    %637 = vmatpush2.msra.mxu0 %v591
    %638 = vmatprep.subr.mxu0 0.0
    %639 = vmatpush2.msra.mxu0 %v590
    %640 = vmatprep.subr.mxu0 0.0
    %641 = vmatpush2.msra.mxu0 %v589
    %642 = vmatprep.subr.mxu0 0.0
    %643 = vmatpush2.msra.mxu0 %v588
    %644 = vmatprep.subr.mxu0 0.0
    %645 = vmatpush2.msra.mxu0 %v587
    %646 = vmatprep.subr.mxu0 0.0
    %647 = vmatpush2.msra.mxu0 %v586
    %648 = vmatprep.subr.mxu0 0.0
    %649 = vmatpush2.msra.mxu0 %v585
    %650 = vmatprep.subr.mxu0 0.0
    %651 = vmatpush2.msra.mxu0 %v584
    %652 = vmatprep.subr.mxu0 0.0
    %653 = vmatpush2.msra.mxu0 %v583
    %654 = vmatprep.subr.mxu0 0.0
    %655 = vmatpush2.msra.mxu0 %v582
    %656 = vmatprep.subr.mxu0 0.0
    %657 = vmatpush2.msra.mxu0 %v581
    %658 = vmatprep.subr.mxu0 0.0
    %659 = vmatpush2.msra.mxu0 %v580
    %660 = vmatprep.mubr.f32.mxu0 %v561
    %661 = vmatmul.mubr.f32.gmra.mxu0 %v560
    %v662 = vpop.f32.mrf.mxu0
    %v663 = vadd.f32 0.0, %v662
    %v664 = vpop.f32.mrf.mxu0
    %665 = vmatprep.mubr.f32.mxu0 %v563
    %666 = vmatmul.mubr.f32.gmra.mxu0 %v562
    %v667 = vpop.f32.mrf.mxu0
    %v668 = vadd.f32 0.0, %v667
    %v669 = vpop.f32.mrf.mxu0
    %670 = vdwg.mxu0
    %v671 = vld [vmem:[#allocation15] sm:$0xff]
    %v672 = vld [vmem:[#allocation15 + $0x8] sm:$0xff]
    %v673 = vld [vmem:[#allocation16] sm:$0xff]
    %v674 = vld [vmem:[#allocation16 + $0x8] sm:$0xff]
    %v676 = vsel %vm383, %v671, 0
    %678 = vmatprep.subr.mxu0 0.0
    %679 = vmatpush1.msra.mxu0 0.0
    %680 = vmatprep.subr.mxu0 0.0
    %681 = vmatpush1.msra.mxu0 0.0
    %682 = vmatprep.subr.mxu0 0.0
    %683 = vmatpush1.msra.mxu0 0.0
    %684 = vmatprep.subr.mxu0 0.0
    %685 = vmatpush1.msra.mxu0 0.0
    %686 = vmatprep.subr.mxu0 0.0
    %687 = vmatpush1.msra.mxu0 0.0
    %688 = vmatprep.subr.mxu0 0.0
    %689 = vmatpush1.msra.mxu0 0.0
    %690 = vmatprep.subr.mxu0 0.0
    %691 = vmatpush1.msra.mxu0 0.0
    %692 = vmatprep.subr.mxu0 0.0
    %693 = vmatpush1.msra.mxu0 0.0
    %694 = vmatprep.subr.mxu0 0.0
    %695 = vmatpush1.msra.mxu0 0.0
    %696 = vmatprep.subr.mxu0 0.0
    %697 = vmatpush1.msra.mxu0 0.0
    %698 = vmatprep.subr.mxu0 0.0
    %699 = vmatpush1.msra.mxu0 0.0
    %700 = vmatprep.subr.mxu0 0.0
    %701 = vmatpush1.msra.mxu0 0.0
    %702 = vmatprep.subr.mxu0 0.0
    %703 = vmatpush1.msra.mxu0 0.0
    %704 = vmatprep.subr.mxu0 0.0
    %705 = vmatpush1.msra.mxu0 0.0
    %706 = vmatprep.subr.mxu0 0.0
    %707 = vmatpush1.msra.mxu0 %v668
    %708 = vmatprep.subr.mxu0 0.0
    %709 = vmatpush1.msra.mxu0 %v663
    %710 = vmatprep.subr.mxu0 0.0
    %711 = vmatpush2.msra.mxu0 0.0
    %712 = vmatprep.subr.mxu0 0.0
    %713 = vmatpush2.msra.mxu0 0.0
    %714 = vmatprep.subr.mxu0 0.0
    %715 = vmatpush2.msra.mxu0 0.0
    %716 = vmatprep.subr.mxu0 0.0
    %717 = vmatpush2.msra.mxu0 0.0
    %718 = vmatprep.subr.mxu0 0.0
    %719 = vmatpush2.msra.mxu0 0.0
    %720 = vmatprep.subr.mxu0 0.0
    %721 = vmatpush2.msra.mxu0 0.0
    %722 = vmatprep.subr.mxu0 0.0
    %723 = vmatpush2.msra.mxu0 0.0
    %724 = vmatprep.subr.mxu0 0.0
    %725 = vmatpush2.msra.mxu0 0.0
    %726 = vmatprep.subr.mxu0 0.0
    %727 = vmatpush2.msra.mxu0 0.0
    %728 = vmatprep.subr.mxu0 0.0
    %729 = vmatpush2.msra.mxu0 0.0
    %730 = vmatprep.subr.mxu0 0.0
    %731 = vmatpush2.msra.mxu0 0.0
    %732 = vmatprep.subr.mxu0 0.0
    %733 = vmatpush2.msra.mxu0 0.0
    %734 = vmatprep.subr.mxu0 0.0
    %735 = vmatpush2.msra.mxu0 0.0
    %736 = vmatprep.subr.mxu0 0.0
    %737 = vmatpush2.msra.mxu0 0.0
    %738 = vmatprep.subr.mxu0 0.0
    %739 = vmatpush2.msra.mxu0 0.0
    %740 = vmatprep.subr.mxu0 0.0
    %741 = vmatpush2.msra.mxu0 0.0
    %742 = vmatprep.mubr.f32.mxu0 0.0
    %743 = vmatmul.mubr.f32.gmra.mxu0 %v676
    %v744 = vpop.f32.mrf.mxu0
    %v745 = vadd.f32 0.0, %v744
    %v746 = vpop.f32.mrf.mxu0
    %747 = vdwg.mxu0
    %v749 = vsel %vm383, %v672, 0
    %751 = vmatprep.subr.mxu0 0.0
    %752 = vmatpush1.msra.mxu0 0.0
    %753 = vmatprep.subr.mxu0 0.0
    %754 = vmatpush1.msra.mxu0 0.0
    %755 = vmatprep.subr.mxu0 0.0
    %756 = vmatpush1.msra.mxu0 0.0
    %757 = vmatprep.subr.mxu0 0.0
    %758 = vmatpush1.msra.mxu0 0.0
    %759 = vmatprep.subr.mxu0 0.0
    %760 = vmatpush1.msra.mxu0 0.0
    %761 = vmatprep.subr.mxu0 0.0
    %762 = vmatpush1.msra.mxu0 0.0
    %763 = vmatprep.subr.mxu0 0.0
    %764 = vmatpush1.msra.mxu0 0.0
    %765 = vmatprep.subr.mxu0 0.0
    %766 = vmatpush1.msra.mxu0 0.0
    %767 = vmatprep.subr.mxu0 0.0
    %768 = vmatpush1.msra.mxu0 0.0
    %769 = vmatprep.subr.mxu0 0.0
    %770 = vmatpush1.msra.mxu0 0.0
    %771 = vmatprep.subr.mxu0 0.0
    %772 = vmatpush1.msra.mxu0 0.0
    %773 = vmatprep.subr.mxu0 0.0
    %774 = vmatpush1.msra.mxu0 0.0
    %775 = vmatprep.subr.mxu0 0.0
    %776 = vmatpush1.msra.mxu0 0.0
    %777 = vmatprep.subr.mxu0 0.0
    %778 = vmatpush1.msra.mxu0 0.0
    %779 = vmatprep.subr.mxu0 0.0
    %780 = vmatpush1.msra.mxu0 %v668
    %781 = vmatprep.subr.mxu0 0.0
    %782 = vmatpush1.msra.mxu0 %v663
    %783 = vmatprep.subr.mxu0 0.0
    %784 = vmatpush2.msra.mxu0 0.0
    %785 = vmatprep.subr.mxu0 0.0
    %786 = vmatpush2.msra.mxu0 0.0
    %787 = vmatprep.subr.mxu0 0.0
    %788 = vmatpush2.msra.mxu0 0.0
    %789 = vmatprep.subr.mxu0 0.0
    %790 = vmatpush2.msra.mxu0 0.0
    %791 = vmatprep.subr.mxu0 0.0
    %792 = vmatpush2.msra.mxu0 0.0
    %793 = vmatprep.subr.mxu0 0.0
    %794 = vmatpush2.msra.mxu0 0.0
    %795 = vmatprep.subr.mxu0 0.0
    %796 = vmatpush2.msra.mxu0 0.0
    %797 = vmatprep.subr.mxu0 0.0
    %798 = vmatpush2.msra.mxu0 0.0
    %799 = vmatprep.subr.mxu0 0.0
    %800 = vmatpush2.msra.mxu0 0.0
    %801 = vmatprep.subr.mxu0 0.0
    %802 = vmatpush2.msra.mxu0 0.0
    %803 = vmatprep.subr.mxu0 0.0
    %804 = vmatpush2.msra.mxu0 0.0
    %805 = vmatprep.subr.mxu0 0.0
    %806 = vmatpush2.msra.mxu0 0.0
    %807 = vmatprep.subr.mxu0 0.0
    %808 = vmatpush2.msra.mxu0 0.0
    %809 = vmatprep.subr.mxu0 0.0
    %810 = vmatpush2.msra.mxu0 0.0
    %811 = vmatprep.subr.mxu0 0.0
    %812 = vmatpush2.msra.mxu0 0.0
    %813 = vmatprep.subr.mxu0 0.0
    %814 = vmatpush2.msra.mxu0 0.0
    %815 = vmatprep.mubr.f32.mxu0 0.0
    %816 = vmatmul.mubr.f32.gmra.mxu0 %v749
    %v817 = vpop.f32.mrf.mxu0
    %v818 = vadd.f32 0.0, %v817
    %v819 = vpop.f32.mrf.mxu0
    %820 = vdwg.mxu0
    %v822 = vsel %vm383, %v745, 0
    %824 = vmatprep.subr.mxu0 0.0
    %825 = vmatpush1.msra.mxu0 0.0
    %826 = vmatprep.subr.mxu0 0.0
    %827 = vmatpush1.msra.mxu0 0.0
    %828 = vmatprep.subr.mxu0 0.0
    %829 = vmatpush1.msra.mxu0 0.0
    %830 = vmatprep.subr.mxu0 0.0
    %831 = vmatpush1.msra.mxu0 0.0
    %832 = vmatprep.subr.mxu0 0.0
    %833 = vmatpush1.msra.mxu0 0.0
    %834 = vmatprep.subr.mxu0 0.0
    %835 = vmatpush1.msra.mxu0 0.0
    %836 = vmatprep.subr.mxu0 0.0
    %837 = vmatpush1.msra.mxu0 0.0
    %838 = vmatprep.subr.mxu0 0.0
    %839 = vmatpush1.msra.mxu0 0.0
    %840 = vmatprep.subr.mxu0 0.0
    %841 = vmatpush1.msra.mxu0 0.0
    %842 = vmatprep.subr.mxu0 0.0
    %843 = vmatpush1.msra.mxu0 0.0
    %844 = vmatprep.subr.mxu0 0.0
    %845 = vmatpush1.msra.mxu0 0.0
    %846 = vmatprep.subr.mxu0 0.0
    %847 = vmatpush1.msra.mxu0 0.0
    %848 = vmatprep.subr.mxu0 0.0
    %849 = vmatpush1.msra.mxu0 0.0
    %850 = vmatprep.subr.mxu0 0.0
    %851 = vmatpush1.msra.mxu0 0.0
    %852 = vmatprep.subr.mxu0 0.0
    %853 = vmatpush1.msra.mxu0 %v674
    %854 = vmatprep.subr.mxu0 0.0
    %855 = vmatpush1.msra.mxu0 %v673
    %856 = vmatprep.subr.mxu0 0.0
    %857 = vmatpush2.msra.mxu0 0.0
    %858 = vmatprep.subr.mxu0 0.0
    %859 = vmatpush2.msra.mxu0 0.0
    %860 = vmatprep.subr.mxu0 0.0
    %861 = vmatpush2.msra.mxu0 0.0
    %862 = vmatprep.subr.mxu0 0.0
    %863 = vmatpush2.msra.mxu0 0.0
    %864 = vmatprep.subr.mxu0 0.0
    %865 = vmatpush2.msra.mxu0 0.0
    %866 = vmatprep.subr.mxu0 0.0
    %867 = vmatpush2.msra.mxu0 0.0
    %868 = vmatprep.subr.mxu0 0.0
    %869 = vmatpush2.msra.mxu0 0.0
    %870 = vmatprep.subr.mxu0 0.0
    %871 = vmatpush2.msra.mxu0 0.0
    %872 = vmatprep.subr.mxu0 0.0
    %873 = vmatpush2.msra.mxu0 0.0
    %874 = vmatprep.subr.mxu0 0.0
    %875 = vmatpush2.msra.mxu0 0.0
    %876 = vmatprep.subr.mxu0 0.0
    %877 = vmatpush2.msra.mxu0 0.0
    %878 = vmatprep.subr.mxu0 0.0
    %879 = vmatpush2.msra.mxu0 0.0
    %880 = vmatprep.subr.mxu0 0.0
    %881 = vmatpush2.msra.mxu0 0.0
    %882 = vmatprep.subr.mxu0 0.0
    %883 = vmatpush2.msra.mxu0 0.0
    %884 = vmatprep.subr.mxu0 0.0
    %885 = vmatpush2.msra.mxu0 0.0
    %886 = vmatprep.subr.mxu0 0.0
    %887 = vmatpush2.msra.mxu0 0.0
    %888 = vmatprep.mubr.f32.mxu0 0.0
    %889 = vmatmul.mubr.f32.gmra.mxu0 %v822
    %v890 = vpop.f32.mrf.mxu0
    %v891 = vadd.f32 0.0, %v890
    %v892 = vpop.f32.mrf.mxu0
    %893 = vdwg.mxu0
    %896 = vrot.lane.b32.xlu0 %v673, 120
    %v897 = vpop.permute.xlu0 %896
    %898 = vrot.lane.b32.xlu0 %v674, 120
    %v899 = vpop.permute.xlu0 %898
    %902 = vmatprep.subr.mxu0 0.0
    %903 = vmatpush1.msra.mxu0 0.0
    %904 = vmatprep.subr.mxu0 0.0
    %905 = vmatpush1.msra.mxu0 0.0
    %906 = vmatprep.subr.mxu0 0.0
    %907 = vmatpush1.msra.mxu0 0.0
    %908 = vmatprep.subr.mxu0 0.0
    %909 = vmatpush1.msra.mxu0 0.0
    %910 = vmatprep.subr.mxu0 0.0
    %911 = vmatpush1.msra.mxu0 0.0
    %912 = vmatprep.subr.mxu0 0.0
    %913 = vmatpush1.msra.mxu0 0.0
    %914 = vmatprep.subr.mxu0 0.0
    %915 = vmatpush1.msra.mxu0 0.0
    %916 = vmatprep.subr.mxu0 0.0
    %917 = vmatpush1.msra.mxu0 0.0
    %918 = vmatprep.subr.mxu0 0.0
    %919 = vmatpush1.msra.mxu0 0.0
    %920 = vmatprep.subr.mxu0 0.0
    %921 = vmatpush1.msra.mxu0 0.0
    %922 = vmatprep.subr.mxu0 0.0
    %923 = vmatpush1.msra.mxu0 0.0
    %924 = vmatprep.subr.mxu0 0.0
    %925 = vmatpush1.msra.mxu0 0.0
    %926 = vmatprep.subr.mxu0 0.0
    %927 = vmatpush1.msra.mxu0 0.0
    %928 = vmatprep.subr.mxu0 0.0
    %929 = vmatpush1.msra.mxu0 0.0
    %930 = vmatprep.subr.mxu0 0.0
    %931 = vmatpush1.msra.mxu0 %v899
    %932 = vmatprep.subr.mxu0 0.0
    %933 = vmatpush1.msra.mxu0 %v897
    %934 = vmatprep.subr.mxu0 0.0
    %935 = vmatpush2.msra.mxu0 0.0
    %936 = vmatprep.subr.mxu0 0.0
    %937 = vmatpush2.msra.mxu0 0.0
    %938 = vmatprep.subr.mxu0 0.0
    %939 = vmatpush2.msra.mxu0 0.0
    %940 = vmatprep.subr.mxu0 0.0
    %941 = vmatpush2.msra.mxu0 0.0
    %942 = vmatprep.subr.mxu0 0.0
    %943 = vmatpush2.msra.mxu0 0.0
    %944 = vmatprep.subr.mxu0 0.0
    %945 = vmatpush2.msra.mxu0 0.0
    %946 = vmatprep.subr.mxu0 0.0
    %947 = vmatpush2.msra.mxu0 0.0
    %948 = vmatprep.subr.mxu0 0.0
    %949 = vmatpush2.msra.mxu0 0.0
    %950 = vmatprep.subr.mxu0 0.0
    %951 = vmatpush2.msra.mxu0 0.0
    %952 = vmatprep.subr.mxu0 0.0
    %953 = vmatpush2.msra.mxu0 0.0
    %954 = vmatprep.subr.mxu0 0.0
    %955 = vmatpush2.msra.mxu0 0.0
    %956 = vmatprep.subr.mxu0 0.0
    %957 = vmatpush2.msra.mxu0 0.0
    %958 = vmatprep.subr.mxu0 0.0
    %959 = vmatpush2.msra.mxu0 0.0
    %960 = vmatprep.subr.mxu0 0.0
    %961 = vmatpush2.msra.mxu0 0.0
    %962 = vmatprep.subr.mxu0 0.0
    %963 = vmatpush2.msra.mxu0 0.0
    %964 = vmatprep.subr.mxu0 0.0
    %965 = vmatpush2.msra.mxu0 0.0
    %966 = vmatprep.mubr.f32.mxu0 0.0
    %967 = vmatmul.mubr.f32.gmra.mxu0 %v822
    %v968 = vpop.f32.mrf.mxu0
    %v969 = vadd.f32 0.0, %v968
    %v970 = vpop.f32.mrf.mxu0
    %971 = vdwg.mxu0
    %v973 = vsel %vm383, %v818, 0
    %975 = vmatprep.subr.mxu0 0.0
    %976 = vmatpush1.msra.mxu0 0.0
    %977 = vmatprep.subr.mxu0 0.0
    %978 = vmatpush1.msra.mxu0 0.0
    %979 = vmatprep.subr.mxu0 0.0
    %980 = vmatpush1.msra.mxu0 0.0
    %981 = vmatprep.subr.mxu0 0.0
    %982 = vmatpush1.msra.mxu0 0.0
    %983 = vmatprep.subr.mxu0 0.0
    %984 = vmatpush1.msra.mxu0 0.0
    %985 = vmatprep.subr.mxu0 0.0
    %986 = vmatpush1.msra.mxu0 0.0
    %987 = vmatprep.subr.mxu0 0.0
    %988 = vmatpush1.msra.mxu0 0.0
    %989 = vmatprep.subr.mxu0 0.0
    %990 = vmatpush1.msra.mxu0 0.0
    %991 = vmatprep.subr.mxu0 0.0
    %992 = vmatpush1.msra.mxu0 0.0
    %993 = vmatprep.subr.mxu0 0.0
    %994 = vmatpush1.msra.mxu0 0.0
    %995 = vmatprep.subr.mxu0 0.0
    %996 = vmatpush1.msra.mxu0 0.0
    %997 = vmatprep.subr.mxu0 0.0
    %998 = vmatpush1.msra.mxu0 0.0
    %999 = vmatprep.subr.mxu0 0.0
    %1000 = vmatpush1.msra.mxu0 0.0
    %1001 = vmatprep.subr.mxu0 0.0
    %1002 = vmatpush1.msra.mxu0 0.0
    %1003 = vmatprep.subr.mxu0 0.0
    %1004 = vmatpush1.msra.mxu0 %v674
    %1005 = vmatprep.subr.mxu0 0.0
    %1006 = vmatpush1.msra.mxu0 %v673
    %1007 = vmatprep.subr.mxu0 0.0
    %1008 = vmatpush2.msra.mxu0 0.0
    %1009 = vmatprep.subr.mxu0 0.0
    %1010 = vmatpush2.msra.mxu0 0.0
    %1011 = vmatprep.subr.mxu0 0.0
    %1012 = vmatpush2.msra.mxu0 0.0
    %1013 = vmatprep.subr.mxu0 0.0
    %1014 = vmatpush2.msra.mxu0 0.0
    %1015 = vmatprep.subr.mxu0 0.0
    %1016 = vmatpush2.msra.mxu0 0.0
    %1017 = vmatprep.subr.mxu0 0.0
    %1018 = vmatpush2.msra.mxu0 0.0
    %1019 = vmatprep.subr.mxu0 0.0
    %1020 = vmatpush2.msra.mxu0 0.0
    %1021 = vmatprep.subr.mxu0 0.0
    %1022 = vmatpush2.msra.mxu0 0.0
    %1023 = vmatprep.subr.mxu0 0.0
    %1024 = vmatpush2.msra.mxu0 0.0
    %1025 = vmatprep.subr.mxu0 0.0
    %1026 = vmatpush2.msra.mxu0 0.0
    %1027 = vmatprep.subr.mxu0 0.0
    %1028 = vmatpush2.msra.mxu0 0.0
    %1029 = vmatprep.subr.mxu0 0.0
    %1030 = vmatpush2.msra.mxu0 0.0
    %1031 = vmatprep.subr.mxu0 0.0
    %1032 = vmatpush2.msra.mxu0 0.0
    %1033 = vmatprep.subr.mxu0 0.0
    %1034 = vmatpush2.msra.mxu0 0.0
    %1035 = vmatprep.subr.mxu0 0.0
    %1036 = vmatpush2.msra.mxu0 0.0
    %1037 = vmatprep.subr.mxu0 0.0
    %1038 = vmatpush2.msra.mxu0 0.0
    %1039 = vmatprep.mubr.f32.mxu0 0.0
    %1040 = vmatmul.mubr.f32.gmra.mxu0 %v973
    %v1041 = vpop.f32.mrf.mxu0
    %v1042 = vadd.f32 0.0, %v1041
    %v1043 = vpop.f32.mrf.mxu0
    %1044 = vdwg.mxu0
    %1045 = vmatprep.subr.mxu0 0.0
    %1046 = vmatpush1.msra.mxu0 0.0
    %1047 = vmatprep.subr.mxu0 0.0
    %1048 = vmatpush1.msra.mxu0 0.0
    %1049 = vmatprep.subr.mxu0 0.0
    %1050 = vmatpush1.msra.mxu0 0.0
    %1051 = vmatprep.subr.mxu0 0.0
    %1052 = vmatpush1.msra.mxu0 0.0
    %1053 = vmatprep.subr.mxu0 0.0
    %1054 = vmatpush1.msra.mxu0 0.0
    %1055 = vmatprep.subr.mxu0 0.0
    %1056 = vmatpush1.msra.mxu0 0.0
    %1057 = vmatprep.subr.mxu0 0.0
    %1058 = vmatpush1.msra.mxu0 0.0
    %1059 = vmatprep.subr.mxu0 0.0
    %1060 = vmatpush1.msra.mxu0 0.0
    %1061 = vmatprep.subr.mxu0 0.0
    %1062 = vmatpush1.msra.mxu0 0.0
    %1063 = vmatprep.subr.mxu0 0.0
    %1064 = vmatpush1.msra.mxu0 0.0
    %1065 = vmatprep.subr.mxu0 0.0
    %1066 = vmatpush1.msra.mxu0 0.0
    %1067 = vmatprep.subr.mxu0 0.0
    %1068 = vmatpush1.msra.mxu0 0.0
    %1069 = vmatprep.subr.mxu0 0.0
    %1070 = vmatpush1.msra.mxu0 0.0
    %1071 = vmatprep.subr.mxu0 0.0
    %1072 = vmatpush1.msra.mxu0 0.0
    %1073 = vmatprep.subr.mxu0 0.0
    %1074 = vmatpush1.msra.mxu0 %v899
    %1075 = vmatprep.subr.mxu0 0.0
    %1076 = vmatpush1.msra.mxu0 %v897
    %1077 = vmatprep.subr.mxu0 0.0
    %1078 = vmatpush2.msra.mxu0 0.0
    %1079 = vmatprep.subr.mxu0 0.0
    %1080 = vmatpush2.msra.mxu0 0.0
    %1081 = vmatprep.subr.mxu0 0.0
    %1082 = vmatpush2.msra.mxu0 0.0
    %1083 = vmatprep.subr.mxu0 0.0
    %1084 = vmatpush2.msra.mxu0 0.0
    %1085 = vmatprep.subr.mxu0 0.0
    %1086 = vmatpush2.msra.mxu0 0.0
    %1087 = vmatprep.subr.mxu0 0.0
    %1088 = vmatpush2.msra.mxu0 0.0
    %1089 = vmatprep.subr.mxu0 0.0
    %1090 = vmatpush2.msra.mxu0 0.0
    %1091 = vmatprep.subr.mxu0 0.0
    %1092 = vmatpush2.msra.mxu0 0.0
    %1093 = vmatprep.subr.mxu0 0.0
    %1094 = vmatpush2.msra.mxu0 0.0
    %1095 = vmatprep.subr.mxu0 0.0
    %1096 = vmatpush2.msra.mxu0 0.0
    %1097 = vmatprep.subr.mxu0 0.0
    %1098 = vmatpush2.msra.mxu0 0.0
    %1099 = vmatprep.subr.mxu0 0.0
    %1100 = vmatpush2.msra.mxu0 0.0
    %1101 = vmatprep.subr.mxu0 0.0
    %1102 = vmatpush2.msra.mxu0 0.0
    %1103 = vmatprep.subr.mxu0 0.0
    %1104 = vmatpush2.msra.mxu0 0.0
    %1105 = vmatprep.subr.mxu0 0.0
    %1106 = vmatpush2.msra.mxu0 0.0
    %1107 = vmatprep.subr.mxu0 0.0
    %1108 = vmatpush2.msra.mxu0 0.0
    %1109 = vmatprep.mubr.f32.mxu0 0.0
    %1110 = vmatmul.mubr.f32.gmra.mxu0 %v973
    %v1111 = vpop.f32.mrf.mxu0
    %v1112 = vadd.f32 0.0, %v1111
    %v1113 = vpop.f32.mrf.mxu0
    %1114 = vdwg.mxu0
    %v1115 = vadd.f32 %v891, %v969
    %v1116 = vsub.f32 %v1115, %v1042
    %v1117 = vsub.f32 %v1116, %v1112
    %v1118 = vmul.f32 %v1117, 0.5
    %v1119 = vsub.f32 %v891, %v969
    %v1120 = vadd.f32 %v1119, %v1042
    %v1121 = vsub.f32 %v1120, %v1112
    %v1122 = vmul.f32 %v1121, 0.5
    %v1123 = vsub.f32 %v1119, %v1042
    %v1124 = vadd.f32 %v1123, %v1112
    %v1125 = vmul.f32 %v1124, 0.5
    %s1126 = sld [smem:[#allocation24]]
    %v1127 = vstv %s1126
    %v1128 = vmul.f32 %v1118, %v1127
    %s1129 = sld [smem:[#allocation24 + $0x80]]
    %v1130 = vstv %s1129
    %v1131 = vmul.f32 %v1122, %v1130
    %v1132 = vadd.f32 %v1128, %v1131
    %s1133 = sld [smem:[#allocation24 + $0x100]]
    %v1134 = vstv %s1133
    %v1135 = vmul.f32 %v1125, %v1134
    %v1136 = vadd.f32 %v1132, %v1135
    %s1137 = sld [smem:[#allocation25]]
    %v1138 = vstv %s1137
    %v1139 = vadd.f32 %v1136, %v1138
    %v1140 = vmax.f32 %v1139, 0.0
    %v1141 = vld [vmem:[#allocation18] sm:$0xff]
    %v1142 = vld [vmem:[#allocation18 + $0x8] sm:$0xff]
    %v1143 = vld [vmem:[#allocation18 + $0x10] sm:$0xf]
    %v1145 = vsel %vm471, %v1141, 0
    %v1148 = vsel %vm471, %v1142, 0
    %v1151 = vsel %vm471, %v1143, 0
    %1153 = vmatprep.subr.mxu0 0.0
    %1154 = vmatpush1.msra.mxu0 0.0
    %1155 = vmatprep.subr.mxu0 0.0
    %1156 = vmatpush1.msra.mxu0 0.0
    %1157 = vmatprep.subr.mxu0 0.0
    %1158 = vmatpush1.msra.mxu0 0.0
    %1159 = vmatprep.subr.mxu0 0.0
    %1160 = vmatpush1.msra.mxu0 0.0
    %1161 = vmatprep.subr.mxu0 0.0
    %1162 = vmatpush1.msra.mxu0 0.0
    %1163 = vmatprep.subr.mxu0 0.0
    %1164 = vmatpush1.msra.mxu0 0.0
    %1165 = vmatprep.subr.mxu0 0.0
    %1166 = vmatpush1.msra.mxu0 0.0
    %1167 = vmatprep.subr.mxu0 0.0
    %1168 = vmatpush1.msra.mxu0 0.0
    %1169 = vmatprep.subr.mxu0 0.0
    %1170 = vmatpush1.msra.mxu0 0.0
    %1171 = vmatprep.subr.mxu0 0.0
    %1172 = vmatpush1.msra.mxu0 0.0
    %1173 = vmatprep.subr.mxu0 0.0
    %1174 = vmatpush1.msra.mxu0 0.0
    %1175 = vmatprep.subr.mxu0 0.0
    %1176 = vmatpush1.msra.mxu0 0.0
    %1177 = vmatprep.subr.mxu0 0.0
    %1178 = vmatpush1.msra.mxu0 0.0
    %1179 = vmatprep.subr.mxu0 0.0
    %1180 = vmatpush1.msra.mxu0 0.0
    %1181 = vmatprep.subr.mxu0 0.0
    %1182 = vmatpush1.msra.mxu0 0.0
    %1183 = vmatprep.subr.mxu0 0.0
    %1184 = vmatpush1.msra.mxu0 %v1140
    %1185 = vmatprep.subr.mxu0 0.0
    %1186 = vmatpush2.msra.mxu0 0.0
    %1187 = vmatprep.subr.mxu0 0.0
    %1188 = vmatpush2.msra.mxu0 0.0
    %1189 = vmatprep.subr.mxu0 0.0
    %1190 = vmatpush2.msra.mxu0 0.0
    %1191 = vmatprep.subr.mxu0 0.0
    %1192 = vmatpush2.msra.mxu0 0.0
    %1193 = vmatprep.subr.mxu0 0.0
    %1194 = vmatpush2.msra.mxu0 0.0
    %1195 = vmatprep.subr.mxu0 0.0
    %1196 = vmatpush2.msra.mxu0 0.0
    %1197 = vmatprep.subr.mxu0 0.0
    %1198 = vmatpush2.msra.mxu0 0.0
    %1199 = vmatprep.subr.mxu0 0.0
    %1200 = vmatpush2.msra.mxu0 0.0
    %1201 = vmatprep.subr.mxu0 0.0
    %1202 = vmatpush2.msra.mxu0 0.0
    %1203 = vmatprep.subr.mxu0 0.0
    %1204 = vmatpush2.msra.mxu0 0.0
    %1205 = vmatprep.subr.mxu0 0.0
    %1206 = vmatpush2.msra.mxu0 0.0
    %1207 = vmatprep.subr.mxu0 0.0
    %1208 = vmatpush2.msra.mxu0 0.0
    %1209 = vmatprep.subr.mxu0 0.0
    %1210 = vmatpush2.msra.mxu0 0.0
    %1211 = vmatprep.subr.mxu0 0.0
    %1212 = vmatpush2.msra.mxu0 0.0
    %1213 = vmatprep.subr.mxu0 0.0
    %1214 = vmatpush2.msra.mxu0 0.0
    %1215 = vmatprep.subr.mxu0 0.0
    %1216 = vmatpush2.msra.mxu0 0.0
    %1217 = vmatprep.mubr.f32.mxu0 0.0
    %1218 = vmatmul.mubr.f32.gmra.mxu0 %v1145
    %v1219 = vpop.f32.mrf.mxu0
    %v1220 = vadd.f32 0.0, %v1219
    %v1221 = vpop.f32.mrf.mxu0
    %1222 = vmatprep.mubr.f32.mxu0 0.0
    %1223 = vmatmul.mubr.f32.gmra.mxu0 %v1148
    %v1224 = vpop.f32.mrf.mxu0
    %v1225 = vadd.f32 0.0, %v1224
    %v1226 = vpop.f32.mrf.mxu0
    %1227 = vmatprep.mubr.f32.mxu0 0.0
    %1228 = vmatmul.mubr.f32.gmra.mxu0 %v1151
    %v1229 = vpop.f32.mrf.mxu0
    %v1230 = vadd.f32 0.0, %v1229
    %v1231 = vpop.f32.mrf.mxu0
    %1232 = vdwg.mxu0
    %v1233 = vld [vmem:[#allocation19] sm:$0xff]
    %s1234 = smax.f32 %s1137, 0.0
    %v1235 = vld [vmem:[%s13] sm:$0xff]
    %v1236 = vld [vmem:[%s13 + $0x8] sm:$0xff]
    %v1237 = vld [vmem:[%s13 + $0x10] sm:$0xf]
    %v1238 = vstv %s1234
    %v1239 = vmul.f32 %v1238, %v1235
    %v1240 = vmul.f32 %v1238, %v1236
    %v1241 = vmul.f32 %v1238, %v1237
    %v1243 = vsel %vm471, %v1220, 0
    %v1246 = vsel %vm471, %v1225, 0
    %v1249 = vsel %vm471, %v1230, 0
    %1251 = vmatprep.subr.mxu0 0.0
    %1252 = vmatpush1.msra.mxu0 0.0
    %1253 = vmatprep.subr.mxu0 0.0
    %1254 = vmatpush1.msra.mxu0 0.0
    %1255 = vmatprep.subr.mxu0 0.0
    %1256 = vmatpush1.msra.mxu0 0.0
    %1257 = vmatprep.subr.mxu0 0.0
    %1258 = vmatpush1.msra.mxu0 0.0
    %1259 = vmatprep.subr.mxu0 0.0
    %1260 = vmatpush1.msra.mxu0 0.0
    %1261 = vmatprep.subr.mxu0 0.0
    %1262 = vmatpush1.msra.mxu0 0.0
    %1263 = vmatprep.subr.mxu0 0.0
    %1264 = vmatpush1.msra.mxu0 0.0
    %1265 = vmatprep.subr.mxu0 0.0
    %1266 = vmatpush1.msra.mxu0 0.0
    %1267 = vmatprep.subr.mxu0 0.0
    %1268 = vmatpush1.msra.mxu0 0.0
    %1269 = vmatprep.subr.mxu0 0.0
    %1270 = vmatpush1.msra.mxu0 0.0
    %1271 = vmatprep.subr.mxu0 0.0
    %1272 = vmatpush1.msra.mxu0 0.0
    %1273 = vmatprep.subr.mxu0 0.0
    %1274 = vmatpush1.msra.mxu0 0.0
    %1275 = vmatprep.subr.mxu0 0.0
    %1276 = vmatpush1.msra.mxu0 0.0
    %1277 = vmatprep.subr.mxu0 0.0
    %1278 = vmatpush1.msra.mxu0 0.0
    %1279 = vmatprep.subr.mxu0 0.0
    %1280 = vmatpush1.msra.mxu0 0.0
    %1281 = vmatprep.subr.mxu0 0.0
    %1282 = vmatpush1.msra.mxu0 %v1233
    %1283 = vmatprep.subr.mxu0 0.0
    %1284 = vmatpush2.msra.mxu0 0.0
    %1285 = vmatprep.subr.mxu0 0.0
    %1286 = vmatpush2.msra.mxu0 0.0
    %1287 = vmatprep.subr.mxu0 0.0
    %1288 = vmatpush2.msra.mxu0 0.0
    %1289 = vmatprep.subr.mxu0 0.0
    %1290 = vmatpush2.msra.mxu0 0.0
    %1291 = vmatprep.subr.mxu0 0.0
    %1292 = vmatpush2.msra.mxu0 0.0
    %1293 = vmatprep.subr.mxu0 0.0
    %1294 = vmatpush2.msra.mxu0 0.0
    %1295 = vmatprep.subr.mxu0 0.0
    %1296 = vmatpush2.msra.mxu0 0.0
    %1297 = vmatprep.subr.mxu0 0.0
    %1298 = vmatpush2.msra.mxu0 0.0
    %1299 = vmatprep.subr.mxu0 0.0
    %1300 = vmatpush2.msra.mxu0 0.0
    %1301 = vmatprep.subr.mxu0 0.0
    %1302 = vmatpush2.msra.mxu0 0.0
    %1303 = vmatprep.subr.mxu0 0.0
    %1304 = vmatpush2.msra.mxu0 0.0
    %1305 = vmatprep.subr.mxu0 0.0
    %1306 = vmatpush2.msra.mxu0 0.0
    %1307 = vmatprep.subr.mxu0 0.0
    %1308 = vmatpush2.msra.mxu0 0.0
    %1309 = vmatprep.subr.mxu0 0.0
    %1310 = vmatpush2.msra.mxu0 0.0
    %1311 = vmatprep.subr.mxu0 0.0
    %1312 = vmatpush2.msra.mxu0 0.0
    %1313 = vmatprep.subr.mxu0 0.0
    %1314 = vmatpush2.msra.mxu0 0.0
    %1315 = vmatprep.mubr.f32.mxu0 0.0
    %1316 = vmatmul.mubr.f32.gmra.mxu0 %v1243
    %v1317 = vpop.f32.mrf.mxu0
    %v1318 = vadd.f32 %v1239, %v1317
    %v1319 = vpop.f32.mrf.mxu0
    %1320 = vmatprep.mubr.f32.mxu0 0.0
    %1321 = vmatmul.mubr.f32.gmra.mxu0 %v1246
    %v1322 = vpop.f32.mrf.mxu0
    %v1323 = vadd.f32 %v1240, %v1322
    %v1324 = vpop.f32.mrf.mxu0
    %1325 = vmatprep.mubr.f32.mxu0 0.0
    %1326 = vmatmul.mubr.f32.gmra.mxu0 %v1249
    %v1327 = vpop.f32.mrf.mxu0
    %v1328 = vadd.f32 %v1241, %v1327
    %v1329 = vpop.f32.mrf.mxu0
    %1330 = vdwg.mxu0
    %s1331 = sld [smem:[#allocation24 + $0x1]]
    %v1332 = vstv %s1331
    %v1333 = vmul.f32 %v1118, %v1332
    %s1334 = sld [smem:[#allocation24 + $0x81]]
    %v1335 = vstv %s1334
    %v1336 = vmul.f32 %v1122, %v1335
    %v1337 = vadd.f32 %v1333, %v1336
    %s1338 = sld [smem:[#allocation24 + $0x101]]
    %v1339 = vstv %s1338
    %v1340 = vmul.f32 %v1125, %v1339
    %v1341 = vadd.f32 %v1337, %v1340
    %s1342 = sld [smem:[#allocation25 + $0x1]]
    %v1343 = vstv %s1342
    %v1344 = vadd.f32 %v1341, %v1343
    %v1345 = vmax.f32 %v1344, 0.0
    %1346 = vmatprep.subr.mxu0 0.0
    %1347 = vmatpush1.msra.mxu0 0.0
    %1348 = vmatprep.subr.mxu0 0.0
    %1349 = vmatpush1.msra.mxu0 0.0
    %1350 = vmatprep.subr.mxu0 0.0
    %1351 = vmatpush1.msra.mxu0 0.0
    %1352 = vmatprep.subr.mxu0 0.0
    %1353 = vmatpush1.msra.mxu0 0.0
    %1354 = vmatprep.subr.mxu0 0.0
    %1355 = vmatpush1.msra.mxu0 0.0
    %1356 = vmatprep.subr.mxu0 0.0
    %1357 = vmatpush1.msra.mxu0 0.0
    %1358 = vmatprep.subr.mxu0 0.0
    %1359 = vmatpush1.msra.mxu0 0.0
    %1360 = vmatprep.subr.mxu0 0.0
    %1361 = vmatpush1.msra.mxu0 0.0
    %1362 = vmatprep.subr.mxu0 0.0
    %1363 = vmatpush1.msra.mxu0 0.0
    %1364 = vmatprep.subr.mxu0 0.0
    %1365 = vmatpush1.msra.mxu0 0.0
    %1366 = vmatprep.subr.mxu0 0.0
    %1367 = vmatpush1.msra.mxu0 0.0
    %1368 = vmatprep.subr.mxu0 0.0
    %1369 = vmatpush1.msra.mxu0 0.0
    %1370 = vmatprep.subr.mxu0 0.0
    %1371 = vmatpush1.msra.mxu0 0.0
    %1372 = vmatprep.subr.mxu0 0.0
    %1373 = vmatpush1.msra.mxu0 0.0
    %1374 = vmatprep.subr.mxu0 0.0
    %1375 = vmatpush1.msra.mxu0 0.0
    %1376 = vmatprep.subr.mxu0 0.0
    %1377 = vmatpush1.msra.mxu0 %v1345
    %1378 = vmatprep.subr.mxu0 0.0
    %1379 = vmatpush2.msra.mxu0 0.0
    %1380 = vmatprep.subr.mxu0 0.0
    %1381 = vmatpush2.msra.mxu0 0.0
    %1382 = vmatprep.subr.mxu0 0.0
    %1383 = vmatpush2.msra.mxu0 0.0
    %1384 = vmatprep.subr.mxu0 0.0
    %1385 = vmatpush2.msra.mxu0 0.0
    %1386 = vmatprep.subr.mxu0 0.0
    %1387 = vmatpush2.msra.mxu0 0.0
    %1388 = vmatprep.subr.mxu0 0.0
    %1389 = vmatpush2.msra.mxu0 0.0
    %1390 = vmatprep.subr.mxu0 0.0
    %1391 = vmatpush2.msra.mxu0 0.0
    %1392 = vmatprep.subr.mxu0 0.0
    %1393 = vmatpush2.msra.mxu0 0.0
    %1394 = vmatprep.subr.mxu0 0.0
    %1395 = vmatpush2.msra.mxu0 0.0
    %1396 = vmatprep.subr.mxu0 0.0
    %1397 = vmatpush2.msra.mxu0 0.0
    %1398 = vmatprep.subr.mxu0 0.0
    %1399 = vmatpush2.msra.mxu0 0.0
    %1400 = vmatprep.subr.mxu0 0.0
    %1401 = vmatpush2.msra.mxu0 0.0
    %1402 = vmatprep.subr.mxu0 0.0
    %1403 = vmatpush2.msra.mxu0 0.0
    %1404 = vmatprep.subr.mxu0 0.0
    %1405 = vmatpush2.msra.mxu0 0.0
    %1406 = vmatprep.subr.mxu0 0.0
    %1407 = vmatpush2.msra.mxu0 0.0
    %1408 = vmatprep.subr.mxu0 0.0
    %1409 = vmatpush2.msra.mxu0 0.0
    %1410 = vmatprep.mubr.f32.mxu0 0.0
    %1411 = vmatmul.mubr.f32.gmra.mxu0 %v1145
    %v1412 = vpop.f32.mrf.mxu0
    %v1413 = vadd.f32 0.0, %v1412
    %v1414 = vpop.f32.mrf.mxu0
    %1415 = vmatprep.mubr.f32.mxu0 0.0
    %1416 = vmatmul.mubr.f32.gmra.mxu0 %v1148
    %v1417 = vpop.f32.mrf.mxu0
    %v1418 = vadd.f32 0.0, %v1417
    %v1419 = vpop.f32.mrf.mxu0
    %1420 = vmatprep.mubr.f32.mxu0 0.0
    %1421 = vmatmul.mubr.f32.gmra.mxu0 %v1151
    %v1422 = vpop.f32.mrf.mxu0
    %v1423 = vadd.f32 0.0, %v1422
    %v1424 = vpop.f32.mrf.mxu0
    %1425 = vdwg.mxu0
    %s1426 = scalar_lea.vmem [#allocation19], 8
    %v1427 = vld [vmem:[%s1426] sm:$0xff]
    %v1429 = vsel %vm471, %v1413, 0
    %v1432 = vsel %vm471, %v1418, 0
    %v1435 = vsel %vm471, %v1423, 0
    %1437 = vmatprep.subr.mxu0 0.0
    %1438 = vmatpush1.msra.mxu0 0.0
    %1439 = vmatprep.subr.mxu0 0.0
    %1440 = vmatpush1.msra.mxu0 0.0
    %1441 = vmatprep.subr.mxu0 0.0
    %1442 = vmatpush1.msra.mxu0 0.0
    %1443 = vmatprep.subr.mxu0 0.0
    %1444 = vmatpush1.msra.mxu0 0.0
    %1445 = vmatprep.subr.mxu0 0.0
    %1446 = vmatpush1.msra.mxu0 0.0
    %1447 = vmatprep.subr.mxu0 0.0
    %1448 = vmatpush1.msra.mxu0 0.0
    %1449 = vmatprep.subr.mxu0 0.0
    %1450 = vmatpush1.msra.mxu0 0.0
    %1451 = vmatprep.subr.mxu0 0.0
    %1452 = vmatpush1.msra.mxu0 0.0
    %1453 = vmatprep.subr.mxu0 0.0
    %1454 = vmatpush1.msra.mxu0 0.0
    %1455 = vmatprep.subr.mxu0 0.0
    %1456 = vmatpush1.msra.mxu0 0.0
    %1457 = vmatprep.subr.mxu0 0.0
    %1458 = vmatpush1.msra.mxu0 0.0
    %1459 = vmatprep.subr.mxu0 0.0
    %1460 = vmatpush1.msra.mxu0 0.0
    %1461 = vmatprep.subr.mxu0 0.0
    %1462 = vmatpush1.msra.mxu0 0.0
    %1463 = vmatprep.subr.mxu0 0.0
    %1464 = vmatpush1.msra.mxu0 0.0
    %1465 = vmatprep.subr.mxu0 0.0
    %1466 = vmatpush1.msra.mxu0 0.0
    %1467 = vmatprep.subr.mxu0 0.0
    %1468 = vmatpush1.msra.mxu0 %v1427
    %1469 = vmatprep.subr.mxu0 0.0
    %1470 = vmatpush2.msra.mxu0 0.0
    %1471 = vmatprep.subr.mxu0 0.0
    %1472 = vmatpush2.msra.mxu0 0.0
    %1473 = vmatprep.subr.mxu0 0.0
    %1474 = vmatpush2.msra.mxu0 0.0
    %1475 = vmatprep.subr.mxu0 0.0
    %1476 = vmatpush2.msra.mxu0 0.0
    %1477 = vmatprep.subr.mxu0 0.0
    %1478 = vmatpush2.msra.mxu0 0.0
    %1479 = vmatprep.subr.mxu0 0.0
    %1480 = vmatpush2.msra.mxu0 0.0
    %1481 = vmatprep.subr.mxu0 0.0
    %1482 = vmatpush2.msra.mxu0 0.0
    %1483 = vmatprep.subr.mxu0 0.0
    %1484 = vmatpush2.msra.mxu0 0.0
    %1485 = vmatprep.subr.mxu0 0.0
    %1486 = vmatpush2.msra.mxu0 0.0
    %1487 = vmatprep.subr.mxu0 0.0
    %1488 = vmatpush2.msra.mxu0 0.0
    %1489 = vmatprep.subr.mxu0 0.0
    %1490 = vmatpush2.msra.mxu0 0.0
    %1491 = vmatprep.subr.mxu0 0.0
    %1492 = vmatpush2.msra.mxu0 0.0
    %1493 = vmatprep.subr.mxu0 0.0
    %1494 = vmatpush2.msra.mxu0 0.0
    %1495 = vmatprep.subr.mxu0 0.0
    %1496 = vmatpush2.msra.mxu0 0.0
    %1497 = vmatprep.subr.mxu0 0.0
    %1498 = vmatpush2.msra.mxu0 0.0
    %1499 = vmatprep.subr.mxu0 0.0
    %1500 = vmatpush2.msra.mxu0 0.0
    %1501 = vmatprep.mubr.f32.mxu0 0.0
    %1502 = vmatmul.mubr.f32.gmra.mxu0 %v1429
    %v1503 = vpop.f32.mrf.mxu0
    %v1504 = vadd.f32 0.0, %v1503
    %v1505 = vpop.f32.mrf.mxu0
    %1506 = vmatprep.mubr.f32.mxu0 0.0
    %1507 = vmatmul.mubr.f32.gmra.mxu0 %v1432
    %v1508 = vpop.f32.mrf.mxu0
    %v1509 = vadd.f32 0.0, %v1508
    %v1510 = vpop.f32.mrf.mxu0
    %1511 = vmatprep.mubr.f32.mxu0 0.0
    %1512 = vmatmul.mubr.f32.gmra.mxu0 %v1435
    %v1513 = vpop.f32.mrf.mxu0
    %v1514 = vadd.f32 0.0, %v1513
    %v1515 = vpop.f32.mrf.mxu0
    %1516 = vdwg.mxu0
    %v1517 = vadd.f32 %v1318, %v1504
    %v1518 = vadd.f32 %v1323, %v1509
    %v1519 = vadd.f32 %v1328, %v1514
    %s1520 = smax.f32 %s1342, 0.0
    %s1521 = scalar_lea.vmem %s13, 24
    %v1522 = vld [vmem:[%s1521] sm:$0xff]
    %v1523 = vld [vmem:[%s1521 + $0x8] sm:$0xff]
    %v1524 = vld [vmem:[%s1521 + $0x10] sm:$0xf]
    %v1525 = vstv %s1520
    %v1526 = vmul.f32 %v1525, %v1522
    %v1527 = vmul.f32 %v1525, %v1523
    %v1528 = vmul.f32 %v1525, %v1524
    %v1529 = vadd.f32 %v1517, %v1526
    %v1530 = vadd.f32 %v1518, %v1527
    %v1531 = vadd.f32 %v1519, %v1528
    %s1532 = sld [smem:[#allocation24 + $0x2]]
    %v1533 = vstv %s1532
    %v1534 = vmul.f32 %v1118, %v1533
    %s1535 = sld [smem:[#allocation24 + $0x82]]
    %v1536 = vstv %s1535
    %v1537 = vmul.f32 %v1122, %v1536
    %v1538 = vadd.f32 %v1534, %v1537
    %s1539 = sld [smem:[#allocation24 + $0x102]]
    %v1540 = vstv %s1539
    %v1541 = vmul.f32 %v1125, %v1540
    %v1542 = vadd.f32 %v1538, %v1541
    %s1543 = sld [smem:[#allocation25 + $0x2]]
    %v1544 = vstv %s1543
    %v1545 = vadd.f32 %v1542, %v1544
    %v1546 = vmax.f32 %v1545, 0.0
    %s1547 = scalar_lea.vmem [#allocation18], 24
    %v1548 = vld [vmem:[%s1547] sm:$0xff]
    %v1549 = vld [vmem:[%s1547 + $0x8] sm:$0xff]
    %v1550 = vld [vmem:[%s1547 + $0x10] sm:$0xf]
    %v1552 = vsel %vm471, %v1548, 0
    %v1555 = vsel %vm471, %v1549, 0
    %v1558 = vsel %vm471, %v1550, 0
    %1560 = vmatprep.subr.mxu0 0.0
    %1561 = vmatpush1.msra.mxu0 0.0
    %1562 = vmatprep.subr.mxu0 0.0
    %1563 = vmatpush1.msra.mxu0 0.0
    %1564 = vmatprep.subr.mxu0 0.0
    %1565 = vmatpush1.msra.mxu0 0.0
    %1566 = vmatprep.subr.mxu0 0.0
    %1567 = vmatpush1.msra.mxu0 0.0
    %1568 = vmatprep.subr.mxu0 0.0
    %1569 = vmatpush1.msra.mxu0 0.0
    %1570 = vmatprep.subr.mxu0 0.0
    %1571 = vmatpush1.msra.mxu0 0.0
    %1572 = vmatprep.subr.mxu0 0.0
    %1573 = vmatpush1.msra.mxu0 0.0
    %1574 = vmatprep.subr.mxu0 0.0
    %1575 = vmatpush1.msra.mxu0 0.0
    %1576 = vmatprep.subr.mxu0 0.0
    %1577 = vmatpush1.msra.mxu0 0.0
    %1578 = vmatprep.subr.mxu0 0.0
    %1579 = vmatpush1.msra.mxu0 0.0
    %1580 = vmatprep.subr.mxu0 0.0
    %1581 = vmatpush1.msra.mxu0 0.0
    %1582 = vmatprep.subr.mxu0 0.0
    %1583 = vmatpush1.msra.mxu0 0.0
    %1584 = vmatprep.subr.mxu0 0.0
    %1585 = vmatpush1.msra.mxu0 0.0
    %1586 = vmatprep.subr.mxu0 0.0
    %1587 = vmatpush1.msra.mxu0 0.0
    %1588 = vmatprep.subr.mxu0 0.0
    %1589 = vmatpush1.msra.mxu0 0.0
    %1590 = vmatprep.subr.mxu0 0.0
    %1591 = vmatpush1.msra.mxu0 %v1546
    %1592 = vmatprep.subr.mxu0 0.0
    %1593 = vmatpush2.msra.mxu0 0.0
    %1594 = vmatprep.subr.mxu0 0.0
    %1595 = vmatpush2.msra.mxu0 0.0
    %1596 = vmatprep.subr.mxu0 0.0
    %1597 = vmatpush2.msra.mxu0 0.0
    %1598 = vmatprep.subr.mxu0 0.0
    %1599 = vmatpush2.msra.mxu0 0.0
    %1600 = vmatprep.subr.mxu0 0.0
    %1601 = vmatpush2.msra.mxu0 0.0
    %1602 = vmatprep.subr.mxu0 0.0
    %1603 = vmatpush2.msra.mxu0 0.0
    %1604 = vmatprep.subr.mxu0 0.0
    %1605 = vmatpush2.msra.mxu0 0.0
    %1606 = vmatprep.subr.mxu0 0.0
    %1607 = vmatpush2.msra.mxu0 0.0
    %1608 = vmatprep.subr.mxu0 0.0
    %1609 = vmatpush2.msra.mxu0 0.0
    %1610 = vmatprep.subr.mxu0 0.0
    %1611 = vmatpush2.msra.mxu0 0.0
    %1612 = vmatprep.subr.mxu0 0.0
    %1613 = vmatpush2.msra.mxu0 0.0
    %1614 = vmatprep.subr.mxu0 0.0
    %1615 = vmatpush2.msra.mxu0 0.0
    %1616 = vmatprep.subr.mxu0 0.0
    %1617 = vmatpush2.msra.mxu0 0.0
    %1618 = vmatprep.subr.mxu0 0.0
    %1619 = vmatpush2.msra.mxu0 0.0
    %1620 = vmatprep.subr.mxu0 0.0
    %1621 = vmatpush2.msra.mxu0 0.0
    %1622 = vmatprep.subr.mxu0 0.0
    %1623 = vmatpush2.msra.mxu0 0.0
    %1624 = vmatprep.mubr.f32.mxu0 0.0
    %1625 = vmatmul.mubr.f32.gmra.mxu0 %v1552
    %v1626 = vpop.f32.mrf.mxu0
    %v1627 = vadd.f32 0.0, %v1626
    %v1628 = vpop.f32.mrf.mxu0
    %1629 = vmatprep.mubr.f32.mxu0 0.0
    %1630 = vmatmul.mubr.f32.gmra.mxu0 %v1555
    %v1631 = vpop.f32.mrf.mxu0
    %v1632 = vadd.f32 0.0, %v1631
    %v1633 = vpop.f32.mrf.mxu0
    %1634 = vmatprep.mubr.f32.mxu0 0.0
    %1635 = vmatmul.mubr.f32.gmra.mxu0 %v1558
    %v1636 = vpop.f32.mrf.mxu0
    %v1637 = vadd.f32 0.0, %v1636
    %v1638 = vpop.f32.mrf.mxu0
    %1639 = vdwg.mxu0
    %v1641 = vsel %vm471, %v1627, 0
    %v1644 = vsel %vm471, %v1632, 0
    %v1647 = vsel %vm471, %v1637, 0
    %1649 = vmatprep.subr.mxu0 0.0
    %1650 = vmatpush1.msra.mxu0 0.0
    %1651 = vmatprep.subr.mxu0 0.0
    %1652 = vmatpush1.msra.mxu0 0.0
    %1653 = vmatprep.subr.mxu0 0.0
    %1654 = vmatpush1.msra.mxu0 0.0
    %1655 = vmatprep.subr.mxu0 0.0
    %1656 = vmatpush1.msra.mxu0 0.0
    %1657 = vmatprep.subr.mxu0 0.0
    %1658 = vmatpush1.msra.mxu0 0.0
    %1659 = vmatprep.subr.mxu0 0.0
    %1660 = vmatpush1.msra.mxu0 0.0
    %1661 = vmatprep.subr.mxu0 0.0
    %1662 = vmatpush1.msra.mxu0 0.0
    %1663 = vmatprep.subr.mxu0 0.0
    %1664 = vmatpush1.msra.mxu0 0.0
    %1665 = vmatprep.subr.mxu0 0.0
    %1666 = vmatpush1.msra.mxu0 0.0
    %1667 = vmatprep.subr.mxu0 0.0
    %1668 = vmatpush1.msra.mxu0 0.0
    %1669 = vmatprep.subr.mxu0 0.0
    %1670 = vmatpush1.msra.mxu0 0.0
    %1671 = vmatprep.subr.mxu0 0.0
    %1672 = vmatpush1.msra.mxu0 0.0
    %1673 = vmatprep.subr.mxu0 0.0
    %1674 = vmatpush1.msra.mxu0 0.0
    %1675 = vmatprep.subr.mxu0 0.0
    %1676 = vmatpush1.msra.mxu0 0.0
    %1677 = vmatprep.subr.mxu0 0.0
    %1678 = vmatpush1.msra.mxu0 0.0
    %1679 = vmatprep.subr.mxu0 0.0
    %1680 = vmatpush1.msra.mxu0 %v1233
    %1681 = vmatprep.subr.mxu0 0.0
    %1682 = vmatpush2.msra.mxu0 0.0
    %1683 = vmatprep.subr.mxu0 0.0
    %1684 = vmatpush2.msra.mxu0 0.0
    %1685 = vmatprep.subr.mxu0 0.0
    %1686 = vmatpush2.msra.mxu0 0.0
    %1687 = vmatprep.subr.mxu0 0.0
    %1688 = vmatpush2.msra.mxu0 0.0
    %1689 = vmatprep.subr.mxu0 0.0
    %1690 = vmatpush2.msra.mxu0 0.0
    %1691 = vmatprep.subr.mxu0 0.0
    %1692 = vmatpush2.msra.mxu0 0.0
    %1693 = vmatprep.subr.mxu0 0.0
    %1694 = vmatpush2.msra.mxu0 0.0
    %1695 = vmatprep.subr.mxu0 0.0
    %1696 = vmatpush2.msra.mxu0 0.0
    %1697 = vmatprep.subr.mxu0 0.0
    %1698 = vmatpush2.msra.mxu0 0.0
    %1699 = vmatprep.subr.mxu0 0.0
    %1700 = vmatpush2.msra.mxu0 0.0
    %1701 = vmatprep.subr.mxu0 0.0
    %1702 = vmatpush2.msra.mxu0 0.0
    %1703 = vmatprep.subr.mxu0 0.0
    %1704 = vmatpush2.msra.mxu0 0.0
    %1705 = vmatprep.subr.mxu0 0.0
    %1706 = vmatpush2.msra.mxu0 0.0
    %1707 = vmatprep.subr.mxu0 0.0
    %1708 = vmatpush2.msra.mxu0 0.0
    %1709 = vmatprep.subr.mxu0 0.0
    %1710 = vmatpush2.msra.mxu0 0.0
    %1711 = vmatprep.subr.mxu0 0.0
    %1712 = vmatpush2.msra.mxu0 0.0
    %1713 = vmatprep.mubr.f32.mxu0 0.0
    %1714 = vmatmul.mubr.f32.gmra.mxu0 %v1641
    %v1715 = vpop.f32.mrf.mxu0
    %v1716 = vadd.f32 0.0, %v1715
    %v1717 = vpop.f32.mrf.mxu0
    %1718 = vmatprep.mubr.f32.mxu0 0.0
    %1719 = vmatmul.mubr.f32.gmra.mxu0 %v1644
    %v1720 = vpop.f32.mrf.mxu0
    %v1721 = vadd.f32 0.0, %v1720
    %v1722 = vpop.f32.mrf.mxu0
    %1723 = vmatprep.mubr.f32.mxu0 0.0
    %1724 = vmatmul.mubr.f32.gmra.mxu0 %v1647
    %v1725 = vpop.f32.mrf.mxu0
    %v1726 = vadd.f32 0.0, %v1725
    %v1727 = vpop.f32.mrf.mxu0
    %1728 = vdwg.mxu0
    %v1729 = vadd.f32 %v1529, %v1716
    %v1730 = vadd.f32 %v1530, %v1721
    %v1731 = vadd.f32 %v1531, %v1726
    %s1732 = smax.f32 %s1543, 0.0
    %s1733 = scalar_lea.vmem %s13, 48
    %v1734 = vld [vmem:[%s1733] sm:$0xff]
    %v1735 = vld [vmem:[%s1733 + $0x8] sm:$0xff]
    %v1736 = vld [vmem:[%s1733 + $0x10] sm:$0xf]
    %v1737 = vstv %s1732
    %v1738 = vmul.f32 %v1737, %v1734
    %v1739 = vmul.f32 %v1737, %v1735
    %v1740 = vmul.f32 %v1737, %v1736
    %v1741 = vadd.f32 %v1729, %v1738
    %v1742 = vadd.f32 %v1730, %v1739
    %v1743 = vadd.f32 %v1731, %v1740
    %s1744 = sld [smem:[#allocation24 + $0x3]]
    %v1745 = vstv %s1744
    %v1746 = vmul.f32 %v1118, %v1745
    %s1747 = sld [smem:[#allocation24 + $0x83]]
    %v1748 = vstv %s1747
    %v1749 = vmul.f32 %v1122, %v1748
    %v1750 = vadd.f32 %v1746, %v1749
    %s1751 = sld [smem:[#allocation24 + $0x103]]
    %v1752 = vstv %s1751
    %v1753 = vmul.f32 %v1125, %v1752
    %v1754 = vadd.f32 %v1750, %v1753
    %s1755 = sld [smem:[#allocation25 + $0x3]]
    %v1756 = vstv %s1755
    %v1757 = vadd.f32 %v1754, %v1756
    %v1758 = vmax.f32 %v1757, 0.0
    %1759 = vmatprep.subr.mxu0 0.0
    %1760 = vmatpush1.msra.mxu0 0.0
    %1761 = vmatprep.subr.mxu0 0.0
    %1762 = vmatpush1.msra.mxu0 0.0
    %1763 = vmatprep.subr.mxu0 0.0
    %1764 = vmatpush1.msra.mxu0 0.0
    %1765 = vmatprep.subr.mxu0 0.0
    %1766 = vmatpush1.msra.mxu0 0.0
    %1767 = vmatprep.subr.mxu0 0.0
    %1768 = vmatpush1.msra.mxu0 0.0
    %1769 = vmatprep.subr.mxu0 0.0
    %1770 = vmatpush1.msra.mxu0 0.0
    %1771 = vmatprep.subr.mxu0 0.0
    %1772 = vmatpush1.msra.mxu0 0.0
    %1773 = vmatprep.subr.mxu0 0.0
    %1774 = vmatpush1.msra.mxu0 0.0
    %1775 = vmatprep.subr.mxu0 0.0
    %1776 = vmatpush1.msra.mxu0 0.0
    %1777 = vmatprep.subr.mxu0 0.0
    %1778 = vmatpush1.msra.mxu0 0.0
    %1779 = vmatprep.subr.mxu0 0.0
    %1780 = vmatpush1.msra.mxu0 0.0
    %1781 = vmatprep.subr.mxu0 0.0
    %1782 = vmatpush1.msra.mxu0 0.0
    %1783 = vmatprep.subr.mxu0 0.0
    %1784 = vmatpush1.msra.mxu0 0.0
    %1785 = vmatprep.subr.mxu0 0.0
    %1786 = vmatpush1.msra.mxu0 0.0
    %1787 = vmatprep.subr.mxu0 0.0
    %1788 = vmatpush1.msra.mxu0 0.0
    %1789 = vmatprep.subr.mxu0 0.0
    %1790 = vmatpush1.msra.mxu0 %v1758
    %1791 = vmatprep.subr.mxu0 0.0
    %1792 = vmatpush2.msra.mxu0 0.0
    %1793 = vmatprep.subr.mxu0 0.0
    %1794 = vmatpush2.msra.mxu0 0.0
    %1795 = vmatprep.subr.mxu0 0.0
    %1796 = vmatpush2.msra.mxu0 0.0
    %1797 = vmatprep.subr.mxu0 0.0
    %1798 = vmatpush2.msra.mxu0 0.0
    %1799 = vmatprep.subr.mxu0 0.0
    %1800 = vmatpush2.msra.mxu0 0.0
    %1801 = vmatprep.subr.mxu0 0.0
    %1802 = vmatpush2.msra.mxu0 0.0
    %1803 = vmatprep.subr.mxu0 0.0
    %1804 = vmatpush2.msra.mxu0 0.0
    %1805 = vmatprep.subr.mxu0 0.0
    %1806 = vmatpush2.msra.mxu0 0.0
    %1807 = vmatprep.subr.mxu0 0.0
    %1808 = vmatpush2.msra.mxu0 0.0
    %1809 = vmatprep.subr.mxu0 0.0
    %1810 = vmatpush2.msra.mxu0 0.0
    %1811 = vmatprep.subr.mxu0 0.0
    %1812 = vmatpush2.msra.mxu0 0.0
    %1813 = vmatprep.subr.mxu0 0.0
    %1814 = vmatpush2.msra.mxu0 0.0
    %1815 = vmatprep.subr.mxu0 0.0
    %1816 = vmatpush2.msra.mxu0 0.0
    %1817 = vmatprep.subr.mxu0 0.0
    %1818 = vmatpush2.msra.mxu0 0.0
    %1819 = vmatprep.subr.mxu0 0.0
    %1820 = vmatpush2.msra.mxu0 0.0
    %1821 = vmatprep.subr.mxu0 0.0
    %1822 = vmatpush2.msra.mxu0 0.0
    %1823 = vmatprep.mubr.f32.mxu0 0.0
    %1824 = vmatmul.mubr.f32.gmra.mxu0 %v1552
    %v1825 = vpop.f32.mrf.mxu0
    %v1826 = vadd.f32 0.0, %v1825
    %v1827 = vpop.f32.mrf.mxu0
    %1828 = vmatprep.mubr.f32.mxu0 0.0
    %1829 = vmatmul.mubr.f32.gmra.mxu0 %v1555
    %v1830 = vpop.f32.mrf.mxu0
    %v1831 = vadd.f32 0.0, %v1830
    %v1832 = vpop.f32.mrf.mxu0
    %1833 = vmatprep.mubr.f32.mxu0 0.0
    %1834 = vmatmul.mubr.f32.gmra.mxu0 %v1558
    %v1835 = vpop.f32.mrf.mxu0
    %v1836 = vadd.f32 0.0, %v1835
    %v1837 = vpop.f32.mrf.mxu0
    %1838 = vdwg.mxu0
    %v1840 = vsel %vm471, %v1826, 0
    %v1843 = vsel %vm471, %v1831, 0
    %v1846 = vsel %vm471, %v1836, 0
    %1848 = vmatprep.subr.mxu0 0.0
    %1849 = vmatpush1.msra.mxu0 0.0
    %1850 = vmatprep.subr.mxu0 0.0
    %1851 = vmatpush1.msra.mxu0 0.0
    %1852 = vmatprep.subr.mxu0 0.0
    %1853 = vmatpush1.msra.mxu0 0.0
    %1854 = vmatprep.subr.mxu0 0.0
    %1855 = vmatpush1.msra.mxu0 0.0
    %1856 = vmatprep.subr.mxu0 0.0
    %1857 = vmatpush1.msra.mxu0 0.0
    %1858 = vmatprep.subr.mxu0 0.0
    %1859 = vmatpush1.msra.mxu0 0.0
    %1860 = vmatprep.subr.mxu0 0.0
    %1861 = vmatpush1.msra.mxu0 0.0
    %1862 = vmatprep.subr.mxu0 0.0
    %1863 = vmatpush1.msra.mxu0 0.0
    %1864 = vmatprep.subr.mxu0 0.0
    %1865 = vmatpush1.msra.mxu0 0.0
    %1866 = vmatprep.subr.mxu0 0.0
    %1867 = vmatpush1.msra.mxu0 0.0
    %1868 = vmatprep.subr.mxu0 0.0
    %1869 = vmatpush1.msra.mxu0 0.0
    %1870 = vmatprep.subr.mxu0 0.0
    %1871 = vmatpush1.msra.mxu0 0.0
    %1872 = vmatprep.subr.mxu0 0.0
    %1873 = vmatpush1.msra.mxu0 0.0
    %1874 = vmatprep.subr.mxu0 0.0
    %1875 = vmatpush1.msra.mxu0 0.0
    %1876 = vmatprep.subr.mxu0 0.0
    %1877 = vmatpush1.msra.mxu0 0.0
    %1878 = vmatprep.subr.mxu0 0.0
    %1879 = vmatpush1.msra.mxu0 %v1427
    %1880 = vmatprep.subr.mxu0 0.0
    %1881 = vmatpush2.msra.mxu0 0.0
    %1882 = vmatprep.subr.mxu0 0.0
    %1883 = vmatpush2.msra.mxu0 0.0
    %1884 = vmatprep.subr.mxu0 0.0
    %1885 = vmatpush2.msra.mxu0 0.0
    %1886 = vmatprep.subr.mxu0 0.0
    %1887 = vmatpush2.msra.mxu0 0.0
    %1888 = vmatprep.subr.mxu0 0.0
    %1889 = vmatpush2.msra.mxu0 0.0
    %1890 = vmatprep.subr.mxu0 0.0
    %1891 = vmatpush2.msra.mxu0 0.0
    %1892 = vmatprep.subr.mxu0 0.0
    %1893 = vmatpush2.msra.mxu0 0.0
    %1894 = vmatprep.subr.mxu0 0.0
    %1895 = vmatpush2.msra.mxu0 0.0
    %1896 = vmatprep.subr.mxu0 0.0
    %1897 = vmatpush2.msra.mxu0 0.0
    %1898 = vmatprep.subr.mxu0 0.0
    %1899 = vmatpush2.msra.mxu0 0.0
    %1900 = vmatprep.subr.mxu0 0.0
    %1901 = vmatpush2.msra.mxu0 0.0
    %1902 = vmatprep.subr.mxu0 0.0
    %1903 = vmatpush2.msra.mxu0 0.0
    %1904 = vmatprep.subr.mxu0 0.0
    %1905 = vmatpush2.msra.mxu0 0.0
    %1906 = vmatprep.subr.mxu0 0.0
    %1907 = vmatpush2.msra.mxu0 0.0
    %1908 = vmatprep.subr.mxu0 0.0
    %1909 = vmatpush2.msra.mxu0 0.0
    %1910 = vmatprep.subr.mxu0 0.0
    %1911 = vmatpush2.msra.mxu0 0.0
    %1912 = vmatprep.mubr.f32.mxu0 0.0
    %1913 = vmatmul.mubr.f32.gmra.mxu0 %v1840
    %v1914 = vpop.f32.mrf.mxu0
    %v1915 = vadd.f32 0.0, %v1914
    %v1916 = vpop.f32.mrf.mxu0
    %1917 = vmatprep.mubr.f32.mxu0 0.0
    %1918 = vmatmul.mubr.f32.gmra.mxu0 %v1843
    %v1919 = vpop.f32.mrf.mxu0
    %v1920 = vadd.f32 0.0, %v1919
    %v1921 = vpop.f32.mrf.mxu0
    %1922 = vmatprep.mubr.f32.mxu0 0.0
    %1923 = vmatmul.mubr.f32.gmra.mxu0 %v1846
    %v1924 = vpop.f32.mrf.mxu0
    %v1925 = vadd.f32 0.0, %v1924
    %v1926 = vpop.f32.mrf.mxu0
    %1927 = vdwg.mxu0
    %v1928 = vadd.f32 %v1741, %v1915
    %v1929 = vadd.f32 %v1742, %v1920
    %v1930 = vadd.f32 %v1743, %v1925
    %s1931 = smax.f32 %s1755, 0.0
    %s1932 = scalar_lea.vmem %s13, 72
    %v1933 = vld [vmem:[%s1932] sm:$0xff]
    %v1934 = vld [vmem:[%s1932 + $0x8] sm:$0xff]
    %v1935 = vld [vmem:[%s1932 + $0x10] sm:$0xf]
    %v1936 = vstv %s1931
    %v1937 = vmul.f32 %v1936, %v1933
    %v1938 = vmul.f32 %v1936, %v1934
    %v1939 = vmul.f32 %v1936, %v1935
    %v1940 = vadd.f32 %v1928, %v1937
    %v1941 = vadd.f32 %v1929, %v1938
    %v1942 = vadd.f32 %v1930, %v1939
    %v1943 = vld [vmem:[%s14] sm:$0xff]
    %v1944 = vld [vmem:[%s14 + $0x8] sm:$0xff]
    %v1945 = vld [vmem:[%s14 + $0x10] sm:$0xf]
    %vm1946 = vcmask 162816
    %v1948 = vsel %vm1946, %v1943, 0
    %v1951 = vsel %vm1946, %v1944, 0
    %v1954 = vsel %vm1946, %v1945, 0
    %vm1956 = vcmask 1043456
    %v1958 = vsel %vm1956, %v1942, 0
    %1960 = vmatprep.subr.mxu0 0.0
    %1961 = vmatpush1.msra.mxu0 0.0
    %1962 = vmatprep.subr.mxu0 0.0
    %1963 = vmatpush1.msra.mxu0 0.0
    %1964 = vmatprep.subr.mxu0 0.0
    %1965 = vmatpush1.msra.mxu0 0.0
    %1966 = vmatprep.subr.mxu0 0.0
    %1967 = vmatpush1.msra.mxu0 0.0
    %1968 = vmatprep.subr.mxu0 0.0
    %1969 = vmatpush1.msra.mxu0 0.0
    %1970 = vmatprep.subr.mxu0 0.0
    %1971 = vmatpush1.msra.mxu0 0.0
    %1972 = vmatprep.subr.mxu0 0.0
    %1973 = vmatpush1.msra.mxu0 0.0
    %1974 = vmatprep.subr.mxu0 0.0
    %1975 = vmatpush1.msra.mxu0 0.0
    %1976 = vmatprep.subr.mxu0 0.0
    %1977 = vmatpush1.msra.mxu0 0.0
    %1978 = vmatprep.subr.mxu0 0.0
    %1979 = vmatpush1.msra.mxu0 0.0
    %1980 = vmatprep.subr.mxu0 0.0
    %1981 = vmatpush1.msra.mxu0 0.0
    %1982 = vmatprep.subr.mxu0 0.0
    %1983 = vmatpush1.msra.mxu0 0.0
    %1984 = vmatprep.subr.mxu0 0.0
    %1985 = vmatpush1.msra.mxu0 0.0
    %1986 = vmatprep.subr.mxu0 0.0
    %1987 = vmatpush1.msra.mxu0 %v1958
    %1988 = vmatprep.subr.mxu0 0.0
    %1989 = vmatpush1.msra.mxu0 %v1941
    %1990 = vmatprep.subr.mxu0 0.0
    %1991 = vmatpush1.msra.mxu0 %v1940
    %1992 = vmatprep.subr.mxu0 0.0
    %1993 = vmatpush2.msra.mxu0 0.0
    %1994 = vmatprep.subr.mxu0 0.0
    %1995 = vmatpush2.msra.mxu0 0.0
    %1996 = vmatprep.subr.mxu0 0.0
    %1997 = vmatpush2.msra.mxu0 0.0
    %1998 = vmatprep.subr.mxu0 0.0
    %1999 = vmatpush2.msra.mxu0 0.0
    %2000 = vmatprep.subr.mxu0 0.0
    %2001 = vmatpush2.msra.mxu0 0.0
    %2002 = vmatprep.subr.mxu0 0.0
    %2003 = vmatpush2.msra.mxu0 0.0
    %2004 = vmatprep.subr.mxu0 0.0
    %2005 = vmatpush2.msra.mxu0 0.0
    %2006 = vmatprep.subr.mxu0 0.0
    %2007 = vmatpush2.msra.mxu0 0.0
    %2008 = vmatprep.subr.mxu0 0.0
    %2009 = vmatpush2.msra.mxu0 0.0
    %2010 = vmatprep.subr.mxu0 0.0
    %2011 = vmatpush2.msra.mxu0 0.0
    %2012 = vmatprep.subr.mxu0 0.0
    %2013 = vmatpush2.msra.mxu0 0.0
    %2014 = vmatprep.subr.mxu0 0.0
    %2015 = vmatpush2.msra.mxu0 0.0
    %2016 = vmatprep.subr.mxu0 0.0
    %2017 = vmatpush2.msra.mxu0 0.0
    %2018 = vmatprep.subr.mxu0 0.0
    %2019 = vmatpush2.msra.mxu0 0.0
    %2020 = vmatprep.subr.mxu0 0.0
    %2021 = vmatpush2.msra.mxu0 0.0
    %2022 = vmatprep.subr.mxu0 0.0
    %2023 = vmatpush2.msra.mxu0 0.0
    %2024 = vmatprep.mubr.f32.mxu0 0.0
    %2025 = vmatmul.mubr.f32.gmra.mxu0 %v1948
    %v2026 = vpop.f32.mrf.mxu0
    %v2027 = vadd.f32 0.0, %v2026
    %v2028 = vpop.f32.mrf.mxu0
    %2029 = vmatprep.mubr.f32.mxu0 0.0
    %2030 = vmatmul.mubr.f32.gmra.mxu0 %v1951
    %v2031 = vpop.f32.mrf.mxu0
    %v2032 = vadd.f32 0.0, %v2031
    %v2033 = vpop.f32.mrf.mxu0
    %2034 = vmatprep.mubr.f32.mxu0 0.0
    %2035 = vmatmul.mubr.f32.gmra.mxu0 %v1954
    %v2036 = vpop.f32.mrf.mxu0
    %v2037 = vadd.f32 0.0, %v2036
    %v2038 = vpop.f32.mrf.mxu0
    %2039 = vdwg.mxu0
    %s2040 = scalar_lea.vmem %s14, 24
    %v2041 = vld [vmem:[%s2040] sm:$0xff]
    %v2042 = vld [vmem:[%s2040 + $0x8] sm:$0xff]
    %v2043 = vld [vmem:[%s2040 + $0x10] sm:$0xf]
    %v2045 = vsel %vm1946, %v2027, 0
    %v2048 = vsel %vm1946, %v2032, 0
    %v2051 = vsel %vm1946, %v2037, 0
    %v2054 = vsel %vm1956, %v2043, 0
    %2056 = vmatprep.subr.mxu0 0.0
    %2057 = vmatpush1.msra.mxu0 0.0
    %2058 = vmatprep.subr.mxu0 0.0
    %2059 = vmatpush1.msra.mxu0 0.0
    %2060 = vmatprep.subr.mxu0 0.0
    %2061 = vmatpush1.msra.mxu0 0.0
    %2062 = vmatprep.subr.mxu0 0.0
    %2063 = vmatpush1.msra.mxu0 0.0
    %2064 = vmatprep.subr.mxu0 0.0
    %2065 = vmatpush1.msra.mxu0 0.0
    %2066 = vmatprep.subr.mxu0 0.0
    %2067 = vmatpush1.msra.mxu0 0.0
    %2068 = vmatprep.subr.mxu0 0.0
    %2069 = vmatpush1.msra.mxu0 0.0
    %2070 = vmatprep.subr.mxu0 0.0
    %2071 = vmatpush1.msra.mxu0 0.0
    %2072 = vmatprep.subr.mxu0 0.0
    %2073 = vmatpush1.msra.mxu0 0.0
    %2074 = vmatprep.subr.mxu0 0.0
    %2075 = vmatpush1.msra.mxu0 0.0
    %2076 = vmatprep.subr.mxu0 0.0
    %2077 = vmatpush1.msra.mxu0 0.0
    %2078 = vmatprep.subr.mxu0 0.0
    %2079 = vmatpush1.msra.mxu0 0.0
    %2080 = vmatprep.subr.mxu0 0.0
    %2081 = vmatpush1.msra.mxu0 0.0
    %2082 = vmatprep.subr.mxu0 0.0
    %2083 = vmatpush1.msra.mxu0 %v2054
    %2084 = vmatprep.subr.mxu0 0.0
    %2085 = vmatpush1.msra.mxu0 %v2042
    %2086 = vmatprep.subr.mxu0 0.0
    %2087 = vmatpush1.msra.mxu0 %v2041
    %2088 = vmatprep.subr.mxu0 0.0
    %2089 = vmatpush2.msra.mxu0 0.0
    %2090 = vmatprep.subr.mxu0 0.0
    %2091 = vmatpush2.msra.mxu0 0.0
    %2092 = vmatprep.subr.mxu0 0.0
    %2093 = vmatpush2.msra.mxu0 0.0
    %2094 = vmatprep.subr.mxu0 0.0
    %2095 = vmatpush2.msra.mxu0 0.0
    %2096 = vmatprep.subr.mxu0 0.0
    %2097 = vmatpush2.msra.mxu0 0.0
    %2098 = vmatprep.subr.mxu0 0.0
    %2099 = vmatpush2.msra.mxu0 0.0
    %2100 = vmatprep.subr.mxu0 0.0
    %2101 = vmatpush2.msra.mxu0 0.0
    %2102 = vmatprep.subr.mxu0 0.0
    %2103 = vmatpush2.msra.mxu0 0.0
    %2104 = vmatprep.subr.mxu0 0.0
    %2105 = vmatpush2.msra.mxu0 0.0
    %2106 = vmatprep.subr.mxu0 0.0
    %2107 = vmatpush2.msra.mxu0 0.0
    %2108 = vmatprep.subr.mxu0 0.0
    %2109 = vmatpush2.msra.mxu0 0.0
    %2110 = vmatprep.subr.mxu0 0.0
    %2111 = vmatpush2.msra.mxu0 0.0
    %2112 = vmatprep.subr.mxu0 0.0
    %2113 = vmatpush2.msra.mxu0 0.0
    %2114 = vmatprep.subr.mxu0 0.0
    %2115 = vmatpush2.msra.mxu0 0.0
    %2116 = vmatprep.subr.mxu0 0.0
    %2117 = vmatpush2.msra.mxu0 0.0
    %2118 = vmatprep.subr.mxu0 0.0
    %2119 = vmatpush2.msra.mxu0 0.0
    %2120 = vmatprep.mubr.f32.mxu0 0.0
    %2121 = vmatmul.mubr.f32.gmra.mxu0 %v2045
    %v2122 = vpop.f32.mrf.mxu0
    %v2123 = vadd.f32 0.0, %v2122
    %v2124 = vpop.f32.mrf.mxu0
    %2125 = vmatprep.mubr.f32.mxu0 0.0
    %2126 = vmatmul.mubr.f32.gmra.mxu0 %v2048
    %v2127 = vpop.f32.mrf.mxu0
    %v2128 = vadd.f32 0.0, %v2127
    %v2129 = vpop.f32.mrf.mxu0
    %2130 = vmatprep.mubr.f32.mxu0 0.0
    %2131 = vmatmul.mubr.f32.gmra.mxu0 %v2051
    %v2132 = vpop.f32.mrf.mxu0
    %v2133 = vadd.f32 0.0, %v2132
    %v2134 = vpop.f32.mrf.mxu0
    %2135 = vdwg.mxu0
    %v2136 = vsel %vm1946, %v2123, 0.0
    %2137 = vadd.xlane.f32.xlu0 %v2136
    %v2138 = vpop.xlane.xlu0 %2137
    %v2139 = vsel %vm1946, %v2128, 0.0
    %2140 = vadd.xlane.f32.xlu0 %v2139
    %v2141 = vpop.xlane.xlu0 %2140
    %vm2142 = vcmask 158720
    %v2143 = vsel %vm2142, %v2133, 0.0
    %2144 = vadd.xlane.f32.xlu0 %v2143
    %v2145 = vpop.xlane.xlu0 %2144
    %v2146 = vrcp.pop 20.0
    %v2147 = vmul.f32 %v2138, %v2146
    %v2148 = vmul.f32 %v2141, %v2146
    %v2149 = vmul.f32 %v2145, %v2146
    %v2150 = vadd.f32 %v2147, %v2148
    %v2151 = vsel %vm1956, %v2149, 0.0
    %v2152 = vadd.f32 %v2150, %v2151
    %v2153 = vrot.slane %v2152, 4
    %v2154 = vadd.f32 %v2152, %v2153
    %v2155 = vrot.slane %v2154, 2
    %v2156 = vadd.f32 %v2154, %v2155
    %v2157 = vrot.slane %v2156, 1
    %v2158 = vadd.f32 %v2156, %v2157
    %v2159 = vmul.f32 %v2158, %v2146
    %v2160 = vsel %vm1946, %v2123, -inf
    %2161 = vmax.xlane.f32.xlu0 %v2160
    %v2162 = vpop.xlane.xlu0 %2161
    %v2163 = vsel %vm1946, %v2128, -inf
    %2164 = vmax.xlane.f32.xlu0 %v2163
    %v2165 = vpop.xlane.xlu0 %2164
    %v2166 = vsel %vm2142, %v2133, -inf
    %2167 = vmax.xlane.f32.xlu0 %v2166
    %v2168 = vpop.xlane.xlu0 %2167
    %v2169 = vsel %vm1956, %v2168, -inf
    %v2170 = vmax.f32 %v2162, %v2165
    %v2171 = vmax.f32 %v2170, %v2169
    %v2172 = vrot.slane %v2171, 4
    %v2173 = vmax.f32 %v2171, %v2172
    %v2174 = vrot.slane %v2173, 2
    %v2175 = vmax.f32 %v2173, %v2174
    %v2176 = vrot.slane %v2175, 1
    %v2177 = vmax.f32 %v2175, %v2176
    %s2178 = sld [smem:[#allocation27]]
    %s2179 = sld [smem:[#allocation27 + $0x1]]
    %v2180 = vstv %s2178
    %v2181 = vmul.f32 %v2180, %v2159
    %v2182 = vmax.f32 %v2181, 0.0
    %v2183 = vstv %s2179
    %v2184 = vmul.f32 %v2183, %v2182
    %v2185 = vmul.f32 %v2180, %v2177
    %v2186 = vmax.f32 %v2185, 0.0
    %v2187 = vmul.f32 %v2183, %v2186
    %v2188 = vadd.f32 %v2184, %v2187
    %v2189 = vxor.u32 %v2188, 2147483648
    %v2190 = vmul.f32 %v2189, 1.442695
    %v2191 = vpow.pop %v2190
    %v2192 = vadd.f32 %v2191, 1.0
    %v2193 = vrcp.pop %v2192
    %v2194 = vmul.f32 1.0, %v2193
    %v2195 = vmul.f32 %v2194, %v2123
    %v2196 = vmul.f32 %v2194, %v2128
    %v2197 = vmul.f32 %v2194, %v2133
    %s2198 = sld [smem:[#allocation28]]
    %v2199 = vstv %s2198
    %v2200 = vmul.f32 %v2195, %v2199
    %v2201 = vmul.f32 %v2196, %v2199
    %v2202 = vadd.f32 %v2200, 0.0
    %v2203 = vadd.f32 %v2201, 0.0
    %s2204 = sld [smem:[#allocation28 + $0x1]]
    %v2205 = vstv %s2204
    %v2206 = vmul.f32 %v2195, %v2205
    %v2207 = vmul.f32 %v2196, %v2205
    %2210 = vrot.lane.b32.xlu0 %v2206, 127
    %v2211 = vpop.permute.xlu0 %2210
    %2212 = vrot.lane.b32.xlu0 %v2207, 127
    %v2213 = vpop.permute.xlu0 %2212
    %v2216 = vadd.f32 %v2202, %v2211
    %v2217 = vadd.f32 %v2203, %v2213
    %s2218 = sld [smem:[#allocation28 + $0x2]]
    %v2219 = vstv %s2218
    %v2220 = vmul.f32 %v2195, %v2219
    %v2221 = vmul.f32 %v2196, %v2219
    %2224 = vrot.lane.b32.xlu0 %v2220, 126
    %v2225 = vpop.permute.xlu0 %2224
    %2226 = vrot.lane.b32.xlu0 %v2221, 126
    %v2227 = vpop.permute.xlu0 %2226
    %v2230 = vadd.f32 %v2216, %v2225
    %v2231 = vadd.f32 %v2217, %v2227
    %s2232 = sld [smem:[#allocation28 + $0x3]]
    %v2233 = vstv %s2232
    %v2234 = vmul.f32 %v2195, %v2233
    %v2235 = vmul.f32 %v2196, %v2233
    %2238 = vrot.lane.b32.xlu0 %v2234, 125
    %v2239 = vpop.permute.xlu0 %2238
    %2240 = vrot.lane.b32.xlu0 %v2235, 125
    %v2241 = vpop.permute.xlu0 %2240
    %v2244 = vadd.f32 %v2230, %v2239
    %v2245 = vadd.f32 %v2231, %v2241
    %s2246 = sld [smem:[#allocation28 + $0x4]]
    %v2247 = vstv %s2246
    %v2248 = vmul.f32 %v2195, %v2247
    %v2249 = vmul.f32 %v2196, %v2247
    %2252 = vrot.lane.b32.xlu0 %v2248, 124
    %v2253 = vpop.permute.xlu0 %2252
    %2254 = vrot.lane.b32.xlu0 %v2249, 124
    %v2255 = vpop.permute.xlu0 %2254
    %v2258 = vadd.f32 %v2244, %v2253
    %v2259 = vadd.f32 %v2245, %v2255
    %s2260 = sld [smem:[#allocation28 + $0x5]]
    %v2261 = vstv %s2260
    %v2262 = vmul.f32 %v2195, %v2261
    %v2263 = vmul.f32 %v2196, %v2261
    %2266 = vrot.lane.b32.xlu0 %v2262, 123
    %v2267 = vpop.permute.xlu0 %2266
    %2268 = vrot.lane.b32.xlu0 %v2263, 123
    %v2269 = vpop.permute.xlu0 %2268
    %v2272 = vadd.f32 %v2258, %v2267
    %v2273 = vadd.f32 %v2259, %v2269
    %s2274 = sld [smem:[#allocation28 + $0x6]]
    %v2275 = vstv %s2274
    %v2276 = vmul.f32 %v2195, %v2275
    %v2277 = vmul.f32 %v2196, %v2275
    %vm2280 = vcmask 1046528
    %v2281 = vrot.slane %v2276, 1
    %v2282 = vrot.slane %v2277, 1
    %v2283 = vsel %vm2280, %v2281, %v2282
    %v2286 = vadd.f32 %v2272, %v2283
    %v2287 = vadd.f32 %v2273, %v2282
    %s2288 = sld [smem:[#allocation28 + $0x7]]
    %v2289 = vstv %s2288
    %v2290 = vmul.f32 %v2195, %v2289
    %v2291 = vmul.f32 %v2196, %v2289
    %v2294 = vrot.slane %v2290, 1
    %v2295 = vrot.slane %v2291, 1
    %v2296 = vsel %vm2280, %v2294, %v2295
    %2297 = vrot.lane.b32.xlu0 %v2296, 127
    %v2298 = vpop.permute.xlu0 %2297
    %2299 = vrot.lane.b32.xlu0 %v2295, 127
    %v2300 = vpop.permute.xlu0 %2299
    %v2303 = vadd.f32 %v2286, %v2298
    %v2304 = vadd.f32 %v2287, %v2300
    %s2305 = sld [smem:[#allocation28 + $0x8]]
    %v2306 = vstv %s2305
    %v2307 = vmul.f32 %v2195, %v2306
    %v2308 = vmul.f32 %v2196, %v2306
    %v2311 = vrot.slane %v2307, 1
    %v2312 = vrot.slane %v2308, 1
    %v2313 = vsel %vm2280, %v2311, %v2312
    %2314 = vrot.lane.b32.xlu0 %v2313, 126
    %v2315 = vpop.permute.xlu0 %2314
    %2316 = vrot.lane.b32.xlu0 %v2312, 126
    %v2317 = vpop.permute.xlu0 %2316
    %v2320 = vadd.f32 %v2303, %v2315
    %v2321 = vadd.f32 %v2304, %v2317
    %s2322 = sld [smem:[#allocation28 + $0x9]]
    %v2323 = vstv %s2322
    %v2324 = vmul.f32 %v2195, %v2323
    %v2325 = vmul.f32 %v2196, %v2323
    %v2328 = vrot.slane %v2324, 1
    %v2329 = vrot.slane %v2325, 1
    %v2330 = vsel %vm2280, %v2328, %v2329
    %2331 = vrot.lane.b32.xlu0 %v2330, 125
    %v2332 = vpop.permute.xlu0 %2331
    %2333 = vrot.lane.b32.xlu0 %v2329, 125
    %v2334 = vpop.permute.xlu0 %2333
    %v2337 = vadd.f32 %v2320, %v2332
    %v2338 = vadd.f32 %v2321, %v2334
    %s2339 = sld [smem:[#allocation28 + $0xa]]
    %v2340 = vstv %s2339
    %v2341 = vmul.f32 %v2195, %v2340
    %v2342 = vmul.f32 %v2196, %v2340
    %v2345 = vrot.slane %v2341, 1
    %v2346 = vrot.slane %v2342, 1
    %v2347 = vsel %vm2280, %v2345, %v2346
    %2348 = vrot.lane.b32.xlu0 %v2347, 124
    %v2349 = vpop.permute.xlu0 %2348
    %2350 = vrot.lane.b32.xlu0 %v2346, 124
    %v2351 = vpop.permute.xlu0 %2350
    %v2354 = vadd.f32 %v2337, %v2349
    %v2355 = vadd.f32 %v2338, %v2351
    %s2356 = sld [smem:[#allocation28 + $0xb]]
    %v2357 = vstv %s2356
    %v2358 = vmul.f32 %v2195, %v2357
    %v2359 = vmul.f32 %v2196, %v2357
    %v2362 = vrot.slane %v2358, 1
    %v2363 = vrot.slane %v2359, 1
    %v2364 = vsel %vm2280, %v2362, %v2363
    %2365 = vrot.lane.b32.xlu0 %v2364, 123
    %v2366 = vpop.permute.xlu0 %2365
    %2367 = vrot.lane.b32.xlu0 %v2363, 123
    %v2368 = vpop.permute.xlu0 %2367
    %v2371 = vadd.f32 %v2354, %v2366
    %v2372 = vadd.f32 %v2355, %v2368
    %s2373 = sld [smem:[#allocation28 + $0xc]]
    %v2374 = vstv %s2373
    %v2375 = vmul.f32 %v2195, %v2374
    %v2376 = vmul.f32 %v2196, %v2374
    %v2377 = vmul.f32 %v2197, %v2374
    %vm2381 = vcmask 1045504
    %v2382 = vrot.slane %v2375, 2
    %v2383 = vrot.slane %v2376, 2
    %v2384 = vsel %vm2381, %v2382, %v2383
    %v2385 = vrot.slane %v2377, 2
    %v2386 = vsel %vm2381, %v2383, %v2385
    %v2389 = vadd.f32 %v2371, %v2384
    %v2390 = vadd.f32 %v2372, %v2386
    %s2391 = sld [smem:[#allocation28 + $0xd]]
    %v2392 = vstv %s2391
    %v2393 = vmul.f32 %v2195, %v2392
    %v2394 = vmul.f32 %v2196, %v2392
    %v2395 = vmul.f32 %v2197, %v2392
    %v2399 = vrot.slane %v2393, 2
    %v2400 = vrot.slane %v2394, 2
    %v2401 = vsel %vm2381, %v2399, %v2400
    %v2402 = vrot.slane %v2395, 2
    %v2403 = vsel %vm2381, %v2400, %v2402
    %2404 = vrot.lane.b32.xlu0 %v2401, 127
    %v2405 = vpop.permute.xlu0 %2404
    %2406 = vrot.lane.b32.xlu0 %v2403, 127
    %v2407 = vpop.permute.xlu0 %2406
    %v2410 = vadd.f32 %v2389, %v2405
    %v2411 = vadd.f32 %v2390, %v2407
    %s2412 = sld [smem:[#allocation28 + $0xe]]
    %v2413 = vstv %s2412
    %v2414 = vmul.f32 %v2195, %v2413
    %v2415 = vmul.f32 %v2196, %v2413
    %v2416 = vmul.f32 %v2197, %v2413
    %v2420 = vrot.slane %v2414, 2
    %v2421 = vrot.slane %v2415, 2
    %v2422 = vsel %vm2381, %v2420, %v2421
    %v2423 = vrot.slane %v2416, 2
    %v2424 = vsel %vm2381, %v2421, %v2423
    %2425 = vrot.lane.b32.xlu0 %v2422, 126
    %v2426 = vpop.permute.xlu0 %2425
    %2427 = vrot.lane.b32.xlu0 %v2424, 126
    %v2428 = vpop.permute.xlu0 %2427
    %v2431 = vadd.f32 %v2410, %v2426
    %v2432 = vadd.f32 %v2411, %v2428
    %s2433 = sld [smem:[#allocation28 + $0xf]]
    %v2434 = vstv %s2433
    %v2435 = vmul.f32 %v2195, %v2434
    %v2436 = vmul.f32 %v2196, %v2434
    %v2437 = vmul.f32 %v2197, %v2434
    %v2441 = vrot.slane %v2435, 2
    %v2442 = vrot.slane %v2436, 2
    %v2443 = vsel %vm2381, %v2441, %v2442
    %v2444 = vrot.slane %v2437, 2
    %v2445 = vsel %vm2381, %v2442, %v2444
    %2446 = vrot.lane.b32.xlu0 %v2443, 125
    %v2447 = vpop.permute.xlu0 %2446
    %2448 = vrot.lane.b32.xlu0 %v2445, 125
    %v2449 = vpop.permute.xlu0 %2448
    %v2452 = vadd.f32 %v2431, %v2447
    %v2453 = vadd.f32 %v2432, %v2449
    %s2454 = sld [smem:[#allocation28 + $0x10]]
    %v2455 = vstv %s2454
    %v2456 = vmul.f32 %v2195, %v2455
    %v2457 = vmul.f32 %v2196, %v2455
    %v2458 = vmul.f32 %v2197, %v2455
    %v2462 = vrot.slane %v2456, 2
    %v2463 = vrot.slane %v2457, 2
    %v2464 = vsel %vm2381, %v2462, %v2463
    %v2465 = vrot.slane %v2458, 2
    %v2466 = vsel %vm2381, %v2463, %v2465
    %2467 = vrot.lane.b32.xlu0 %v2464, 124
    %v2468 = vpop.permute.xlu0 %2467
    %2469 = vrot.lane.b32.xlu0 %v2466, 124
    %v2470 = vpop.permute.xlu0 %2469
    %v2473 = vadd.f32 %v2452, %v2468
    %v2474 = vadd.f32 %v2453, %v2470
    %s2475 = sld [smem:[#allocation28 + $0x11]]
    %v2476 = vstv %s2475
    %v2477 = vmul.f32 %v2195, %v2476
    %v2478 = vmul.f32 %v2196, %v2476
    %v2479 = vmul.f32 %v2197, %v2476
    %v2483 = vrot.slane %v2477, 2
    %v2484 = vrot.slane %v2478, 2
    %v2485 = vsel %vm2381, %v2483, %v2484
    %v2486 = vrot.slane %v2479, 2
    %v2487 = vsel %vm2381, %v2484, %v2486
    %2488 = vrot.lane.b32.xlu0 %v2485, 123
    %v2489 = vpop.permute.xlu0 %2488
    %2490 = vrot.lane.b32.xlu0 %v2487, 123
    %v2491 = vpop.permute.xlu0 %2490
    %v2494 = vadd.f32 %v2473, %v2489
    %v2495 = vadd.f32 %v2474, %v2491
    %s2496 = sld [smem:[#allocation28 + $0x12]]
    %v2497 = vstv %s2496
    %v2498 = vmul.f32 %v2195, %v2497
    %v2499 = vmul.f32 %v2196, %v2497
    %v2500 = vmul.f32 %v2197, %v2497
    %vm2504 = vcmask 1044480
    %v2505 = vrot.slane %v2498, 3
    %v2506 = vrot.slane %v2499, 3
    %v2507 = vsel %vm2504, %v2505, %v2506
    %v2508 = vrot.slane %v2500, 3
    %v2509 = vsel %vm2504, %v2506, %v2508
    %v2512 = vadd.f32 %v2494, %v2507
    %v2513 = vadd.f32 %v2495, %v2509
    %s2514 = sld [smem:[#allocation28 + $0x13]]
    %v2515 = vstv %s2514
    %v2516 = vmul.f32 %v2195, %v2515
    %v2517 = vmul.f32 %v2196, %v2515
    %v2518 = vmul.f32 %v2197, %v2515
    %v2522 = vrot.slane %v2516, 3
    %v2523 = vrot.slane %v2517, 3
    %v2524 = vsel %vm2504, %v2522, %v2523
    %v2525 = vrot.slane %v2518, 3
    %v2526 = vsel %vm2504, %v2523, %v2525
    %2527 = vrot.lane.b32.xlu0 %v2524, 127
    %v2528 = vpop.permute.xlu0 %2527
    %2529 = vrot.lane.b32.xlu0 %v2526, 127
    %v2530 = vpop.permute.xlu0 %2529
    %v2533 = vadd.f32 %v2512, %v2528
    %v2534 = vadd.f32 %v2513, %v2530
    %s2535 = sld [smem:[#allocation28 + $0x14]]
    %v2536 = vstv %s2535
    %v2537 = vmul.f32 %v2195, %v2536
    %v2538 = vmul.f32 %v2196, %v2536
    %v2539 = vmul.f32 %v2197, %v2536
    %v2543 = vrot.slane %v2537, 3
    %v2544 = vrot.slane %v2538, 3
    %v2545 = vsel %vm2504, %v2543, %v2544
    %v2546 = vrot.slane %v2539, 3
    %v2547 = vsel %vm2504, %v2544, %v2546
    %2548 = vrot.lane.b32.xlu0 %v2545, 126
    %v2549 = vpop.permute.xlu0 %2548
    %2550 = vrot.lane.b32.xlu0 %v2547, 126
    %v2551 = vpop.permute.xlu0 %2550
    %v2554 = vadd.f32 %v2533, %v2549
    %v2555 = vadd.f32 %v2534, %v2551
    %s2556 = sld [smem:[#allocation28 + $0x15]]
    %v2557 = vstv %s2556
    %v2558 = vmul.f32 %v2195, %v2557
    %v2559 = vmul.f32 %v2196, %v2557
    %v2560 = vmul.f32 %v2197, %v2557
    %v2564 = vrot.slane %v2558, 3
    %v2565 = vrot.slane %v2559, 3
    %v2566 = vsel %vm2504, %v2564, %v2565
    %v2567 = vrot.slane %v2560, 3
    %v2568 = vsel %vm2504, %v2565, %v2567
    %2569 = vrot.lane.b32.xlu0 %v2566, 125
    %v2570 = vpop.permute.xlu0 %2569
    %2571 = vrot.lane.b32.xlu0 %v2568, 125
    %v2572 = vpop.permute.xlu0 %2571
    %v2575 = vadd.f32 %v2554, %v2570
    %v2576 = vadd.f32 %v2555, %v2572
    %s2577 = sld [smem:[#allocation28 + $0x16]]
    %v2578 = vstv %s2577
    %v2579 = vmul.f32 %v2195, %v2578
    %v2580 = vmul.f32 %v2196, %v2578
    %v2581 = vmul.f32 %v2197, %v2578
    %v2585 = vrot.slane %v2579, 3
    %v2586 = vrot.slane %v2580, 3
    %v2587 = vsel %vm2504, %v2585, %v2586
    %v2588 = vrot.slane %v2581, 3
    %v2589 = vsel %vm2504, %v2586, %v2588
    %2590 = vrot.lane.b32.xlu0 %v2587, 124
    %v2591 = vpop.permute.xlu0 %2590
    %2592 = vrot.lane.b32.xlu0 %v2589, 124
    %v2593 = vpop.permute.xlu0 %2592
    %v2596 = vadd.f32 %v2575, %v2591
    %v2597 = vadd.f32 %v2576, %v2593
    %s2598 = sld [smem:[#allocation28 + $0x17]]
    %v2599 = vstv %s2598
    %v2600 = vmul.f32 %v2195, %v2599
    %v2601 = vmul.f32 %v2196, %v2599
    %v2602 = vmul.f32 %v2197, %v2599
    %v2606 = vrot.slane %v2600, 3
    %v2607 = vrot.slane %v2601, 3
    %v2608 = vsel %vm2504, %v2606, %v2607
    %v2609 = vrot.slane %v2602, 3
    %v2610 = vsel %vm2504, %v2607, %v2609
    %2611 = vrot.lane.b32.xlu0 %v2608, 123
    %v2612 = vpop.permute.xlu0 %2611
    %2613 = vrot.lane.b32.xlu0 %v2610, 123
    %v2614 = vpop.permute.xlu0 %2613
    %v2617 = vadd.f32 %v2596, %v2612
    %v2618 = vadd.f32 %v2597, %v2614
    %s2619 = sld [smem:[#allocation28 + $0x18]]
    %v2620 = vstv %s2619
    %v2621 = vmul.f32 %v2195, %v2620
    %v2622 = vmul.f32 %v2196, %v2620
    %v2623 = vmul.f32 %v2197, %v2620
    %v2627 = vrot.slane %v2621, 4
    %v2628 = vrot.slane %v2622, 4
    %v2629 = vsel %vm1956, %v2627, %v2628
    %v2630 = vrot.slane %v2623, 4
    %v2631 = vsel %vm1956, %v2628, %v2630
    %v2634 = vadd.f32 %v2617, %v2629
    %v2635 = vadd.f32 %v2618, %v2631
    %s2636 = sld [smem:[#allocation28 + $0x19]]
    %v2637 = vstv %s2636
    %v2638 = vmul.f32 %v2195, %v2637
    %v2639 = vmul.f32 %v2196, %v2637
    %v2640 = vmul.f32 %v2197, %v2637
    %v2644 = vrot.slane %v2638, 4
    %v2645 = vrot.slane %v2639, 4
    %v2646 = vsel %vm1956, %v2644, %v2645
    %v2647 = vrot.slane %v2640, 4
    %v2648 = vsel %vm1956, %v2645, %v2647
    %2649 = vrot.lane.b32.xlu0 %v2646, 127
    %v2650 = vpop.permute.xlu0 %2649
    %2651 = vrot.lane.b32.xlu0 %v2648, 127
    %v2652 = vpop.permute.xlu0 %2651
    %v2655 = vadd.f32 %v2634, %v2650
    %v2656 = vadd.f32 %v2635, %v2652
    %s2657 = sld [smem:[#allocation28 + $0x1a]]
    %v2658 = vstv %s2657
    %v2659 = vmul.f32 %v2195, %v2658
    %v2660 = vmul.f32 %v2196, %v2658
    %v2661 = vmul.f32 %v2197, %v2658
    %v2665 = vrot.slane %v2659, 4
    %v2666 = vrot.slane %v2660, 4
    %v2667 = vsel %vm1956, %v2665, %v2666
    %v2668 = vrot.slane %v2661, 4
    %v2669 = vsel %vm1956, %v2666, %v2668
    %2670 = vrot.lane.b32.xlu0 %v2667, 126
    %v2671 = vpop.permute.xlu0 %2670
    %2672 = vrot.lane.b32.xlu0 %v2669, 126
    %v2673 = vpop.permute.xlu0 %2672
    %v2676 = vadd.f32 %v2655, %v2671
    %v2677 = vadd.f32 %v2656, %v2673
    %s2678 = sld [smem:[#allocation28 + $0x1b]]
    %v2679 = vstv %s2678
    %v2680 = vmul.f32 %v2195, %v2679
    %v2681 = vmul.f32 %v2196, %v2679
    %v2682 = vmul.f32 %v2197, %v2679
    %v2686 = vrot.slane %v2680, 4
    %v2687 = vrot.slane %v2681, 4
    %v2688 = vsel %vm1956, %v2686, %v2687
    %v2689 = vrot.slane %v2682, 4
    %v2690 = vsel %vm1956, %v2687, %v2689
    %2691 = vrot.lane.b32.xlu0 %v2688, 125
    %v2692 = vpop.permute.xlu0 %2691
    %2693 = vrot.lane.b32.xlu0 %v2690, 125
    %v2694 = vpop.permute.xlu0 %2693
    %v2697 = vadd.f32 %v2676, %v2692
    %v2698 = vadd.f32 %v2677, %v2694
    %s2699 = sld [smem:[#allocation28 + $0x1c]]
    %v2700 = vstv %s2699
    %v2701 = vmul.f32 %v2195, %v2700
    %v2702 = vmul.f32 %v2196, %v2700
    %v2703 = vmul.f32 %v2197, %v2700
    %v2707 = vrot.slane %v2701, 4
    %v2708 = vrot.slane %v2702, 4
    %v2709 = vsel %vm1956, %v2707, %v2708
    %v2710 = vrot.slane %v2703, 4
    %v2711 = vsel %vm1956, %v2708, %v2710
    %2712 = vrot.lane.b32.xlu0 %v2709, 124
    %v2713 = vpop.permute.xlu0 %2712
    %2714 = vrot.lane.b32.xlu0 %v2711, 124
    %v2715 = vpop.permute.xlu0 %2714
    %v2718 = vadd.f32 %v2697, %v2713
    %v2719 = vadd.f32 %v2698, %v2715
    %s2720 = sld [smem:[#allocation28 + $0x1d]]
    %v2721 = vstv %s2720
    %v2722 = vmul.f32 %v2195, %v2721
    %v2723 = vmul.f32 %v2196, %v2721
    %v2724 = vmul.f32 %v2197, %v2721
    %v2728 = vrot.slane %v2722, 4
    %v2729 = vrot.slane %v2723, 4
    %v2730 = vsel %vm1956, %v2728, %v2729
    %v2731 = vrot.slane %v2724, 4
    %v2732 = vsel %vm1956, %v2729, %v2731
    %2733 = vrot.lane.b32.xlu0 %v2730, 123
    %v2734 = vpop.permute.xlu0 %2733
    %2735 = vrot.lane.b32.xlu0 %v2732, 123
    %v2736 = vpop.permute.xlu0 %2735
    %v2739 = vadd.f32 %v2718, %v2734
    %v2740 = vadd.f32 %v2719, %v2736
    %s2741 = sld [smem:[#allocation28 + $0x1e]]
    %v2742 = vstv %s2741
    %v2743 = vmul.f32 %v2195, %v2742
    %v2744 = vmul.f32 %v2196, %v2742
    %v2745 = vmul.f32 %v2197, %v2742
    %vm2749 = vcmask 1042432
    %v2750 = vrot.slane %v2743, 5
    %v2751 = vrot.slane %v2744, 5
    %v2752 = vsel %vm2749, %v2750, %v2751
    %v2753 = vrot.slane %v2745, 5
    %v2754 = vsel %vm2749, %v2751, %v2753
    %v2757 = vadd.f32 %v2739, %v2752
    %v2758 = vadd.f32 %v2740, %v2754
    %s2759 = sld [smem:[#allocation28 + $0x1f]]
    %v2760 = vstv %s2759
    %v2761 = vmul.f32 %v2195, %v2760
    %v2762 = vmul.f32 %v2196, %v2760
    %v2763 = vmul.f32 %v2197, %v2760
    %v2767 = vrot.slane %v2761, 5
    %v2768 = vrot.slane %v2762, 5
    %v2769 = vsel %vm2749, %v2767, %v2768
    %v2770 = vrot.slane %v2763, 5
    %v2771 = vsel %vm2749, %v2768, %v2770
    %2772 = vrot.lane.b32.xlu0 %v2769, 127
    %v2773 = vpop.permute.xlu0 %2772
    %2774 = vrot.lane.b32.xlu0 %v2771, 127
    %v2775 = vpop.permute.xlu0 %2774
    %v2778 = vadd.f32 %v2757, %v2773
    %v2779 = vadd.f32 %v2758, %v2775
    %s2780 = sld [smem:[#allocation28 + $0x20]]
    %v2781 = vstv %s2780
    %v2782 = vmul.f32 %v2195, %v2781
    %v2783 = vmul.f32 %v2196, %v2781
    %v2784 = vmul.f32 %v2197, %v2781
    %v2788 = vrot.slane %v2782, 5
    %v2789 = vrot.slane %v2783, 5
    %v2790 = vsel %vm2749, %v2788, %v2789
    %v2791 = vrot.slane %v2784, 5
    %v2792 = vsel %vm2749, %v2789, %v2791
    %2793 = vrot.lane.b32.xlu0 %v2790, 126
    %v2794 = vpop.permute.xlu0 %2793
    %2795 = vrot.lane.b32.xlu0 %v2792, 126
    %v2796 = vpop.permute.xlu0 %2795
    %v2799 = vadd.f32 %v2778, %v2794
    %v2800 = vadd.f32 %v2779, %v2796
    %s2801 = sld [smem:[#allocation28 + $0x21]]
    %v2802 = vstv %s2801
    %v2803 = vmul.f32 %v2195, %v2802
    %v2804 = vmul.f32 %v2196, %v2802
    %v2805 = vmul.f32 %v2197, %v2802
    %v2809 = vrot.slane %v2803, 5
    %v2810 = vrot.slane %v2804, 5
    %v2811 = vsel %vm2749, %v2809, %v2810
    %v2812 = vrot.slane %v2805, 5
    %v2813 = vsel %vm2749, %v2810, %v2812
    %2814 = vrot.lane.b32.xlu0 %v2811, 125
    %v2815 = vpop.permute.xlu0 %2814
    %2816 = vrot.lane.b32.xlu0 %v2813, 125
    %v2817 = vpop.permute.xlu0 %2816
    %v2820 = vadd.f32 %v2799, %v2815
    %v2821 = vadd.f32 %v2800, %v2817
    %s2822 = sld [smem:[#allocation28 + $0x22]]
    %v2823 = vstv %s2822
    %v2824 = vmul.f32 %v2195, %v2823
    %v2825 = vmul.f32 %v2196, %v2823
    %v2826 = vmul.f32 %v2197, %v2823
    %v2830 = vrot.slane %v2824, 5
    %v2831 = vrot.slane %v2825, 5
    %v2832 = vsel %vm2749, %v2830, %v2831
    %v2833 = vrot.slane %v2826, 5
    %v2834 = vsel %vm2749, %v2831, %v2833
    %2835 = vrot.lane.b32.xlu0 %v2832, 124
    %v2836 = vpop.permute.xlu0 %2835
    %2837 = vrot.lane.b32.xlu0 %v2834, 124
    %v2838 = vpop.permute.xlu0 %2837
    %v2841 = vadd.f32 %v2820, %v2836
    %v2842 = vadd.f32 %v2821, %v2838
    %s2843 = sld [smem:[#allocation28 + $0x23]]
    %v2844 = vstv %s2843
    %v2845 = vmul.f32 %v2195, %v2844
    %v2846 = vmul.f32 %v2196, %v2844
    %v2847 = vmul.f32 %v2197, %v2844
    %v2851 = vrot.slane %v2845, 5
    %v2852 = vrot.slane %v2846, 5
    %v2853 = vsel %vm2749, %v2851, %v2852
    %v2854 = vrot.slane %v2847, 5
    %v2855 = vsel %vm2749, %v2852, %v2854
    %2856 = vrot.lane.b32.xlu0 %v2853, 123
    %v2857 = vpop.permute.xlu0 %2856
    %2858 = vrot.lane.b32.xlu0 %v2855, 123
    %v2859 = vpop.permute.xlu0 %2858
    %v2862 = vadd.f32 %v2841, %v2857
    %v2863 = vadd.f32 %v2842, %v2859
    %s2864 = sld [smem:[#allocation6]]
    %v2865 = vstv %s2864
    %v2866 = vadd.f32 %v2862, %v2865
    %v2867 = vadd.f32 %v2863, %v2865
    %v2868 = vmax.f32 %v2866, 0.0
    %v2869 = vmax.f32 %v2867, 0.0
    %v2870 = vld [vmem:[#allocation21] sm:$0xff]
    %v2871 = vld [vmem:[#allocation21 + $0x8] sm:$0xff]
    %vm2872 = vcmask 121856
    %v2874 = vsel %vm2872, %v2870, 0
    %v2877 = vsel %vm2872, %v2871, 0
    %v2880 = vsel %vm2280, %v2869, 0
    %2882 = vmatprep.subr.mxu0 0.0
    %2883 = vmatpush1.msra.mxu0 0.0
    %2884 = vmatprep.subr.mxu0 0.0
    %2885 = vmatpush1.msra.mxu0 0.0
    %2886 = vmatprep.subr.mxu0 0.0
    %2887 = vmatpush1.msra.mxu0 0.0
    %2888 = vmatprep.subr.mxu0 0.0
    %2889 = vmatpush1.msra.mxu0 0.0
    %2890 = vmatprep.subr.mxu0 0.0
    %2891 = vmatpush1.msra.mxu0 0.0
    %2892 = vmatprep.subr.mxu0 0.0
    %2893 = vmatpush1.msra.mxu0 0.0
    %2894 = vmatprep.subr.mxu0 0.0
    %2895 = vmatpush1.msra.mxu0 0.0
    %2896 = vmatprep.subr.mxu0 0.0
    %2897 = vmatpush1.msra.mxu0 0.0
    %2898 = vmatprep.subr.mxu0 0.0
    %2899 = vmatpush1.msra.mxu0 0.0
    %2900 = vmatprep.subr.mxu0 0.0
    %2901 = vmatpush1.msra.mxu0 0.0
    %2902 = vmatprep.subr.mxu0 0.0
    %2903 = vmatpush1.msra.mxu0 0.0
    %2904 = vmatprep.subr.mxu0 0.0
    %2905 = vmatpush1.msra.mxu0 0.0
    %2906 = vmatprep.subr.mxu0 0.0
    %2907 = vmatpush1.msra.mxu0 0.0
    %2908 = vmatprep.subr.mxu0 0.0
    %2909 = vmatpush1.msra.mxu0 0.0
    %2910 = vmatprep.subr.mxu0 0.0
    %2911 = vmatpush1.msra.mxu0 %v2880
    %2912 = vmatprep.subr.mxu0 0.0
    %2913 = vmatpush1.msra.mxu0 %v2868
    %2914 = vmatprep.subr.mxu0 0.0
    %2915 = vmatpush2.msra.mxu0 0.0
    %2916 = vmatprep.subr.mxu0 0.0
    %2917 = vmatpush2.msra.mxu0 0.0
    %2918 = vmatprep.subr.mxu0 0.0
    %2919 = vmatpush2.msra.mxu0 0.0
    %2920 = vmatprep.subr.mxu0 0.0
    %2921 = vmatpush2.msra.mxu0 0.0
    %2922 = vmatprep.subr.mxu0 0.0
    %2923 = vmatpush2.msra.mxu0 0.0
    %2924 = vmatprep.subr.mxu0 0.0
    %2925 = vmatpush2.msra.mxu0 0.0
    %2926 = vmatprep.subr.mxu0 0.0
    %2927 = vmatpush2.msra.mxu0 0.0
    %2928 = vmatprep.subr.mxu0 0.0
    %2929 = vmatpush2.msra.mxu0 0.0
    %2930 = vmatprep.subr.mxu0 0.0
    %2931 = vmatpush2.msra.mxu0 0.0
    %2932 = vmatprep.subr.mxu0 0.0
    %2933 = vmatpush2.msra.mxu0 0.0
    %2934 = vmatprep.subr.mxu0 0.0
    %2935 = vmatpush2.msra.mxu0 0.0
    %2936 = vmatprep.subr.mxu0 0.0
    %2937 = vmatpush2.msra.mxu0 0.0
    %2938 = vmatprep.subr.mxu0 0.0
    %2939 = vmatpush2.msra.mxu0 0.0
    %2940 = vmatprep.subr.mxu0 0.0
    %2941 = vmatpush2.msra.mxu0 0.0
    %2942 = vmatprep.subr.mxu0 0.0
    %2943 = vmatpush2.msra.mxu0 0.0
    %2944 = vmatprep.subr.mxu0 0.0
    %2945 = vmatpush2.msra.mxu0 0.0
    %2946 = vmatprep.mubr.f32.mxu0 0.0
    %2947 = vmatmul.mubr.f32.gmra.mxu0 %v2874
    %v2948 = vpop.f32.mrf.mxu0
    %v2949 = vadd.f32 0.0, %v2948
    %v2950 = vpop.f32.mrf.mxu0
    %2951 = vmatprep.mubr.f32.mxu0 0.0
    %2952 = vmatmul.mubr.f32.gmra.mxu0 %v2877
    %v2953 = vpop.f32.mrf.mxu0
    %v2954 = vadd.f32 0.0, %v2953
    %v2955 = vpop.f32.mrf.mxu0
    %2956 = vdwg.mxu0
    %v2957 = vld [vmem:[#allocation22] sm:$0xff]
    %v2958 = vld [vmem:[#allocation22 + $0x8] sm:$0xff]
    %v2959 = vld [vmem:[#allocation22 + $0x10] sm:$0x7f]
    %v2960 = vld [vmem:[#allocation22 + $0x18] sm:$0x7f]
    %v2962 = vsel %vm2872, %v2949, 0
    %v2965 = vsel %vm2872, %v2954, 0
    %v2968 = vsel %vm2280, %v2959, 0
    %v2971 = vsel %vm2280, %v2960, 0
    %2973 = vmatprep.subr.mxu0 0.0
    %2974 = vmatpush1.msra.mxu0 0.0
    %2975 = vmatprep.subr.mxu0 0.0
    %2976 = vmatpush1.msra.mxu0 0.0
    %2977 = vmatprep.subr.mxu0 0.0
    %2978 = vmatpush1.msra.mxu0 0.0
    %2979 = vmatprep.subr.mxu0 0.0
    %2980 = vmatpush1.msra.mxu0 0.0
    %2981 = vmatprep.subr.mxu0 0.0
    %2982 = vmatpush1.msra.mxu0 0.0
    %2983 = vmatprep.subr.mxu0 0.0
    %2984 = vmatpush1.msra.mxu0 0.0
    %2985 = vmatprep.subr.mxu0 0.0
    %2986 = vmatpush1.msra.mxu0 0.0
    %2987 = vmatprep.subr.mxu0 0.0
    %2988 = vmatpush1.msra.mxu0 0.0
    %2989 = vmatprep.subr.mxu0 0.0
    %2990 = vmatpush1.msra.mxu0 0.0
    %2991 = vmatprep.subr.mxu0 0.0
    %2992 = vmatpush1.msra.mxu0 0.0
    %2993 = vmatprep.subr.mxu0 0.0
    %2994 = vmatpush1.msra.mxu0 0.0
    %2995 = vmatprep.subr.mxu0 0.0
    %2996 = vmatpush1.msra.mxu0 0.0
    %2997 = vmatprep.subr.mxu0 0.0
    %2998 = vmatpush1.msra.mxu0 0.0
    %2999 = vmatprep.subr.mxu0 0.0
    %3000 = vmatpush1.msra.mxu0 0.0
    %3001 = vmatprep.subr.mxu0 %v2971
    %3002 = vmatpush1.msra.mxu0 %v2968
    %3003 = vmatprep.subr.mxu0 %v2958
    %3004 = vmatpush1.msra.mxu0 %v2957
    %3005 = vmatprep.subr.mxu0 0.0
    %3006 = vmatpush2.msra.mxu0 0.0
    %3007 = vmatprep.subr.mxu0 0.0
    %3008 = vmatpush2.msra.mxu0 0.0
    %3009 = vmatprep.subr.mxu0 0.0
    %3010 = vmatpush2.msra.mxu0 0.0
    %3011 = vmatprep.subr.mxu0 0.0
    %3012 = vmatpush2.msra.mxu0 0.0
    %3013 = vmatprep.subr.mxu0 0.0
    %3014 = vmatpush2.msra.mxu0 0.0
    %3015 = vmatprep.subr.mxu0 0.0
    %3016 = vmatpush2.msra.mxu0 0.0
    %3017 = vmatprep.subr.mxu0 0.0
    %3018 = vmatpush2.msra.mxu0 0.0
    %3019 = vmatprep.subr.mxu0 0.0
    %3020 = vmatpush2.msra.mxu0 0.0
    %3021 = vmatprep.subr.mxu0 0.0
    %3022 = vmatpush2.msra.mxu0 0.0
    %3023 = vmatprep.subr.mxu0 0.0
    %3024 = vmatpush2.msra.mxu0 0.0
    %3025 = vmatprep.subr.mxu0 0.0
    %3026 = vmatpush2.msra.mxu0 0.0
    %3027 = vmatprep.subr.mxu0 0.0
    %3028 = vmatpush2.msra.mxu0 0.0
    %3029 = vmatprep.subr.mxu0 0.0
    %3030 = vmatpush2.msra.mxu0 0.0
    %3031 = vmatprep.subr.mxu0 0.0
    %3032 = vmatpush2.msra.mxu0 0.0
    %3033 = vmatprep.subr.mxu0 0.0
    %3034 = vmatpush2.msra.mxu0 0.0
    %3035 = vmatprep.subr.mxu0 0.0
    %3036 = vmatpush2.msra.mxu0 0.0
    %3037 = vmatprep.mubr.f32.mxu0 0.0
    %3038 = vmatmul.mubr.f32.gmra.mxu0 %v2962
    %v3039 = vpop.f32.mrf.mxu0
    %v3040 = vadd.f32 0.0, %v3039
    %v3041 = vpop.f32.mrf.mxu0
    %v3042 = vadd.f32 0.0, %v3041
    %3043 = vmatprep.mubr.f32.mxu0 0.0
    %3044 = vmatmul.mubr.f32.gmra.mxu0 %v2965
    %v3045 = vpop.f32.mrf.mxu0
    %v3046 = vadd.f32 0.0, %v3045
    %v3047 = vpop.f32.mrf.mxu0
    %v3048 = vadd.f32 0.0, %v3047
    %3049 = vdwg.mxu0
    %v3050 = vmul.f32 %v548, %v3040
    %v3051 = vmul.f32 %v549, %v3042
    %v3052 = vmul.f32 %v550, %v3046
    %v3053 = vmul.f32 %v551, %v3048
    %v3054 = vadd.f32 %v3050, %v3052
    %v3055 = vrot.slane %v3054, 4
    %v3056 = vadd.f32 %v3054, %v3055
    %v3057 = vrot.slane %v3056, 2
    %v3058 = vadd.f32 %v3056, %v3057
    %v3059 = vrot.slane %v3058, 1
    %v3060 = vadd.f32 %v3058, %v3059
    %v3061 = vadd.f32 %v3051, %v3053
    %v3062 = vrot.slane %v3061, 4
    %v3063 = vadd.f32 %v3061, %v3062
    %v3064 = vrot.slane %v3063, 2
    %v3065 = vadd.f32 %v3063, %v3064
    %v3066 = vrot.slane %v3065, 1
    %v3067 = vadd.f32 %v3065, %v3066
    %v3068 = vadd.f32 %v546, %v3060
    %v3069 = vadd.f32 %v547, %v3067
    %v3070 = vlaneseq
    %v3071 = vand.u32 %v3070, 127
    %v3072 = vadd.s32 %v3071, 128
    %vm3073 = vcmp.lt.s32.totalorder %v3071, 0
    %v3074 = vsub.s32 0, %v3071
    %v3075 = vsel %vm3073, %v3074, %v3071
    %v3076 = vshrl.u32 %v3075, 4
    %v3077 = vand.u32 %v3075, 15
    %v3078 = vsub.s32 0, %v3077
    %v3079 = vsel %vm3073, %v3078, %v3077
    %vm3080 = vcmp.lt.s32.totalorder %v3072, 0
    %v3081 = vsub.s32 0, %v3072
    %v3082 = vsel %vm3080, %v3081, %v3072
    %v3083 = vshrl.u32 %v3082, 4
    %v3084 = vand.u32 %v3082, 15
    %v3085 = vsub.s32 0, %v3084
    %v3086 = vsel %vm3080, %v3085, %v3084
    %vm3087 = vcmp.ne.s32.totalorder %v3079, 0
    %vm3088 = vcmp.ne.s32.totalorder %v3086, 0
    %vm3089 = vcmp.lt.s32.totalorder %v3079, 0
    %vm3090 = vcmp.lt.s32.totalorder %v3086, 0
    %vm3091 = vmand %vm3089, %vm3087
    %vm3092 = vmand %vm3090, %vm3088
    %v3093 = vadd.s32 %v3079, 16
    %v3094 = vadd.s32 %v3086, 16
    %v3095 = vsel %vm3091, %v3093, %v3079
    %v3096 = vsel %vm3092, %v3094, %v3086
    %vm3097 = vcmp.ge.s32.totalorder %v3095, 1
    %vm3098 = vcmp.ge.s32.totalorder %v3096, 1
    %v3099 = vsel %vm3097, 1, 0
    %v3100 = vsel %vm3098, 1, 0
    %v3101 = vcvt.s32.f32 %v3099
    %v3102 = vcvt.s32.f32 %v3100
    %vm3103 = vcmp.le.s32.totalorder %v3095, 14
    %vm3104 = vcmp.le.s32.totalorder %v3096, 14
    %v3105 = vsel %vm3103, 1, 0
    %v3106 = vsel %vm3104, 1, 0
    %v3107 = vcvt.s32.f32 %v3105
    %v3108 = vcvt.s32.f32 %v3106
    %v3109 = vlaneseq
    %vm3110 = vcmp.ge.s32.totalorder %v3109, 0
    %vm3111 = vcmp.lt.s32.totalorder %v3109, 512
    %vm3112 = vmand %vm3110, %vm3111
    %3113 = vst.msk [vmem:[#allocation2] sm:$0xf] %vm3112, 0.0
    %v3116 = vcombine.low %v3068, %v3069
    %v3118 = vunpack.c.l.s4 1966171168
    %v3119 = vunpack.c.0.s8 %v3118
    %v3120 = vlaneseq
    %v3121 = vshrl.u32 %v3120, 7
    %v3122 = vsub.s32 %v3119, %v3121
    %v3123 = vrot.slane %v3116, %v3122
    %v3125 = vunpack.c.l.s4 1966171168
    %v3126 = vunpack.c.0.s8 %v3125
    %v3127 = vlaneseq
    %v3128 = vshrl.u32 %v3127, 7
    %v3129 = vsub.s32 %v3126, %v3128
    %v3130 = vrot.slane %v3123, %v3129
    %vm3132 = vcmp.lt.s32.totalorder %v3109, 256
    %vm3133 = vmand %vm3110, %vm3132
    %3134 = vst.msk [vmem:[#allocation2 + $0x1] sm:$0x3] %vm3133, %v3130
    %v3135 = vld [vmem:[%s22] sm:$0xff]
    %v3136 = vld [vmem:[%s22 + $0x8] sm:$0xff]
    %v3137 = vld [vmem:[%s22 + $0x10] sm:$0xff]
    %v3138 = vld [vmem:[%s22 + $0x18] sm:$0xff]
    %v3139 = vld [vmem:[#allocation2] sm:$0x7]
    %v3142 = vcombine.low %v3101, %v3102
    %v3144 = vunpack.c.l.s4 1966171168
    %v3145 = vunpack.c.0.s8 %v3144
    %v3146 = vlaneseq
    %v3147 = vshrl.u32 %v3146, 7
    %v3148 = vsub.s32 %v3145, %v3147
    %v3149 = vrot.slane %v3142, %v3148
    %v3151 = vunpack.c.l.s4 1966171168
    %v3152 = vunpack.c.0.s8 %v3151
    %v3153 = vlaneseq
    %v3154 = vshrl.u32 %v3153, 7
    %v3155 = vsub.s32 %v3152, %v3154
    %v3156 = vrot.slane %v3149, %v3155
    %3157 = vrot.lane.b32.xlu0 %v3156, 111
    %v3158 = vpop.permute.xlu0 %3157
    %v3159 = vrot.slane %v3158, 7
    %vm3160 = vcmask 908288
    %v3161 = vsel %vm3160, %v3159, %v3158
    %v3163 = vmul.f32 %v3139, %v3161
    %3165 = vset.pattern.permute.xlu0 0
    %3166 = vperm.xlu0 %3165, %v3135
    %v3167 = vpop.permute.xlu0 %3166
    %3170 = vset.pattern.permute.xlu0 0
    %3171 = vperm.xlu0 %3170, %v3136
    %v3172 = vpop.permute.xlu0 %3171
    %3175 = vset.pattern.permute.xlu0 0
    %3176 = vperm.xlu0 %3175, %v3137
    %v3177 = vpop.permute.xlu0 %3176
    %3180 = vset.pattern.permute.xlu0 0
    %3181 = vperm.xlu0 %3180, %v3138
    %v3182 = vpop.permute.xlu0 %3181
    %v3185 = vlaneseq
    %v3186 = vshrl.u32 %v3185, 7
    %v3187 = vsub.s32 0, %v3186
    %v3188 = vrot.slane %v3163, %v3187
    %v3189 = vlaneseq
    %v3190 = vshrl.u32 %v3189, 7
    %v3191 = vsub.s32 1, %v3190
    %v3192 = vrot.slane %v3163, %v3191
    %v3193 = vlaneseq
    %v3194 = vshrl.u32 %v3193, 7
    %v3195 = vsub.s32 2, %v3194
    %v3196 = vrot.slane %v3163, %v3195
    %v3200 = vmul.f32 %v3167, %v3188
    %v3201 = vmul.f32 %v3167, %v3192
    %v3202 = vmul.f32 %v3167, %v3196
    %v3203 = vmul.f32 %v3172, %v3188
    %v3204 = vmul.f32 %v3172, %v3192
    %v3205 = vmul.f32 %v3172, %v3196
    %v3206 = vmul.f32 %v3177, %v3188
    %v3207 = vmul.f32 %v3177, %v3192
    %v3208 = vmul.f32 %v3177, %v3196
    %v3209 = vmul.f32 %v3182, %v3188
    %v3210 = vmul.f32 %v3182, %v3192
    %v3211 = vmul.f32 %v3182, %v3196
    %v3212 = vadd.f32 %v3200, 0.0
    %v3213 = vadd.f32 %v3201, 0.0
    %v3214 = vadd.f32 %v3202, 0.0
    %v3215 = vadd.f32 %v3203, 0.0
    %v3216 = vadd.f32 %v3204, 0.0
    %v3217 = vadd.f32 %v3205, 0.0
    %v3218 = vadd.f32 %v3206, 0.0
    %v3219 = vadd.f32 %v3207, 0.0
    %v3220 = vadd.f32 %v3208, 0.0
    %v3221 = vadd.f32 %v3209, 0.0
    %v3222 = vadd.f32 %v3210, 0.0
    %v3223 = vadd.f32 %v3211, 0.0
    %v3224 = vld [vmem:[#allocation2] sm:$0x7]
    %3225 = vset.pattern.permute.xlu0 1
    %3226 = vperm.xlu0 %3225, %v3135
    %v3227 = vpop.permute.xlu0 %3226
    %3229 = vset.pattern.permute.xlu0 1
    %3230 = vperm.xlu0 %3229, %v3136
    %v3231 = vpop.permute.xlu0 %3230
    %3233 = vset.pattern.permute.xlu0 1
    %3234 = vperm.xlu0 %3233, %v3137
    %v3235 = vpop.permute.xlu0 %3234
    %3237 = vset.pattern.permute.xlu0 1
    %3238 = vperm.xlu0 %3237, %v3138
    %v3239 = vpop.permute.xlu0 %3238
    %v3242 = vlaneseq
    %v3243 = vshrl.u32 %v3242, 7
    %v3244 = vsub.s32 0, %v3243
    %v3245 = vrot.slane %v3224, %v3244
    %v3246 = vlaneseq
    %v3247 = vshrl.u32 %v3246, 7
    %v3248 = vsub.s32 1, %v3247
    %v3249 = vrot.slane %v3224, %v3248
    %v3250 = vlaneseq
    %v3251 = vshrl.u32 %v3250, 7
    %v3252 = vsub.s32 2, %v3251
    %v3253 = vrot.slane %v3224, %v3252
    %v3257 = vmul.f32 %v3227, %v3245
    %v3258 = vmul.f32 %v3227, %v3249
    %v3259 = vmul.f32 %v3227, %v3253
    %v3260 = vmul.f32 %v3231, %v3245
    %v3261 = vmul.f32 %v3231, %v3249
    %v3262 = vmul.f32 %v3231, %v3253
    %v3263 = vmul.f32 %v3235, %v3245
    %v3264 = vmul.f32 %v3235, %v3249
    %v3265 = vmul.f32 %v3235, %v3253
    %v3266 = vmul.f32 %v3239, %v3245
    %v3267 = vmul.f32 %v3239, %v3249
    %v3268 = vmul.f32 %v3239, %v3253
    %3281 = vrot.lane.b32.xlu0 %v3257, 127
    %v3282 = vpop.permute.xlu0 %3281
    %3283 = vrot.lane.b32.xlu0 %v3258, 127
    %v3284 = vpop.permute.xlu0 %3283
    %3285 = vrot.lane.b32.xlu0 %v3259, 127
    %v3286 = vpop.permute.xlu0 %3285
    %3287 = vrot.lane.b32.xlu0 %v3260, 127
    %v3288 = vpop.permute.xlu0 %3287
    %3289 = vrot.lane.b32.xlu0 %v3261, 127
    %v3290 = vpop.permute.xlu0 %3289
    %3291 = vrot.lane.b32.xlu0 %v3262, 127
    %v3292 = vpop.permute.xlu0 %3291
    %3293 = vrot.lane.b32.xlu0 %v3263, 127
    %v3294 = vpop.permute.xlu0 %3293
    %3295 = vrot.lane.b32.xlu0 %v3264, 127
    %v3296 = vpop.permute.xlu0 %3295
    %3297 = vrot.lane.b32.xlu0 %v3265, 127
    %v3298 = vpop.permute.xlu0 %3297
    %3299 = vrot.lane.b32.xlu0 %v3266, 127
    %v3300 = vpop.permute.xlu0 %3299
    %3301 = vrot.lane.b32.xlu0 %v3267, 127
    %v3302 = vpop.permute.xlu0 %3301
    %3303 = vrot.lane.b32.xlu0 %v3268, 127
    %v3304 = vpop.permute.xlu0 %3303
    %vm3305 = vcmask 1039360
    %v3306 = vsel %vm3305, %v3282, %v3284
    %v3307 = vsel %vm3305, %v3284, %v3286
    %v3308 = vsel %vm3305, %v3288, %v3290
    %v3309 = vsel %vm3305, %v3290, %v3292
    %v3310 = vsel %vm3305, %v3294, %v3296
    %v3311 = vsel %vm3305, %v3296, %v3298
    %v3312 = vsel %vm3305, %v3300, %v3302
    %v3313 = vsel %vm3305, %v3302, %v3304
    %v3326 = vadd.f32 %v3212, %v3306
    %v3327 = vadd.f32 %v3213, %v3307
    %v3328 = vadd.f32 %v3214, %v3286
    %v3329 = vadd.f32 %v3215, %v3308
    %v3330 = vadd.f32 %v3216, %v3309
    %v3331 = vadd.f32 %v3217, %v3292
    %v3332 = vadd.f32 %v3218, %v3310
    %v3333 = vadd.f32 %v3219, %v3311
    %v3334 = vadd.f32 %v3220, %v3298
    %v3335 = vadd.f32 %v3221, %v3312
    %v3336 = vadd.f32 %v3222, %v3313
    %v3337 = vadd.f32 %v3223, %v3304
    %v3340 = vcombine.low %v3107, %v3108
    %v3342 = vunpack.c.l.s4 1966171168
    %v3343 = vunpack.c.0.s8 %v3342
    %v3344 = vlaneseq
    %v3345 = vshrl.u32 %v3344, 7
    %v3346 = vsub.s32 %v3343, %v3345
    %v3347 = vrot.slane %v3340, %v3346
    %v3349 = vunpack.c.l.s4 1966171168
    %v3350 = vunpack.c.0.s8 %v3349
    %v3351 = vlaneseq
    %v3352 = vshrl.u32 %v3351, 7
    %v3353 = vsub.s32 %v3350, %v3352
    %v3354 = vrot.slane %v3347, %v3353
    %3355 = vrot.lane.b32.xlu0 %v3354, 113
    %v3356 = vpop.permute.xlu0 %3355
    %v3357 = vrot.slane %v3356, 7
    %vm3358 = vcmask 924672
    %v3359 = vsel %vm3358, %v3357, %v3356
    %v3361 = vmul.f32 %v3224, %v3359
    %3362 = vset.pattern.permute.xlu0 2
    %3363 = vperm.xlu0 %3362, %v3135
    %v3364 = vpop.permute.xlu0 %3363
    %3366 = vset.pattern.permute.xlu0 2
    %3367 = vperm.xlu0 %3366, %v3136
    %v3368 = vpop.permute.xlu0 %3367
    %3370 = vset.pattern.permute.xlu0 2
    %3371 = vperm.xlu0 %3370, %v3137
    %v3372 = vpop.permute.xlu0 %3371
    %3374 = vset.pattern.permute.xlu0 2
    %3375 = vperm.xlu0 %3374, %v3138
    %v3376 = vpop.permute.xlu0 %3375
    %v3379 = vlaneseq
    %v3380 = vshrl.u32 %v3379, 7
    %v3381 = vsub.s32 0, %v3380
    %v3382 = vrot.slane %v3361, %v3381
    %v3383 = vlaneseq
    %v3384 = vshrl.u32 %v3383, 7
    %v3385 = vsub.s32 1, %v3384
    %v3386 = vrot.slane %v3361, %v3385
    %v3387 = vlaneseq
    %v3388 = vshrl.u32 %v3387, 7
    %v3389 = vsub.s32 2, %v3388
    %v3390 = vrot.slane %v3361, %v3389
    %v3394 = vmul.f32 %v3364, %v3382
    %v3395 = vmul.f32 %v3364, %v3386
    %v3396 = vmul.f32 %v3364, %v3390
    %v3397 = vmul.f32 %v3368, %v3382
    %v3398 = vmul.f32 %v3368, %v3386
    %v3399 = vmul.f32 %v3368, %v3390
    %v3400 = vmul.f32 %v3372, %v3382
    %v3401 = vmul.f32 %v3372, %v3386
    %v3402 = vmul.f32 %v3372, %v3390
    %v3403 = vmul.f32 %v3376, %v3382
    %v3404 = vmul.f32 %v3376, %v3386
    %v3405 = vmul.f32 %v3376, %v3390
    %3418 = vrot.lane.b32.xlu0 %v3394, 126
    %v3419 = vpop.permute.xlu0 %3418
    %3420 = vrot.lane.b32.xlu0 %v3395, 126
    %v3421 = vpop.permute.xlu0 %3420
    %3422 = vrot.lane.b32.xlu0 %v3396, 126
    %v3423 = vpop.permute.xlu0 %3422
    %3424 = vrot.lane.b32.xlu0 %v3397, 126
    %v3425 = vpop.permute.xlu0 %3424
    %3426 = vrot.lane.b32.xlu0 %v3398, 126
    %v3427 = vpop.permute.xlu0 %3426
    %3428 = vrot.lane.b32.xlu0 %v3399, 126
    %v3429 = vpop.permute.xlu0 %3428
    %3430 = vrot.lane.b32.xlu0 %v3400, 126
    %v3431 = vpop.permute.xlu0 %3430
    %3432 = vrot.lane.b32.xlu0 %v3401, 126
    %v3433 = vpop.permute.xlu0 %3432
    %3434 = vrot.lane.b32.xlu0 %v3402, 126
    %v3435 = vpop.permute.xlu0 %3434
    %3436 = vrot.lane.b32.xlu0 %v3403, 126
    %v3437 = vpop.permute.xlu0 %3436
    %3438 = vrot.lane.b32.xlu0 %v3404, 126
    %v3439 = vpop.permute.xlu0 %3438
    %3440 = vrot.lane.b32.xlu0 %v3405, 126
    %v3441 = vpop.permute.xlu0 %3440
    %vm3442 = vcmask 1031168
    %v3443 = vsel %vm3442, %v3419, %v3421
    %v3444 = vsel %vm3442, %v3421, %v3423
    %v3445 = vsel %vm3442, %v3425, %v3427
    %v3446 = vsel %vm3442, %v3427, %v3429
    %v3447 = vsel %vm3442, %v3431, %v3433
    %v3448 = vsel %vm3442, %v3433, %v3435
    %v3449 = vsel %vm3442, %v3437, %v3439
    %v3450 = vsel %vm3442, %v3439, %v3441
    %v3463 = vadd.f32 %v3326, %v3443
    %v3464 = vadd.f32 %v3327, %v3444
    %v3465 = vadd.f32 %v3328, %v3423
    %v3466 = vadd.f32 %v3329, %v3445
    %v3467 = vadd.f32 %v3330, %v3446
    %v3468 = vadd.f32 %v3331, %v3429
    %v3469 = vadd.f32 %v3332, %v3447
    %v3470 = vadd.f32 %v3333, %v3448
    %v3471 = vadd.f32 %v3334, %v3435
    %v3472 = vadd.f32 %v3335, %v3449
    %v3473 = vadd.f32 %v3336, %v3450
    %v3474 = vadd.f32 %v3337, %v3441
    %v3475 = vld [vmem:[#allocation2] sm:$0x7]
    %3476 = vrot.lane.b32.xlu0 %v3156, 127
    %v3477 = vpop.permute.xlu0 %3476
    %v3478 = vrot.slane %v3477, 7
    %v3479 = vsel %vm3305, %v3478, %v3477
    %v3481 = vmul.f32 %v3475, %v3479
    %3482 = vset.pattern.permute.xlu0 3
    %3483 = vperm.xlu0 %3482, %v3135
    %v3484 = vpop.permute.xlu0 %3483
    %3486 = vset.pattern.permute.xlu0 3
    %3487 = vperm.xlu0 %3486, %v3136
    %v3488 = vpop.permute.xlu0 %3487
    %3490 = vset.pattern.permute.xlu0 3
    %3491 = vperm.xlu0 %3490, %v3137
    %v3492 = vpop.permute.xlu0 %3491
    %3494 = vset.pattern.permute.xlu0 3
    %3495 = vperm.xlu0 %3494, %v3138
    %v3496 = vpop.permute.xlu0 %3495
    %v3499 = vlaneseq
    %v3500 = vshrl.u32 %v3499, 7
    %v3501 = vsub.s32 0, %v3500
    %v3502 = vrot.slane %v3481, %v3501
    %v3503 = vlaneseq
    %v3504 = vshrl.u32 %v3503, 7
    %v3505 = vsub.s32 1, %v3504
    %v3506 = vrot.slane %v3481, %v3505
    %v3507 = vlaneseq
    %v3508 = vshrl.u32 %v3507, 7
    %v3509 = vsub.s32 2, %v3508
    %v3510 = vrot.slane %v3481, %v3509
    %v3514 = vmul.f32 %v3484, %v3502
    %v3515 = vmul.f32 %v3484, %v3506
    %v3516 = vmul.f32 %v3484, %v3510
    %v3517 = vmul.f32 %v3488, %v3502
    %v3518 = vmul.f32 %v3488, %v3506
    %v3519 = vmul.f32 %v3488, %v3510
    %v3520 = vmul.f32 %v3492, %v3502
    %v3521 = vmul.f32 %v3492, %v3506
    %v3522 = vmul.f32 %v3492, %v3510
    %v3523 = vmul.f32 %v3496, %v3502
    %v3524 = vmul.f32 %v3496, %v3506
    %v3525 = vmul.f32 %v3496, %v3510
    %3538 = vrot.lane.b32.xlu0 %v3514, 112
    %v3539 = vpop.permute.xlu0 %3538
    %3540 = vrot.lane.b32.xlu0 %v3515, 112
    %v3541 = vpop.permute.xlu0 %3540
    %3542 = vrot.lane.b32.xlu0 %v3516, 112
    %v3543 = vpop.permute.xlu0 %3542
    %3544 = vrot.lane.b32.xlu0 %v3517, 112
    %v3545 = vpop.permute.xlu0 %3544
    %3546 = vrot.lane.b32.xlu0 %v3518, 112
    %v3547 = vpop.permute.xlu0 %3546
    %3548 = vrot.lane.b32.xlu0 %v3519, 112
    %v3549 = vpop.permute.xlu0 %3548
    %3550 = vrot.lane.b32.xlu0 %v3520, 112
    %v3551 = vpop.permute.xlu0 %3550
    %3552 = vrot.lane.b32.xlu0 %v3521, 112
    %v3553 = vpop.permute.xlu0 %3552
    %3554 = vrot.lane.b32.xlu0 %v3522, 112
    %v3555 = vpop.permute.xlu0 %3554
    %3556 = vrot.lane.b32.xlu0 %v3523, 112
    %v3557 = vpop.permute.xlu0 %3556
    %3558 = vrot.lane.b32.xlu0 %v3524, 112
    %v3559 = vpop.permute.xlu0 %3558
    %3560 = vrot.lane.b32.xlu0 %v3525, 112
    %v3561 = vpop.permute.xlu0 %3560
    %vm3562 = vcmask 916480
    %v3563 = vsel %vm3562, %v3539, %v3541
    %v3564 = vsel %vm3562, %v3541, %v3543
    %v3565 = vsel %vm3562, %v3545, %v3547
    %v3566 = vsel %vm3562, %v3547, %v3549
    %v3567 = vsel %vm3562, %v3551, %v3553
    %v3568 = vsel %vm3562, %v3553, %v3555
    %v3569 = vsel %vm3562, %v3557, %v3559
    %v3570 = vsel %vm3562, %v3559, %v3561
    %v3583 = vadd.f32 %v3463, %v3563
    %v3584 = vadd.f32 %v3464, %v3564
    %v3585 = vadd.f32 %v3465, %v3543
    %v3586 = vadd.f32 %v3466, %v3565
    %v3587 = vadd.f32 %v3467, %v3566
    %v3588 = vadd.f32 %v3468, %v3549
    %v3589 = vadd.f32 %v3469, %v3567
    %v3590 = vadd.f32 %v3470, %v3568
    %v3591 = vadd.f32 %v3471, %v3555
    %v3592 = vadd.f32 %v3472, %v3569
    %v3593 = vadd.f32 %v3473, %v3570
    %v3594 = vadd.f32 %v3474, %v3561
    %v3595 = vld [vmem:[#allocation2 + $0x1] sm:$0x3]
    %3596 = vset.pattern.permute.xlu0 4
    %3597 = vperm.xlu0 %3596, %v3135
    %v3598 = vpop.permute.xlu0 %3597
    %3600 = vset.pattern.permute.xlu0 4
    %3601 = vperm.xlu0 %3600, %v3136
    %v3602 = vpop.permute.xlu0 %3601
    %3604 = vset.pattern.permute.xlu0 4
    %3605 = vperm.xlu0 %3604, %v3137
    %v3606 = vpop.permute.xlu0 %3605
    %3608 = vset.pattern.permute.xlu0 4
    %3609 = vperm.xlu0 %3608, %v3138
    %v3610 = vpop.permute.xlu0 %3609
    %v3613 = vlaneseq
    %v3614 = vshrl.u32 %v3613, 7
    %v3615 = vsub.s32 0, %v3614
    %v3616 = vrot.slane %v3595, %v3615
    %v3617 = vlaneseq
    %v3618 = vshrl.u32 %v3617, 7
    %v3619 = vsub.s32 1, %v3618
    %v3620 = vrot.slane %v3595, %v3619
    %v3623 = vmul.f32 %v3598, %v3616
    %v3624 = vmul.f32 %v3598, %v3620
    %v3625 = vmul.f32 %v3602, %v3616
    %v3626 = vmul.f32 %v3602, %v3620
    %v3627 = vmul.f32 %v3606, %v3616
    %v3628 = vmul.f32 %v3606, %v3620
    %v3629 = vmul.f32 %v3610, %v3616
    %v3630 = vmul.f32 %v3610, %v3620
    %3639 = vrot.lane.b32.xlu0 %v3623, 111
    %v3640 = vpop.permute.xlu0 %3639
    %3641 = vrot.lane.b32.xlu0 %v3624, 111
    %v3642 = vpop.permute.xlu0 %3641
    %3643 = vrot.lane.b32.xlu0 %v3625, 111
    %v3644 = vpop.permute.xlu0 %3643
    %3645 = vrot.lane.b32.xlu0 %v3626, 111
    %v3646 = vpop.permute.xlu0 %3645
    %3647 = vrot.lane.b32.xlu0 %v3627, 111
    %v3648 = vpop.permute.xlu0 %3647
    %3649 = vrot.lane.b32.xlu0 %v3628, 111
    %v3650 = vpop.permute.xlu0 %3649
    %3651 = vrot.lane.b32.xlu0 %v3629, 111
    %v3652 = vpop.permute.xlu0 %3651
    %3653 = vrot.lane.b32.xlu0 %v3630, 111
    %v3654 = vpop.permute.xlu0 %3653
    %v3655 = vsel %vm3160, %v3640, %v3642
    %v3656 = vsel %vm3160, %v3644, %v3646
    %v3657 = vsel %vm3160, %v3648, %v3650
    %v3658 = vsel %vm3160, %v3652, %v3654
    %v3671 = vadd.f32 %v3583, %v3640
    %v3672 = vadd.f32 %v3584, %v3655
    %v3673 = vadd.f32 %v3585, %v3642
    %v3674 = vadd.f32 %v3586, %v3644
    %v3675 = vadd.f32 %v3587, %v3656
    %v3676 = vadd.f32 %v3588, %v3646
    %v3677 = vadd.f32 %v3589, %v3648
    %v3678 = vadd.f32 %v3590, %v3657
    %v3679 = vadd.f32 %v3591, %v3650
    %v3680 = vadd.f32 %v3592, %v3652
    %v3681 = vadd.f32 %v3593, %v3658
    %v3682 = vadd.f32 %v3594, %v3654
    %v3683 = vld [vmem:[#allocation2 + $0x1] sm:$0x7]
    %3684 = vrot.lane.b32.xlu0 %v3354, 1
    %v3685 = vpop.permute.xlu0 %3684
    %v3686 = vrot.slane %v3685, 7
    %vm3687 = vcmask 7168
    %v3688 = vsel %vm3687, %v3686, %v3685
    %v3690 = vmul.f32 %v3683, %v3688
    %3691 = vset.pattern.permute.xlu0 5
    %3692 = vperm.xlu0 %3691, %v3135
    %v3693 = vpop.permute.xlu0 %3692
    %3695 = vset.pattern.permute.xlu0 5
    %3696 = vperm.xlu0 %3695, %v3136
    %v3697 = vpop.permute.xlu0 %3696
    %3699 = vset.pattern.permute.xlu0 5
    %3700 = vperm.xlu0 %3699, %v3137
    %v3701 = vpop.permute.xlu0 %3700
    %3703 = vset.pattern.permute.xlu0 5
    %3704 = vperm.xlu0 %3703, %v3138
    %v3705 = vpop.permute.xlu0 %3704
    %v3708 = vlaneseq
    %v3709 = vshrl.u32 %v3708, 7
    %v3710 = vsub.s32 0, %v3709
    %v3711 = vrot.slane %v3690, %v3710
    %v3712 = vlaneseq
    %v3713 = vshrl.u32 %v3712, 7
    %v3714 = vsub.s32 1, %v3713
    %v3715 = vrot.slane %v3690, %v3714
    %v3716 = vlaneseq
    %v3717 = vshrl.u32 %v3716, 7
    %v3718 = vsub.s32 2, %v3717
    %v3719 = vrot.slane %v3690, %v3718
    %v3723 = vmul.f32 %v3693, %v3711
    %v3724 = vmul.f32 %v3693, %v3715
    %v3725 = vmul.f32 %v3693, %v3719
    %v3726 = vmul.f32 %v3697, %v3711
    %v3727 = vmul.f32 %v3697, %v3715
    %v3728 = vmul.f32 %v3697, %v3719
    %v3729 = vmul.f32 %v3701, %v3711
    %v3730 = vmul.f32 %v3701, %v3715
    %v3731 = vmul.f32 %v3701, %v3719
    %v3732 = vmul.f32 %v3705, %v3711
    %v3733 = vmul.f32 %v3705, %v3715
    %v3734 = vmul.f32 %v3705, %v3719
    %3747 = vrot.lane.b32.xlu0 %v3723, 110
    %v3748 = vpop.permute.xlu0 %3747
    %3749 = vrot.lane.b32.xlu0 %v3724, 110
    %v3750 = vpop.permute.xlu0 %3749
    %3751 = vrot.lane.b32.xlu0 %v3725, 110
    %v3752 = vpop.permute.xlu0 %3751
    %3753 = vrot.lane.b32.xlu0 %v3726, 110
    %v3754 = vpop.permute.xlu0 %3753
    %3755 = vrot.lane.b32.xlu0 %v3727, 110
    %v3756 = vpop.permute.xlu0 %3755
    %3757 = vrot.lane.b32.xlu0 %v3728, 110
    %v3758 = vpop.permute.xlu0 %3757
    %3759 = vrot.lane.b32.xlu0 %v3729, 110
    %v3760 = vpop.permute.xlu0 %3759
    %3761 = vrot.lane.b32.xlu0 %v3730, 110
    %v3762 = vpop.permute.xlu0 %3761
    %3763 = vrot.lane.b32.xlu0 %v3731, 110
    %v3764 = vpop.permute.xlu0 %3763
    %3765 = vrot.lane.b32.xlu0 %v3732, 110
    %v3766 = vpop.permute.xlu0 %3765
    %3767 = vrot.lane.b32.xlu0 %v3733, 110
    %v3768 = vpop.permute.xlu0 %3767
    %3769 = vrot.lane.b32.xlu0 %v3734, 110
    %v3770 = vpop.permute.xlu0 %3769
    %vm3771 = vcmask 900096
    %v3772 = vsel %vm3771, %v3748, %v3750
    %v3773 = vsel %vm3771, %v3750, %v3752
    %v3774 = vsel %vm3771, %v3754, %v3756
    %v3775 = vsel %vm3771, %v3756, %v3758
    %v3776 = vsel %vm3771, %v3760, %v3762
    %v3777 = vsel %vm3771, %v3762, %v3764
    %v3778 = vsel %vm3771, %v3766, %v3768
    %v3779 = vsel %vm3771, %v3768, %v3770
    %v3792 = vadd.f32 %v3671, %v3748
    %v3793 = vadd.f32 %v3672, %v3772
    %v3794 = vadd.f32 %v3673, %v3773
    %v3795 = vadd.f32 %v3674, %v3754
    %v3796 = vadd.f32 %v3675, %v3774
    %v3797 = vadd.f32 %v3676, %v3775
    %v3798 = vadd.f32 %v3677, %v3760
    %v3799 = vadd.f32 %v3678, %v3776
    %v3800 = vadd.f32 %v3679, %v3777
    %v3801 = vadd.f32 %v3680, %v3766
    %v3802 = vadd.f32 %v3681, %v3778
    %v3803 = vadd.f32 %v3682, %v3779
    %v3804 = vld [vmem:[#allocation2 + $0x1] sm:$0x7]
    %3805 = vrot.lane.b32.xlu0 %v3156, 15
    %v3806 = vpop.permute.xlu0 %3805
    %v3807 = vrot.slane %v3806, 7
    %v3808 = vsel %vm2872, %v3807, %v3806
    %v3810 = vmul.f32 %v3804, %v3808
    %3811 = vset.pattern.permute.xlu0 6
    %3812 = vperm.xlu0 %3811, %v3135
    %v3813 = vpop.permute.xlu0 %3812
    %3815 = vset.pattern.permute.xlu0 6
    %3816 = vperm.xlu0 %3815, %v3136
    %v3817 = vpop.permute.xlu0 %3816
    %3819 = vset.pattern.permute.xlu0 6
    %3820 = vperm.xlu0 %3819, %v3137
    %v3821 = vpop.permute.xlu0 %3820
    %3823 = vset.pattern.permute.xlu0 6
    %3824 = vperm.xlu0 %3823, %v3138
    %v3825 = vpop.permute.xlu0 %3824
    %v3828 = vlaneseq
    %v3829 = vshrl.u32 %v3828, 7
    %v3830 = vsub.s32 0, %v3829
    %v3831 = vrot.slane %v3810, %v3830
    %v3832 = vlaneseq
    %v3833 = vshrl.u32 %v3832, 7
    %v3834 = vsub.s32 1, %v3833
    %v3835 = vrot.slane %v3810, %v3834
    %v3836 = vlaneseq
    %v3837 = vshrl.u32 %v3836, 7
    %v3838 = vsub.s32 2, %v3837
    %v3839 = vrot.slane %v3810, %v3838
    %v3843 = vmul.f32 %v3813, %v3831
    %v3844 = vmul.f32 %v3813, %v3835
    %v3845 = vmul.f32 %v3813, %v3839
    %v3846 = vmul.f32 %v3817, %v3831
    %v3847 = vmul.f32 %v3817, %v3835
    %v3848 = vmul.f32 %v3817, %v3839
    %v3849 = vmul.f32 %v3821, %v3831
    %v3850 = vmul.f32 %v3821, %v3835
    %v3851 = vmul.f32 %v3821, %v3839
    %v3852 = vmul.f32 %v3825, %v3831
    %v3853 = vmul.f32 %v3825, %v3835
    %v3854 = vmul.f32 %v3825, %v3839
    %3867 = vrot.lane.b32.xlu0 %v3843, 96
    %v3868 = vpop.permute.xlu0 %3867
    %3869 = vrot.lane.b32.xlu0 %v3844, 96
    %v3870 = vpop.permute.xlu0 %3869
    %3871 = vrot.lane.b32.xlu0 %v3845, 96
    %v3872 = vpop.permute.xlu0 %3871
    %3873 = vrot.lane.b32.xlu0 %v3846, 96
    %v3874 = vpop.permute.xlu0 %3873
    %3875 = vrot.lane.b32.xlu0 %v3847, 96
    %v3876 = vpop.permute.xlu0 %3875
    %3877 = vrot.lane.b32.xlu0 %v3848, 96
    %v3878 = vpop.permute.xlu0 %3877
    %3879 = vrot.lane.b32.xlu0 %v3849, 96
    %v3880 = vpop.permute.xlu0 %3879
    %3881 = vrot.lane.b32.xlu0 %v3850, 96
    %v3882 = vpop.permute.xlu0 %3881
    %3883 = vrot.lane.b32.xlu0 %v3851, 96
    %v3884 = vpop.permute.xlu0 %3883
    %3885 = vrot.lane.b32.xlu0 %v3852, 96
    %v3886 = vpop.permute.xlu0 %3885
    %3887 = vrot.lane.b32.xlu0 %v3853, 96
    %v3888 = vpop.permute.xlu0 %3887
    %3889 = vrot.lane.b32.xlu0 %v3854, 96
    %v3890 = vpop.permute.xlu0 %3889
    %vm3891 = vcmask 785408
    %v3892 = vsel %vm3891, %v3868, %v3870
    %v3893 = vsel %vm3891, %v3870, %v3872
    %v3894 = vsel %vm3891, %v3874, %v3876
    %v3895 = vsel %vm3891, %v3876, %v3878
    %v3896 = vsel %vm3891, %v3880, %v3882
    %v3897 = vsel %vm3891, %v3882, %v3884
    %v3898 = vsel %vm3891, %v3886, %v3888
    %v3899 = vsel %vm3891, %v3888, %v3890
    %v3912 = vadd.f32 %v3792, %v3868
    %v3913 = vadd.f32 %v3793, %v3892
    %v3914 = vadd.f32 %v3794, %v3893
    %v3915 = vadd.f32 %v3795, %v3874
    %v3916 = vadd.f32 %v3796, %v3894
    %v3917 = vadd.f32 %v3797, %v3895
    %v3918 = vadd.f32 %v3798, %v3880
    %v3919 = vadd.f32 %v3799, %v3896
    %v3920 = vadd.f32 %v3800, %v3897
    %v3921 = vadd.f32 %v3801, %v3886
    %v3922 = vadd.f32 %v3802, %v3898
    %v3923 = vadd.f32 %v3803, %v3899
    %v3924 = vld [vmem:[#allocation2 + $0x1] sm:$0x7]
    %3925 = vset.pattern.permute.xlu0 7
    %3926 = vperm.xlu0 %3925, %v3135
    %v3927 = vpop.permute.xlu0 %3926
    %3929 = vset.pattern.permute.xlu0 7
    %3930 = vperm.xlu0 %3929, %v3136
    %v3931 = vpop.permute.xlu0 %3930
    %3933 = vset.pattern.permute.xlu0 7
    %3934 = vperm.xlu0 %3933, %v3137
    %v3935 = vpop.permute.xlu0 %3934
    %3937 = vset.pattern.permute.xlu0 7
    %3938 = vperm.xlu0 %3937, %v3138
    %v3939 = vpop.permute.xlu0 %3938
    %v3942 = vlaneseq
    %v3943 = vshrl.u32 %v3942, 7
    %v3944 = vsub.s32 0, %v3943
    %v3945 = vrot.slane %v3924, %v3944
    %v3946 = vlaneseq
    %v3947 = vshrl.u32 %v3946, 7
    %v3948 = vsub.s32 1, %v3947
    %v3949 = vrot.slane %v3924, %v3948
    %v3950 = vlaneseq
    %v3951 = vshrl.u32 %v3950, 7
    %v3952 = vsub.s32 2, %v3951
    %v3953 = vrot.slane %v3924, %v3952
    %v3957 = vmul.f32 %v3927, %v3945
    %v3958 = vmul.f32 %v3927, %v3949
    %v3959 = vmul.f32 %v3927, %v3953
    %v3960 = vmul.f32 %v3931, %v3945
    %v3961 = vmul.f32 %v3931, %v3949
    %v3962 = vmul.f32 %v3931, %v3953
    %v3963 = vmul.f32 %v3935, %v3945
    %v3964 = vmul.f32 %v3935, %v3949
    %v3965 = vmul.f32 %v3935, %v3953
    %v3966 = vmul.f32 %v3939, %v3945
    %v3967 = vmul.f32 %v3939, %v3949
    %v3968 = vmul.f32 %v3939, %v3953
    %3981 = vrot.lane.b32.xlu0 %v3957, 95
    %v3982 = vpop.permute.xlu0 %3981
    %3983 = vrot.lane.b32.xlu0 %v3958, 95
    %v3984 = vpop.permute.xlu0 %3983
    %3985 = vrot.lane.b32.xlu0 %v3959, 95
    %v3986 = vpop.permute.xlu0 %3985
    %3987 = vrot.lane.b32.xlu0 %v3960, 95
    %v3988 = vpop.permute.xlu0 %3987
    %3989 = vrot.lane.b32.xlu0 %v3961, 95
    %v3990 = vpop.permute.xlu0 %3989
    %3991 = vrot.lane.b32.xlu0 %v3962, 95
    %v3992 = vpop.permute.xlu0 %3991
    %3993 = vrot.lane.b32.xlu0 %v3963, 95
    %v3994 = vpop.permute.xlu0 %3993
    %3995 = vrot.lane.b32.xlu0 %v3964, 95
    %v3996 = vpop.permute.xlu0 %3995
    %3997 = vrot.lane.b32.xlu0 %v3965, 95
    %v3998 = vpop.permute.xlu0 %3997
    %3999 = vrot.lane.b32.xlu0 %v3966, 95
    %v4000 = vpop.permute.xlu0 %3999
    %4001 = vrot.lane.b32.xlu0 %v3967, 95
    %v4002 = vpop.permute.xlu0 %4001
    %4003 = vrot.lane.b32.xlu0 %v3968, 95
    %v4004 = vpop.permute.xlu0 %4003
    %vm4005 = vcmask 777216
    %v4006 = vsel %vm4005, %v3982, %v3984
    %v4007 = vsel %vm4005, %v3984, %v3986
    %v4008 = vsel %vm4005, %v3988, %v3990
    %v4009 = vsel %vm4005, %v3990, %v3992
    %v4010 = vsel %vm4005, %v3994, %v3996
    %v4011 = vsel %vm4005, %v3996, %v3998
    %v4012 = vsel %vm4005, %v4000, %v4002
    %v4013 = vsel %vm4005, %v4002, %v4004
    %v4026 = vadd.f32 %v3912, %v3982
    %v4027 = vadd.f32 %v3913, %v4006
    %v4028 = vadd.f32 %v3914, %v4007
    %v4029 = vadd.f32 %v3915, %v3988
    %v4030 = vadd.f32 %v3916, %v4008
    %v4031 = vadd.f32 %v3917, %v4009
    %v4032 = vadd.f32 %v3918, %v3994
    %v4033 = vadd.f32 %v3919, %v4010
    %v4034 = vadd.f32 %v3920, %v4011
    %v4035 = vadd.f32 %v3921, %v4000
    %v4036 = vadd.f32 %v3922, %v4012
    %v4037 = vadd.f32 %v3923, %v4013
    %4038 = vrot.lane.b32.xlu0 %v3354, 17
    %v4039 = vpop.permute.xlu0 %4038
    %v4040 = vrot.slane %v4039, 7
    %vm4041 = vcmask 138240
    %v4042 = vsel %vm4041, %v4040, %v4039
    %v4044 = vmul.f32 %v3924, %v4042
    %4045 = vset.pattern.permute.xlu0 8
    %4046 = vperm.xlu0 %4045, %v3135
    %v4047 = vpop.permute.xlu0 %4046
    %4049 = vset.pattern.permute.xlu0 8
    %4050 = vperm.xlu0 %4049, %v3136
    %v4051 = vpop.permute.xlu0 %4050
    %4053 = vset.pattern.permute.xlu0 8
    %4054 = vperm.xlu0 %4053, %v3137
    %v4055 = vpop.permute.xlu0 %4054
    %4057 = vset.pattern.permute.xlu0 8
    %4058 = vperm.xlu0 %4057, %v3138
    %v4059 = vpop.permute.xlu0 %4058
    %v4062 = vlaneseq
    %v4063 = vshrl.u32 %v4062, 7
    %v4064 = vsub.s32 0, %v4063
    %v4065 = vrot.slane %v4044, %v4064
    %v4066 = vlaneseq
    %v4067 = vshrl.u32 %v4066, 7
    %v4068 = vsub.s32 1, %v4067
    %v4069 = vrot.slane %v4044, %v4068
    %v4070 = vlaneseq
    %v4071 = vshrl.u32 %v4070, 7
    %v4072 = vsub.s32 2, %v4071
    %v4073 = vrot.slane %v4044, %v4072
    %v4077 = vmul.f32 %v4047, %v4065
    %v4078 = vmul.f32 %v4047, %v4069
    %v4079 = vmul.f32 %v4047, %v4073
    %v4080 = vmul.f32 %v4051, %v4065
    %v4081 = vmul.f32 %v4051, %v4069
    %v4082 = vmul.f32 %v4051, %v4073
    %v4083 = vmul.f32 %v4055, %v4065
    %v4084 = vmul.f32 %v4055, %v4069
    %v4085 = vmul.f32 %v4055, %v4073
    %v4086 = vmul.f32 %v4059, %v4065
    %v4087 = vmul.f32 %v4059, %v4069
    %v4088 = vmul.f32 %v4059, %v4073
    %4101 = vrot.lane.b32.xlu0 %v4077, 94
    %v4102 = vpop.permute.xlu0 %4101
    %4103 = vrot.lane.b32.xlu0 %v4078, 94
    %v4104 = vpop.permute.xlu0 %4103
    %4105 = vrot.lane.b32.xlu0 %v4079, 94
    %v4106 = vpop.permute.xlu0 %4105
    %4107 = vrot.lane.b32.xlu0 %v4080, 94
    %v4108 = vpop.permute.xlu0 %4107
    %4109 = vrot.lane.b32.xlu0 %v4081, 94
    %v4110 = vpop.permute.xlu0 %4109
    %4111 = vrot.lane.b32.xlu0 %v4082, 94
    %v4112 = vpop.permute.xlu0 %4111
    %4113 = vrot.lane.b32.xlu0 %v4083, 94
    %v4114 = vpop.permute.xlu0 %4113
    %4115 = vrot.lane.b32.xlu0 %v4084, 94
    %v4116 = vpop.permute.xlu0 %4115
    %4117 = vrot.lane.b32.xlu0 %v4085, 94
    %v4118 = vpop.permute.xlu0 %4117
    %4119 = vrot.lane.b32.xlu0 %v4086, 94
    %v4120 = vpop.permute.xlu0 %4119
    %4121 = vrot.lane.b32.xlu0 %v4087, 94
    %v4122 = vpop.permute.xlu0 %4121
    %4123 = vrot.lane.b32.xlu0 %v4088, 94
    %v4124 = vpop.permute.xlu0 %4123
    %vm4125 = vcmask 769024
    %v4126 = vsel %vm4125, %v4102, %v4104
    %v4127 = vsel %vm4125, %v4104, %v4106
    %v4128 = vsel %vm4125, %v4108, %v4110
    %v4129 = vsel %vm4125, %v4110, %v4112
    %v4130 = vsel %vm4125, %v4114, %v4116
    %v4131 = vsel %vm4125, %v4116, %v4118
    %v4132 = vsel %vm4125, %v4120, %v4122
    %v4133 = vsel %vm4125, %v4122, %v4124
    %v4146 = vadd.f32 %v4026, %v4102
    %v4147 = vadd.f32 %v4027, %v4126
    %v4148 = vadd.f32 %v4028, %v4127
    %v4149 = vadd.f32 %v4029, %v4108
    %v4150 = vadd.f32 %v4030, %v4128
    %v4151 = vadd.f32 %v4031, %v4129
    %v4152 = vadd.f32 %v4032, %v4114
    %v4153 = vadd.f32 %v4033, %v4130
    %v4154 = vadd.f32 %v4034, %v4131
    %v4155 = vadd.f32 %v4035, %v4120
    %v4156 = vadd.f32 %v4036, %v4132
    %v4157 = vadd.f32 %v4037, %v4133
    %v4158 = vld [vmem:[%s23] sm:$0xff]
    %v4159 = vld [vmem:[%s23 + $0x8] sm:$0xff]
    %v4160 = vld [vmem:[%s23 + $0x10] sm:$0xff]
    %v4161 = vld [vmem:[%s23 + $0x18] sm:$0xff]
    %4163 = vset.pattern.permute.xlu0 0
    %4164 = vperm.xlu0 %4163, %v4158
    %v4165 = vpop.permute.xlu0 %4164
    %4168 = vset.pattern.permute.xlu0 0
    %4169 = vperm.xlu0 %4168, %v4159
    %v4170 = vpop.permute.xlu0 %4169
    %4173 = vset.pattern.permute.xlu0 0
    %4174 = vperm.xlu0 %4173, %v4160
    %v4175 = vpop.permute.xlu0 %4174
    %4178 = vset.pattern.permute.xlu0 0
    %4179 = vperm.xlu0 %4178, %v4161
    %v4180 = vpop.permute.xlu0 %4179
    %v4182 = vadd.f32 %v4146, %v4165
    %v4183 = vadd.f32 %v4147, %v4165
    %v4184 = vadd.f32 %v4148, %v4165
    %v4185 = vadd.f32 %v4149, %v4170
    %v4186 = vadd.f32 %v4150, %v4170
    %v4187 = vadd.f32 %v4151, %v4170
    %v4188 = vadd.f32 %v4152, %v4175
    %v4189 = vadd.f32 %v4153, %v4175
    %v4190 = vadd.f32 %v4154, %v4175
    %v4191 = vadd.f32 %v4155, %v4180
    %v4192 = vadd.f32 %v4156, %v4180
    %v4193 = vadd.f32 %v4157, %v4180
    %v4194 = vmax.f32 %v4182, 0.0
    %v4195 = vmax.f32 %v4183, 0.0
    %v4196 = vmax.f32 %v4184, 0.0
    %v4197 = vmax.f32 %v4185, 0.0
    %v4198 = vmax.f32 %v4186, 0.0
    %v4199 = vmax.f32 %v4187, 0.0
    %v4200 = vmax.f32 %v4188, 0.0
    %v4201 = vmax.f32 %v4189, 0.0
    %v4202 = vmax.f32 %v4190, 0.0
    %v4203 = vmax.f32 %v4191, 0.0
    %v4204 = vmax.f32 %v4192, 0.0
    %v4205 = vmax.f32 %v4193, 0.0
    %4206 = vst [vmem:[#allocation3] sm:$0xff] 0.0
    %4207 = vst [vmem:[#allocation3 + $0x8] sm:$0xff] 0.0
    %4208 = vst [vmem:[#allocation3 + $0x10] sm:$0xff] 0.0
    %4209 = vst [vmem:[#allocation3 + $0x18] sm:$0xff] 0.0
    %4210 = vst [vmem:[#allocation3 + $0x20] sm:$0xff] 0.0
    %4211 = vst [vmem:[#allocation3 + $0x28] sm:$0xff] 0.0
    %4212 = vst [vmem:[#allocation3 + $0x30] sm:$0xff] 0.0
    %4213 = vst [vmem:[#allocation3 + $0x38] sm:$0xff] 0.0
    %4214 = vst [vmem:[#allocation3 + $0x40] sm:$0xff] 0.0
    %4215 = vst [vmem:[#allocation3 + $0x48] sm:$0xff] 0.0
    %4216 = vst [vmem:[#allocation3 + $0x50] sm:$0xff] 0.0
    %4217 = vst [vmem:[#allocation3 + $0x58] sm:$0xff] 0.0
    %4218 = vst [vmem:[#allocation3 + $0x60] sm:$0xff] 0.0
    %4219 = vst [vmem:[#allocation3 + $0x68] sm:$0xff] 0.0
    %4220 = vst [vmem:[#allocation3 + $0x70] sm:$0xff] 0.0
    %4221 = vst [vmem:[#allocation3 + $0x78] sm:$0xff] 0.0
    %4234 = vrot.lane.b32.xlu0 %v4194, 17
    %v4235 = vpop.permute.xlu0 %4234
    %4236 = vrot.lane.b32.xlu0 %v4195, 17
    %v4237 = vpop.permute.xlu0 %4236
    %4238 = vrot.lane.b32.xlu0 %v4196, 17
    %v4239 = vpop.permute.xlu0 %4238
    %4240 = vrot.lane.b32.xlu0 %v4197, 17
    %v4241 = vpop.permute.xlu0 %4240
    %4242 = vrot.lane.b32.xlu0 %v4198, 17
    %v4243 = vpop.permute.xlu0 %4242
    %4244 = vrot.lane.b32.xlu0 %v4199, 17
    %v4245 = vpop.permute.xlu0 %4244
    %4246 = vrot.lane.b32.xlu0 %v4200, 17
    %v4247 = vpop.permute.xlu0 %4246
    %4248 = vrot.lane.b32.xlu0 %v4201, 17
    %v4249 = vpop.permute.xlu0 %4248
    %4250 = vrot.lane.b32.xlu0 %v4202, 17
    %v4251 = vpop.permute.xlu0 %4250
    %4252 = vrot.lane.b32.xlu0 %v4203, 17
    %v4253 = vpop.permute.xlu0 %4252
    %4254 = vrot.lane.b32.xlu0 %v4204, 17
    %v4255 = vpop.permute.xlu0 %4254
    %4256 = vrot.lane.b32.xlu0 %v4205, 17
    %v4257 = vpop.permute.xlu0 %4256
    %v4258 = vsel %vm4041, %v4235, %v4237
    %v4259 = vsel %vm4041, %v4237, %v4239
    %v4260 = vsel %vm4041, %v4241, %v4243
    %v4261 = vsel %vm4041, %v4243, %v4245
    %v4262 = vsel %vm4041, %v4247, %v4249
    %v4263 = vsel %vm4041, %v4249, %v4251
    %v4264 = vsel %vm4041, %v4253, %v4255
    %v4265 = vsel %vm4041, %v4255, %v4257
    %4274 = vst [vmem:[#allocation3 + $0x8] sm:$0xff] %v4258
    %4275 = vst [vmem:[#allocation3 + $0x10] sm:$0xff] %v4259
    %4276 = vst [vmem:[#allocation3 + $0x28] sm:$0xff] %v4260
    %4277 = vst [vmem:[#allocation3 + $0x30] sm:$0xff] %v4261
    %4278 = vst [vmem:[#allocation3 + $0x48] sm:$0xff] %v4262
    %4279 = vst [vmem:[#allocation3 + $0x50] sm:$0xff] %v4263
    %4280 = vst [vmem:[#allocation3 + $0x68] sm:$0xff] %v4264
    %4281 = vst [vmem:[#allocation3 + $0x70] sm:$0xff] %v4265
    %v4282 = vld [vmem:[#allocation3] sm:$0xff]
    %v4283 = vld [vmem:[#allocation3 + $0x8] sm:$0xff]
    %v4284 = vld [vmem:[#allocation3 + $0x10] sm:$0xff]
    %v4285 = vld [vmem:[#allocation3 + $0x20] sm:$0xff]
    %v4286 = vld [vmem:[#allocation3 + $0x28] sm:$0xff]
    %v4287 = vld [vmem:[#allocation3 + $0x30] sm:$0xff]
    %v4288 = vld [vmem:[#allocation3 + $0x40] sm:$0xff]
    %v4289 = vld [vmem:[#allocation3 + $0x48] sm:$0xff]
    %v4290 = vld [vmem:[#allocation3 + $0x50] sm:$0xff]
    %v4291 = vld [vmem:[#allocation3 + $0x60] sm:$0xff]
    %v4292 = vld [vmem:[#allocation3 + $0x68] sm:$0xff]
    %v4293 = vld [vmem:[#allocation3 + $0x70] sm:$0xff]
    %4294 = vrot.lane.b32.xlu0 %v3101, 111
    %v4295 = vpop.permute.xlu0 %4294
    %4296 = vrot.lane.b32.xlu0 %v3102, 111
    %v4297 = vpop.permute.xlu0 %4296
    %v4298 = vsel %vm3160, %v4295, %v4297
    %v4302 = vmul.f32 %v4282, %v4295
    %v4303 = vmul.f32 %v4283, %v4298
    %v4304 = vmul.f32 %v4284, %v4297
    %v4305 = vmul.f32 %v4285, %v4295
    %v4306 = vmul.f32 %v4286, %v4298
    %v4307 = vmul.f32 %v4287, %v4297
    %v4308 = vmul.f32 %v4288, %v4295
    %v4309 = vmul.f32 %v4289, %v4298
    %v4310 = vmul.f32 %v4290, %v4297
    %v4311 = vmul.f32 %v4291, %v4295
    %v4312 = vmul.f32 %v4292, %v4298
    %v4313 = vmul.f32 %v4293, %v4297
    %4326 = vrot.lane.b32.xlu0 %v4302, 17
    %v4327 = vpop.permute.xlu0 %4326
    %4328 = vrot.lane.b32.xlu0 %v4303, 17
    %v4329 = vpop.permute.xlu0 %4328
    %4330 = vrot.lane.b32.xlu0 %v4304, 17
    %v4331 = vpop.permute.xlu0 %4330
    %4332 = vrot.lane.b32.xlu0 %v4305, 17
    %v4333 = vpop.permute.xlu0 %4332
    %4334 = vrot.lane.b32.xlu0 %v4306, 17
    %v4335 = vpop.permute.xlu0 %4334
    %4336 = vrot.lane.b32.xlu0 %v4307, 17
    %v4337 = vpop.permute.xlu0 %4336
    %4338 = vrot.lane.b32.xlu0 %v4308, 17
    %v4339 = vpop.permute.xlu0 %4338
    %4340 = vrot.lane.b32.xlu0 %v4309, 17
    %v4341 = vpop.permute.xlu0 %4340
    %4342 = vrot.lane.b32.xlu0 %v4310, 17
    %v4343 = vpop.permute.xlu0 %4342
    %4344 = vrot.lane.b32.xlu0 %v4311, 17
    %v4345 = vpop.permute.xlu0 %4344
    %4346 = vrot.lane.b32.xlu0 %v4312, 17
    %v4347 = vpop.permute.xlu0 %4346
    %4348 = vrot.lane.b32.xlu0 %v4313, 17
    %v4349 = vpop.permute.xlu0 %4348
    %v4350 = vsel %vm4041, %v4327, %v4329
    %v4351 = vsel %vm4041, %v4329, %v4331
    %v4352 = vsel %vm4041, %v4333, %v4335
    %v4353 = vsel %vm4041, %v4335, %v4337
    %v4354 = vsel %vm4041, %v4339, %v4341
    %v4355 = vsel %vm4041, %v4341, %v4343
    %v4356 = vsel %vm4041, %v4345, %v4347
    %v4357 = vsel %vm4041, %v4347, %v4349
    %4366 = vst [vmem:[#allocation4] sm:$0xff] %v4350
    %4367 = vst [vmem:[#allocation4 + $0x8] sm:$0xff] %v4351
    %4368 = vst [vmem:[#allocation4 + $0x10] sm:$0xff] %v4352
    %4369 = vst [vmem:[#allocation4 + $0x18] sm:$0xff] %v4353
    %4370 = vst [vmem:[#allocation4 + $0x20] sm:$0xff] %v4354
    %4371 = vst [vmem:[#allocation4 + $0x28] sm:$0xff] %v4355
    %4372 = vst [vmem:[#allocation4 + $0x30] sm:$0xff] %v4356
    %4373 = vst [vmem:[#allocation4 + $0x38] sm:$0xff] %v4357
    %v4374 = vld [vmem:[#allocation3] sm:$0xff]
    %v4375 = vld [vmem:[#allocation3 + $0x8] sm:$0xff]
    %v4376 = vld [vmem:[#allocation3 + $0x10] sm:$0xff]
    %v4377 = vld [vmem:[#allocation3 + $0x20] sm:$0xff]
    %v4378 = vld [vmem:[#allocation3 + $0x28] sm:$0xff]
    %v4379 = vld [vmem:[#allocation3 + $0x30] sm:$0xff]
    %v4380 = vld [vmem:[#allocation3 + $0x40] sm:$0xff]
    %v4381 = vld [vmem:[#allocation3 + $0x48] sm:$0xff]
    %v4382 = vld [vmem:[#allocation3 + $0x50] sm:$0xff]
    %v4383 = vld [vmem:[#allocation3 + $0x60] sm:$0xff]
    %v4384 = vld [vmem:[#allocation3 + $0x68] sm:$0xff]
    %v4385 = vld [vmem:[#allocation3 + $0x70] sm:$0xff]
    %4398 = vrot.lane.b32.xlu0 %v4374, 16
    %v4399 = vpop.permute.xlu0 %4398
    %4400 = vrot.lane.b32.xlu0 %v4375, 16
    %v4401 = vpop.permute.xlu0 %4400
    %4402 = vrot.lane.b32.xlu0 %v4376, 16
    %v4403 = vpop.permute.xlu0 %4402
    %4404 = vrot.lane.b32.xlu0 %v4377, 16
    %v4405 = vpop.permute.xlu0 %4404
    %4406 = vrot.lane.b32.xlu0 %v4378, 16
    %v4407 = vpop.permute.xlu0 %4406
    %4408 = vrot.lane.b32.xlu0 %v4379, 16
    %v4409 = vpop.permute.xlu0 %4408
    %4410 = vrot.lane.b32.xlu0 %v4380, 16
    %v4411 = vpop.permute.xlu0 %4410
    %4412 = vrot.lane.b32.xlu0 %v4381, 16
    %v4413 = vpop.permute.xlu0 %4412
    %4414 = vrot.lane.b32.xlu0 %v4382, 16
    %v4415 = vpop.permute.xlu0 %4414
    %4416 = vrot.lane.b32.xlu0 %v4383, 16
    %v4417 = vpop.permute.xlu0 %4416
    %4418 = vrot.lane.b32.xlu0 %v4384, 16
    %v4419 = vpop.permute.xlu0 %4418
    %4420 = vrot.lane.b32.xlu0 %v4385, 16
    %v4421 = vpop.permute.xlu0 %4420
    %v4422 = vsel %vm383, %v4399, %v4401
    %v4423 = vsel %vm383, %v4401, %v4403
    %v4424 = vsel %vm383, %v4405, %v4407
    %v4425 = vsel %vm383, %v4407, %v4409
    %v4426 = vsel %vm383, %v4411, %v4413
    %v4427 = vsel %vm383, %v4413, %v4415
    %v4428 = vsel %vm383, %v4417, %v4419
    %v4429 = vsel %vm383, %v4419, %v4421
    %4438 = vst [vmem:[#allocation4 + $0x40] sm:$0xff] %v4422
    %4439 = vst [vmem:[#allocation4 + $0x48] sm:$0xff] %v4423
    %4440 = vst [vmem:[#allocation4 + $0x50] sm:$0xff] %v4424
    %4441 = vst [vmem:[#allocation4 + $0x58] sm:$0xff] %v4425
    %4442 = vst [vmem:[#allocation4 + $0x60] sm:$0xff] %v4426
    %4443 = vst [vmem:[#allocation4 + $0x68] sm:$0xff] %v4427
    %4444 = vst [vmem:[#allocation4 + $0x70] sm:$0xff] %v4428
    %4445 = vst [vmem:[#allocation4 + $0x78] sm:$0xff] %v4429
    %v4446 = vld [vmem:[#allocation3] sm:$0xff]
    %v4447 = vld [vmem:[#allocation3 + $0x8] sm:$0xff]
    %v4448 = vld [vmem:[#allocation3 + $0x10] sm:$0xff]
    %v4449 = vld [vmem:[#allocation3 + $0x20] sm:$0xff]
    %v4450 = vld [vmem:[#allocation3 + $0x28] sm:$0xff]
    %v4451 = vld [vmem:[#allocation3 + $0x30] sm:$0xff]
    %v4452 = vld [vmem:[#allocation3 + $0x40] sm:$0xff]
    %v4453 = vld [vmem:[#allocation3 + $0x48] sm:$0xff]
    %v4454 = vld [vmem:[#allocation3 + $0x50] sm:$0xff]
    %v4455 = vld [vmem:[#allocation3 + $0x60] sm:$0xff]
    %v4456 = vld [vmem:[#allocation3 + $0x68] sm:$0xff]
    %v4457 = vld [vmem:[#allocation3 + $0x70] sm:$0xff]
    %4458 = vrot.lane.b32.xlu0 %v3107, 113
    %v4459 = vpop.permute.xlu0 %4458
    %4460 = vrot.lane.b32.xlu0 %v3108, 113
    %v4461 = vpop.permute.xlu0 %4460
    %v4462 = vsel %vm3358, %v4459, %v4461
    %v4466 = vmul.f32 %v4446, %v4459
    %v4467 = vmul.f32 %v4447, %v4462
    %v4468 = vmul.f32 %v4448, %v4461
    %v4469 = vmul.f32 %v4449, %v4459
    %v4470 = vmul.f32 %v4450, %v4462
    %v4471 = vmul.f32 %v4451, %v4461
    %v4472 = vmul.f32 %v4452, %v4459
    %v4473 = vmul.f32 %v4453, %v4462
    %v4474 = vmul.f32 %v4454, %v4461
    %v4475 = vmul.f32 %v4455, %v4459
    %v4476 = vmul.f32 %v4456, %v4462
    %v4477 = vmul.f32 %v4457, %v4461
    %4490 = vrot.lane.b32.xlu0 %v4466, 15
    %v4491 = vpop.permute.xlu0 %4490
    %4492 = vrot.lane.b32.xlu0 %v4467, 15
    %v4493 = vpop.permute.xlu0 %4492
    %4494 = vrot.lane.b32.xlu0 %v4468, 15
    %v4495 = vpop.permute.xlu0 %4494
    %4496 = vrot.lane.b32.xlu0 %v4469, 15
    %v4497 = vpop.permute.xlu0 %4496
    %4498 = vrot.lane.b32.xlu0 %v4470, 15
    %v4499 = vpop.permute.xlu0 %4498
    %4500 = vrot.lane.b32.xlu0 %v4471, 15
    %v4501 = vpop.permute.xlu0 %4500
    %4502 = vrot.lane.b32.xlu0 %v4472, 15
    %v4503 = vpop.permute.xlu0 %4502
    %4504 = vrot.lane.b32.xlu0 %v4473, 15
    %v4505 = vpop.permute.xlu0 %4504
    %4506 = vrot.lane.b32.xlu0 %v4474, 15
    %v4507 = vpop.permute.xlu0 %4506
    %4508 = vrot.lane.b32.xlu0 %v4475, 15
    %v4509 = vpop.permute.xlu0 %4508
    %4510 = vrot.lane.b32.xlu0 %v4476, 15
    %v4511 = vpop.permute.xlu0 %4510
    %4512 = vrot.lane.b32.xlu0 %v4477, 15
    %v4513 = vpop.permute.xlu0 %4512
    %v4514 = vsel %vm2872, %v4491, %v4493
    %v4515 = vsel %vm2872, %v4493, %v4495
    %v4516 = vsel %vm2872, %v4497, %v4499
    %v4517 = vsel %vm2872, %v4499, %v4501
    %v4518 = vsel %vm2872, %v4503, %v4505
    %v4519 = vsel %vm2872, %v4505, %v4507
    %v4520 = vsel %vm2872, %v4509, %v4511
    %v4521 = vsel %vm2872, %v4511, %v4513
    %4530 = vst [vmem:[#allocation4 + $0x80] sm:$0xff] %v4514
    %4531 = vst [vmem:[#allocation4 + $0x88] sm:$0xff] %v4515
    %4532 = vst [vmem:[#allocation4 + $0x90] sm:$0xff] %v4516
    %4533 = vst [vmem:[#allocation4 + $0x98] sm:$0xff] %v4517
    %4534 = vst [vmem:[#allocation4 + $0xa0] sm:$0xff] %v4518
    %4535 = vst [vmem:[#allocation4 + $0xa8] sm:$0xff] %v4519
    %4536 = vst [vmem:[#allocation4 + $0xb0] sm:$0xff] %v4520
    %4537 = vst [vmem:[#allocation4 + $0xb8] sm:$0xff] %v4521
    %v4538 = vld [vmem:[#allocation3] sm:$0xff]
    %v4539 = vld [vmem:[#allocation3 + $0x8] sm:$0xff]
    %v4540 = vld [vmem:[#allocation3 + $0x10] sm:$0xff]
    %v4541 = vld [vmem:[#allocation3 + $0x20] sm:$0xff]
    %v4542 = vld [vmem:[#allocation3 + $0x28] sm:$0xff]
    %v4543 = vld [vmem:[#allocation3 + $0x30] sm:$0xff]
    %v4544 = vld [vmem:[#allocation3 + $0x40] sm:$0xff]
    %v4545 = vld [vmem:[#allocation3 + $0x48] sm:$0xff]
    %v4546 = vld [vmem:[#allocation3 + $0x50] sm:$0xff]
    %v4547 = vld [vmem:[#allocation3 + $0x60] sm:$0xff]
    %v4548 = vld [vmem:[#allocation3 + $0x68] sm:$0xff]
    %v4549 = vld [vmem:[#allocation3 + $0x70] sm:$0xff]
    %4550 = vrot.lane.b32.xlu0 %v3101, 127
    %v4551 = vpop.permute.xlu0 %4550
    %4552 = vrot.lane.b32.xlu0 %v3102, 127
    %v4553 = vpop.permute.xlu0 %4552
    %v4554 = vsel %vm3305, %v4551, %v4553
    %v4558 = vmul.f32 %v4538, %v4551
    %v4559 = vmul.f32 %v4539, %v4554
    %v4560 = vmul.f32 %v4540, %v4553
    %v4561 = vmul.f32 %v4541, %v4551
    %v4562 = vmul.f32 %v4542, %v4554
    %v4563 = vmul.f32 %v4543, %v4553
    %v4564 = vmul.f32 %v4544, %v4551
    %v4565 = vmul.f32 %v4545, %v4554
    %v4566 = vmul.f32 %v4546, %v4553
    %v4567 = vmul.f32 %v4547, %v4551
    %v4568 = vmul.f32 %v4548, %v4554
    %v4569 = vmul.f32 %v4549, %v4553
    %4582 = vrot.lane.b32.xlu0 %v4558, 1
    %v4583 = vpop.permute.xlu0 %4582
    %4584 = vrot.lane.b32.xlu0 %v4559, 1
    %v4585 = vpop.permute.xlu0 %4584
    %4586 = vrot.lane.b32.xlu0 %v4560, 1
    %v4587 = vpop.permute.xlu0 %4586
    %4588 = vrot.lane.b32.xlu0 %v4561, 1
    %v4589 = vpop.permute.xlu0 %4588
    %4590 = vrot.lane.b32.xlu0 %v4562, 1
    %v4591 = vpop.permute.xlu0 %4590
    %4592 = vrot.lane.b32.xlu0 %v4563, 1
    %v4593 = vpop.permute.xlu0 %4592
    %4594 = vrot.lane.b32.xlu0 %v4564, 1
    %v4595 = vpop.permute.xlu0 %4594
    %4596 = vrot.lane.b32.xlu0 %v4565, 1
    %v4597 = vpop.permute.xlu0 %4596
    %4598 = vrot.lane.b32.xlu0 %v4566, 1
    %v4599 = vpop.permute.xlu0 %4598
    %4600 = vrot.lane.b32.xlu0 %v4567, 1
    %v4601 = vpop.permute.xlu0 %4600
    %4602 = vrot.lane.b32.xlu0 %v4568, 1
    %v4603 = vpop.permute.xlu0 %4602
    %4604 = vrot.lane.b32.xlu0 %v4569, 1
    %v4605 = vpop.permute.xlu0 %4604
    %v4606 = vsel %vm3687, %v4583, %v4585
    %v4607 = vsel %vm3687, %v4585, %v4587
    %v4608 = vsel %vm3687, %v4589, %v4591
    %v4609 = vsel %vm3687, %v4591, %v4593
    %v4610 = vsel %vm3687, %v4595, %v4597
    %v4611 = vsel %vm3687, %v4597, %v4599
    %v4612 = vsel %vm3687, %v4601, %v4603
    %v4613 = vsel %vm3687, %v4603, %v4605
    %4622 = vst [vmem:[#allocation4 + $0xc0] sm:$0xff] %v4606
    %4623 = vst [vmem:[#allocation4 + $0xc8] sm:$0xff] %v4607
    %4624 = vst [vmem:[#allocation4 + $0xd0] sm:$0xff] %v4608
    %4625 = vst [vmem:[#allocation4 + $0xd8] sm:$0xff] %v4609
    %4626 = vst [vmem:[#allocation4 + $0xe0] sm:$0xff] %v4610
    %4627 = vst [vmem:[#allocation4 + $0xe8] sm:$0xff] %v4611
    %4628 = vst [vmem:[#allocation4 + $0xf0] sm:$0xff] %v4612
    %4629 = vst [vmem:[#allocation4 + $0xf8] sm:$0xff] %v4613
    %v4630 = vld [vmem:[#allocation3 + $0x8] sm:$0xff]
    %v4631 = vld [vmem:[#allocation3 + $0x10] sm:$0xff]
    %v4632 = vld [vmem:[#allocation3 + $0x28] sm:$0xff]
    %v4633 = vld [vmem:[#allocation3 + $0x30] sm:$0xff]
    %v4634 = vld [vmem:[#allocation3 + $0x48] sm:$0xff]
    %v4635 = vld [vmem:[#allocation3 + $0x50] sm:$0xff]
    %v4636 = vld [vmem:[#allocation3 + $0x68] sm:$0xff]
    %v4637 = vld [vmem:[#allocation3 + $0x70] sm:$0xff]
    %4638 = vst [vmem:[#allocation4 + $0x100] sm:$0xff] %v4630
    %4639 = vst [vmem:[#allocation4 + $0x108] sm:$0xff] %v4631
    %4640 = vst [vmem:[#allocation4 + $0x110] sm:$0xff] %v4632
    %4641 = vst [vmem:[#allocation4 + $0x118] sm:$0xff] %v4633
    %4642 = vst [vmem:[#allocation4 + $0x120] sm:$0xff] %v4634
    %4643 = vst [vmem:[#allocation4 + $0x128] sm:$0xff] %v4635
    %4644 = vst [vmem:[#allocation4 + $0x130] sm:$0xff] %v4636
    %4645 = vst [vmem:[#allocation4 + $0x138] sm:$0xff] %v4637
    %v4646 = vld [vmem:[#allocation3 + $0x8] sm:$0xff]
    %v4647 = vld [vmem:[#allocation3 + $0x10] sm:$0xff]
    %v4648 = vld [vmem:[#allocation3 + $0x18] sm:$0xff]
    %v4649 = vld [vmem:[#allocation3 + $0x28] sm:$0xff]
    %v4650 = vld [vmem:[#allocation3 + $0x30] sm:$0xff]
    %v4651 = vld [vmem:[#allocation3 + $0x38] sm:$0xff]
    %v4652 = vld [vmem:[#allocation3 + $0x48] sm:$0xff]
    %v4653 = vld [vmem:[#allocation3 + $0x50] sm:$0xff]
    %v4654 = vld [vmem:[#allocation3 + $0x58] sm:$0xff]
    %v4655 = vld [vmem:[#allocation3 + $0x68] sm:$0xff]
    %v4656 = vld [vmem:[#allocation3 + $0x70] sm:$0xff]
    %v4657 = vld [vmem:[#allocation3 + $0x78] sm:$0xff]
    %4658 = vrot.lane.b32.xlu0 %v3107, 1
    %v4659 = vpop.permute.xlu0 %4658
    %4660 = vrot.lane.b32.xlu0 %v3108, 1
    %v4661 = vpop.permute.xlu0 %4660
    %v4662 = vsel %vm3687, %v4659, %v4661
    %v4666 = vmul.f32 %v4646, %v4659
    %v4667 = vmul.f32 %v4647, %v4662
    %v4668 = vmul.f32 %v4648, %v4661
    %v4669 = vmul.f32 %v4649, %v4659
    %v4670 = vmul.f32 %v4650, %v4662
    %v4671 = vmul.f32 %v4651, %v4661
    %v4672 = vmul.f32 %v4652, %v4659
    %v4673 = vmul.f32 %v4653, %v4662
    %v4674 = vmul.f32 %v4654, %v4661
    %v4675 = vmul.f32 %v4655, %v4659
    %v4676 = vmul.f32 %v4656, %v4662
    %v4677 = vmul.f32 %v4657, %v4661
    %4690 = vrot.lane.b32.xlu0 %v4666, 127
    %v4691 = vpop.permute.xlu0 %4690
    %4692 = vrot.lane.b32.xlu0 %v4667, 127
    %v4693 = vpop.permute.xlu0 %4692
    %4694 = vrot.lane.b32.xlu0 %v4668, 127
    %v4695 = vpop.permute.xlu0 %4694
    %4696 = vrot.lane.b32.xlu0 %v4669, 127
    %v4697 = vpop.permute.xlu0 %4696
    %4698 = vrot.lane.b32.xlu0 %v4670, 127
    %v4699 = vpop.permute.xlu0 %4698
    %4700 = vrot.lane.b32.xlu0 %v4671, 127
    %v4701 = vpop.permute.xlu0 %4700
    %4702 = vrot.lane.b32.xlu0 %v4672, 127
    %v4703 = vpop.permute.xlu0 %4702
    %4704 = vrot.lane.b32.xlu0 %v4673, 127
    %v4705 = vpop.permute.xlu0 %4704
    %4706 = vrot.lane.b32.xlu0 %v4674, 127
    %v4707 = vpop.permute.xlu0 %4706
    %4708 = vrot.lane.b32.xlu0 %v4675, 127
    %v4709 = vpop.permute.xlu0 %4708
    %4710 = vrot.lane.b32.xlu0 %v4676, 127
    %v4711 = vpop.permute.xlu0 %4710
    %4712 = vrot.lane.b32.xlu0 %v4677, 127
    %v4713 = vpop.permute.xlu0 %4712
    %v4714 = vsel %vm3305, %v4691, %v4693
    %v4715 = vsel %vm3305, %v4693, %v4695
    %v4716 = vsel %vm3305, %v4697, %v4699
    %v4717 = vsel %vm3305, %v4699, %v4701
    %v4718 = vsel %vm3305, %v4703, %v4705
    %v4719 = vsel %vm3305, %v4705, %v4707
    %v4720 = vsel %vm3305, %v4709, %v4711
    %v4721 = vsel %vm3305, %v4711, %v4713
    %4730 = vst [vmem:[#allocation4 + $0x140] sm:$0xff] %v4714
    %4731 = vst [vmem:[#allocation4 + $0x148] sm:$0xff] %v4715
    %4732 = vst [vmem:[#allocation4 + $0x150] sm:$0xff] %v4716
    %4733 = vst [vmem:[#allocation4 + $0x158] sm:$0xff] %v4717
    %4734 = vst [vmem:[#allocation4 + $0x160] sm:$0xff] %v4718
    %4735 = vst [vmem:[#allocation4 + $0x168] sm:$0xff] %v4719
    %4736 = vst [vmem:[#allocation4 + $0x170] sm:$0xff] %v4720
    %4737 = vst [vmem:[#allocation4 + $0x178] sm:$0xff] %v4721
    %v4738 = vld [vmem:[#allocation3 + $0x8] sm:$0xff]
    %v4739 = vld [vmem:[#allocation3 + $0x10] sm:$0xff]
    %v4740 = vld [vmem:[#allocation3 + $0x18] sm:$0xff]
    %v4741 = vld [vmem:[#allocation3 + $0x28] sm:$0xff]
    %v4742 = vld [vmem:[#allocation3 + $0x30] sm:$0xff]
    %v4743 = vld [vmem:[#allocation3 + $0x38] sm:$0xff]
    %v4744 = vld [vmem:[#allocation3 + $0x48] sm:$0xff]
    %v4745 = vld [vmem:[#allocation3 + $0x50] sm:$0xff]
    %v4746 = vld [vmem:[#allocation3 + $0x58] sm:$0xff]
    %v4747 = vld [vmem:[#allocation3 + $0x68] sm:$0xff]
    %v4748 = vld [vmem:[#allocation3 + $0x70] sm:$0xff]
    %v4749 = vld [vmem:[#allocation3 + $0x78] sm:$0xff]
    %4750 = vrot.lane.b32.xlu0 %v3101, 15
    %v4751 = vpop.permute.xlu0 %4750
    %4752 = vrot.lane.b32.xlu0 %v3102, 15
    %v4753 = vpop.permute.xlu0 %4752
    %v4754 = vsel %vm2872, %v4751, %v4753
    %v4758 = vmul.f32 %v4738, %v4751
    %v4759 = vmul.f32 %v4739, %v4754
    %v4760 = vmul.f32 %v4740, %v4753
    %v4761 = vmul.f32 %v4741, %v4751
    %v4762 = vmul.f32 %v4742, %v4754
    %v4763 = vmul.f32 %v4743, %v4753
    %v4764 = vmul.f32 %v4744, %v4751
    %v4765 = vmul.f32 %v4745, %v4754
    %v4766 = vmul.f32 %v4746, %v4753
    %v4767 = vmul.f32 %v4747, %v4751
    %v4768 = vmul.f32 %v4748, %v4754
    %v4769 = vmul.f32 %v4749, %v4753
    %4782 = vrot.lane.b32.xlu0 %v4758, 113
    %v4783 = vpop.permute.xlu0 %4782
    %4784 = vrot.lane.b32.xlu0 %v4759, 113
    %v4785 = vpop.permute.xlu0 %4784
    %4786 = vrot.lane.b32.xlu0 %v4760, 113
    %v4787 = vpop.permute.xlu0 %4786
    %4788 = vrot.lane.b32.xlu0 %v4761, 113
    %v4789 = vpop.permute.xlu0 %4788
    %4790 = vrot.lane.b32.xlu0 %v4762, 113
    %v4791 = vpop.permute.xlu0 %4790
    %4792 = vrot.lane.b32.xlu0 %v4763, 113
    %v4793 = vpop.permute.xlu0 %4792
    %4794 = vrot.lane.b32.xlu0 %v4764, 113
    %v4795 = vpop.permute.xlu0 %4794
    %4796 = vrot.lane.b32.xlu0 %v4765, 113
    %v4797 = vpop.permute.xlu0 %4796
    %4798 = vrot.lane.b32.xlu0 %v4766, 113
    %v4799 = vpop.permute.xlu0 %4798
    %4800 = vrot.lane.b32.xlu0 %v4767, 113
    %v4801 = vpop.permute.xlu0 %4800
    %4802 = vrot.lane.b32.xlu0 %v4768, 113
    %v4803 = vpop.permute.xlu0 %4802
    %4804 = vrot.lane.b32.xlu0 %v4769, 113
    %v4805 = vpop.permute.xlu0 %4804
    %v4806 = vsel %vm3358, %v4783, %v4785
    %v4807 = vsel %vm3358, %v4785, %v4787
    %v4808 = vsel %vm3358, %v4789, %v4791
    %v4809 = vsel %vm3358, %v4791, %v4793
    %v4810 = vsel %vm3358, %v4795, %v4797
    %v4811 = vsel %vm3358, %v4797, %v4799
    %v4812 = vsel %vm3358, %v4801, %v4803
    %v4813 = vsel %vm3358, %v4803, %v4805
    %4822 = vst [vmem:[#allocation4 + $0x180] sm:$0xff] %v4806
    %4823 = vst [vmem:[#allocation4 + $0x188] sm:$0xff] %v4807
    %4824 = vst [vmem:[#allocation4 + $0x190] sm:$0xff] %v4808
    %4825 = vst [vmem:[#allocation4 + $0x198] sm:$0xff] %v4809
    %4826 = vst [vmem:[#allocation4 + $0x1a0] sm:$0xff] %v4810
    %4827 = vst [vmem:[#allocation4 + $0x1a8] sm:$0xff] %v4811
    %4828 = vst [vmem:[#allocation4 + $0x1b0] sm:$0xff] %v4812
    %4829 = vst [vmem:[#allocation4 + $0x1b8] sm:$0xff] %v4813
    %v4830 = vld [vmem:[#allocation3 + $0x8] sm:$0xff]
    %v4831 = vld [vmem:[#allocation3 + $0x10] sm:$0xff]
    %v4832 = vld [vmem:[#allocation3 + $0x18] sm:$0xff]
    %v4833 = vld [vmem:[#allocation3 + $0x28] sm:$0xff]
    %v4834 = vld [vmem:[#allocation3 + $0x30] sm:$0xff]
    %v4835 = vld [vmem:[#allocation3 + $0x38] sm:$0xff]
    %v4836 = vld [vmem:[#allocation3 + $0x48] sm:$0xff]
    %v4837 = vld [vmem:[#allocation3 + $0x50] sm:$0xff]
    %v4838 = vld [vmem:[#allocation3 + $0x58] sm:$0xff]
    %v4839 = vld [vmem:[#allocation3 + $0x68] sm:$0xff]
    %v4840 = vld [vmem:[#allocation3 + $0x70] sm:$0xff]
    %v4841 = vld [vmem:[#allocation3 + $0x78] sm:$0xff]
    %4854 = vrot.lane.b32.xlu0 %v4830, 112
    %v4855 = vpop.permute.xlu0 %4854
    %4856 = vrot.lane.b32.xlu0 %v4831, 112
    %v4857 = vpop.permute.xlu0 %4856
    %4858 = vrot.lane.b32.xlu0 %v4832, 112
    %v4859 = vpop.permute.xlu0 %4858
    %4860 = vrot.lane.b32.xlu0 %v4833, 112
    %v4861 = vpop.permute.xlu0 %4860
    %4862 = vrot.lane.b32.xlu0 %v4834, 112
    %v4863 = vpop.permute.xlu0 %4862
    %4864 = vrot.lane.b32.xlu0 %v4835, 112
    %v4865 = vpop.permute.xlu0 %4864
    %4866 = vrot.lane.b32.xlu0 %v4836, 112
    %v4867 = vpop.permute.xlu0 %4866
    %4868 = vrot.lane.b32.xlu0 %v4837, 112
    %v4869 = vpop.permute.xlu0 %4868
    %4870 = vrot.lane.b32.xlu0 %v4838, 112
    %v4871 = vpop.permute.xlu0 %4870
    %4872 = vrot.lane.b32.xlu0 %v4839, 112
    %v4873 = vpop.permute.xlu0 %4872
    %4874 = vrot.lane.b32.xlu0 %v4840, 112
    %v4875 = vpop.permute.xlu0 %4874
    %4876 = vrot.lane.b32.xlu0 %v4841, 112
    %v4877 = vpop.permute.xlu0 %4876
    %v4878 = vsel %vm3562, %v4855, %v4857
    %v4879 = vsel %vm3562, %v4857, %v4859
    %v4880 = vsel %vm3562, %v4861, %v4863
    %v4881 = vsel %vm3562, %v4863, %v4865
    %v4882 = vsel %vm3562, %v4867, %v4869
    %v4883 = vsel %vm3562, %v4869, %v4871
    %v4884 = vsel %vm3562, %v4873, %v4875
    %v4885 = vsel %vm3562, %v4875, %v4877
    %4894 = vst [vmem:[#allocation4 + $0x1c0] sm:$0xff] %v4878
    %4895 = vst [vmem:[#allocation4 + $0x1c8] sm:$0xff] %v4879
    %4896 = vst [vmem:[#allocation4 + $0x1d0] sm:$0xff] %v4880
    %4897 = vst [vmem:[#allocation4 + $0x1d8] sm:$0xff] %v4881
    %4898 = vst [vmem:[#allocation4 + $0x1e0] sm:$0xff] %v4882
    %4899 = vst [vmem:[#allocation4 + $0x1e8] sm:$0xff] %v4883
    %4900 = vst [vmem:[#allocation4 + $0x1f0] sm:$0xff] %v4884
    %4901 = vst [vmem:[#allocation4 + $0x1f8] sm:$0xff] %v4885
    %v4902 = vld [vmem:[#allocation3 + $0x8] sm:$0xff]
    %v4903 = vld [vmem:[#allocation3 + $0x10] sm:$0xff]
    %v4904 = vld [vmem:[#allocation3 + $0x18] sm:$0xff]
    %v4905 = vld [vmem:[#allocation3 + $0x28] sm:$0xff]
    %v4906 = vld [vmem:[#allocation3 + $0x30] sm:$0xff]
    %v4907 = vld [vmem:[#allocation3 + $0x38] sm:$0xff]
    %v4908 = vld [vmem:[#allocation3 + $0x48] sm:$0xff]
    %v4909 = vld [vmem:[#allocation3 + $0x50] sm:$0xff]
    %v4910 = vld [vmem:[#allocation3 + $0x58] sm:$0xff]
    %v4911 = vld [vmem:[#allocation3 + $0x68] sm:$0xff]
    %v4912 = vld [vmem:[#allocation3 + $0x70] sm:$0xff]
    %v4913 = vld [vmem:[#allocation3 + $0x78] sm:$0xff]
    %4914 = vrot.lane.b32.xlu0 %v3107, 17
    %v4915 = vpop.permute.xlu0 %4914
    %4916 = vrot.lane.b32.xlu0 %v3108, 17
    %v4917 = vpop.permute.xlu0 %4916
    %v4918 = vsel %vm4041, %v4915, %v4917
    %v4922 = vmul.f32 %v4902, %v4915
    %v4923 = vmul.f32 %v4903, %v4918
    %v4924 = vmul.f32 %v4904, %v4917
    %v4925 = vmul.f32 %v4905, %v4915
    %v4926 = vmul.f32 %v4906, %v4918
    %v4927 = vmul.f32 %v4907, %v4917
    %v4928 = vmul.f32 %v4908, %v4915
    %v4929 = vmul.f32 %v4909, %v4918
    %v4930 = vmul.f32 %v4910, %v4917
    %v4931 = vmul.f32 %v4911, %v4915
    %v4932 = vmul.f32 %v4912, %v4918
    %v4933 = vmul.f32 %v4913, %v4917
    %4946 = vrot.lane.b32.xlu0 %v4922, 111
    %v4947 = vpop.permute.xlu0 %4946
    %4948 = vrot.lane.b32.xlu0 %v4923, 111
    %v4949 = vpop.permute.xlu0 %4948
    %4950 = vrot.lane.b32.xlu0 %v4924, 111
    %v4951 = vpop.permute.xlu0 %4950
    %4952 = vrot.lane.b32.xlu0 %v4925, 111
    %v4953 = vpop.permute.xlu0 %4952
    %4954 = vrot.lane.b32.xlu0 %v4926, 111
    %v4955 = vpop.permute.xlu0 %4954
    %4956 = vrot.lane.b32.xlu0 %v4927, 111
    %v4957 = vpop.permute.xlu0 %4956
    %4958 = vrot.lane.b32.xlu0 %v4928, 111
    %v4959 = vpop.permute.xlu0 %4958
    %4960 = vrot.lane.b32.xlu0 %v4929, 111
    %v4961 = vpop.permute.xlu0 %4960
    %4962 = vrot.lane.b32.xlu0 %v4930, 111
    %v4963 = vpop.permute.xlu0 %4962
    %4964 = vrot.lane.b32.xlu0 %v4931, 111
    %v4965 = vpop.permute.xlu0 %4964
    %4966 = vrot.lane.b32.xlu0 %v4932, 111
    %v4967 = vpop.permute.xlu0 %4966
    %4968 = vrot.lane.b32.xlu0 %v4933, 111
    %v4969 = vpop.permute.xlu0 %4968
    %v4970 = vsel %vm3160, %v4947, %v4949
    %v4971 = vsel %vm3160, %v4949, %v4951
    %v4972 = vsel %vm3160, %v4953, %v4955
    %v4973 = vsel %vm3160, %v4955, %v4957
    %v4974 = vsel %vm3160, %v4959, %v4961
    %v4975 = vsel %vm3160, %v4961, %v4963
    %v4976 = vsel %vm3160, %v4965, %v4967
    %v4977 = vsel %vm3160, %v4967, %v4969
    %4986 = vst [vmem:[#allocation4 + $0x200] sm:$0xff] %v4970
    %4987 = vst [vmem:[#allocation4 + $0x208] sm:$0xff] %v4971
    %4988 = vst [vmem:[#allocation4 + $0x210] sm:$0xff] %v4972
    %4989 = vst [vmem:[#allocation4 + $0x218] sm:$0xff] %v4973
    %4990 = vst [vmem:[#allocation4 + $0x220] sm:$0xff] %v4974
    %4991 = vst [vmem:[#allocation4 + $0x228] sm:$0xff] %v4975
    %4992 = vst [vmem:[#allocation4 + $0x230] sm:$0xff] %v4976
    %4993 = vst [vmem:[#allocation4 + $0x238] sm:$0xff] %v4977
    %v4994 = vld [vmem:[%s24] sm:$0xff]
    %v4995 = vld [vmem:[%s24 + $0x8] sm:$0xff]
    %v4996 = vld [vmem:[%s24 + $0x10] sm:$0xff]
    %v4997 = vld [vmem:[%s24 + $0x18] sm:$0xff]
    %v4998 = vld [vmem:[%s24 + $0x20] sm:$0xff]
    %v4999 = vld [vmem:[%s24 + $0x28] sm:$0xff]
    %v5000 = vld [vmem:[%s24 + $0x30] sm:$0xff]
    %v5001 = vld [vmem:[%s24 + $0x38] sm:$0xff]
    %v5002 = vld [vmem:[%s24 + $0x40] sm:$0xff]
    %v5003 = vld [vmem:[%s24 + $0x48] sm:$0xff]
    %v5004 = vld [vmem:[%s24 + $0x50] sm:$0xff]
    %v5005 = vld [vmem:[%s24 + $0x58] sm:$0xff]
    %v5006 = vld [vmem:[%s24 + $0x60] sm:$0xff]
    %v5007 = vld [vmem:[%s24 + $0x68] sm:$0xff]
    %v5008 = vld [vmem:[%s24 + $0x70] sm:$0xff]
    %v5009 = vld [vmem:[%s24 + $0x78] sm:$0xff]
    %v5010 = vld [vmem:[%s24 + $0x80] sm:$0xff]
    %v5011 = vld [vmem:[%s24 + $0x88] sm:$0xff]
    %v5012 = vld [vmem:[%s24 + $0x90] sm:$0xff]
    %v5013 = vld [vmem:[%s24 + $0x98] sm:$0xff]
    %v5014 = vld [vmem:[%s24 + $0xa0] sm:$0xff]
    %v5015 = vld [vmem:[%s24 + $0xa8] sm:$0xff]
    %v5016 = vld [vmem:[%s24 + $0xb0] sm:$0xff]
    %v5017 = vld [vmem:[%s24 + $0xb8] sm:$0xff]
    %v5018 = vld [vmem:[#allocation4] sm:$0xff]
    %v5019 = vld [vmem:[#allocation4 + $0x8] sm:$0xff]
    %v5020 = vld [vmem:[#allocation4 + $0x10] sm:$0xff]
    %v5021 = vld [vmem:[#allocation4 + $0x18] sm:$0xff]
    %v5022 = vld [vmem:[#allocation4 + $0x20] sm:$0xff]
    %v5023 = vld [vmem:[#allocation4 + $0x28] sm:$0xff]
    %v5024 = vld [vmem:[#allocation4 + $0x30] sm:$0xff]
    %v5025 = vld [vmem:[#allocation4 + $0x38] sm:$0xff]
    %v5026 = vld [vmem:[#allocation4 + $0x40] sm:$0xff]
    %v5027 = vld [vmem:[#allocation4 + $0x48] sm:$0xff]
    %v5028 = vld [vmem:[#allocation4 + $0x50] sm:$0xff]
    %v5029 = vld [vmem:[#allocation4 + $0x58] sm:$0xff]
    %v5030 = vld [vmem:[#allocation4 + $0x60] sm:$0xff]
    %v5031 = vld [vmem:[#allocation4 + $0x68] sm:$0xff]
    %v5032 = vld [vmem:[#allocation4 + $0x70] sm:$0xff]
    %v5033 = vld [vmem:[#allocation4 + $0x78] sm:$0xff]
    %v5034 = vld [vmem:[#allocation4 + $0x80] sm:$0xff]
    %v5035 = vld [vmem:[#allocation4 + $0x88] sm:$0xff]
    %v5036 = vld [vmem:[#allocation4 + $0x90] sm:$0xff]
    %v5037 = vld [vmem:[#allocation4 + $0x98] sm:$0xff]
    %v5038 = vld [vmem:[#allocation4 + $0xa0] sm:$0xff]
    %v5039 = vld [vmem:[#allocation4 + $0xa8] sm:$0xff]
    %v5040 = vld [vmem:[#allocation4 + $0xb0] sm:$0xff]
    %v5041 = vld [vmem:[#allocation4 + $0xb8] sm:$0xff]
    %v5042 = vld [vmem:[#allocation4 + $0xc0] sm:$0xff]
    %v5043 = vld [vmem:[#allocation4 + $0xc8] sm:$0xff]
    %v5044 = vld [vmem:[#allocation4 + $0xd0] sm:$0xff]
    %v5045 = vld [vmem:[#allocation4 + $0xd8] sm:$0xff]
    %v5046 = vld [vmem:[#allocation4 + $0xe0] sm:$0xff]
    %v5047 = vld [vmem:[#allocation4 + $0xe8] sm:$0xff]
    %v5048 = vld [vmem:[#allocation4 + $0xf0] sm:$0xff]
    %v5049 = vld [vmem:[#allocation4 + $0xf8] sm:$0xff]
    %v5050 = vld [vmem:[#allocation4 + $0x100] sm:$0xff]
    %v5051 = vld [vmem:[#allocation4 + $0x108] sm:$0xff]
    %v5052 = vld [vmem:[#allocation4 + $0x110] sm:$0xff]
    %v5053 = vld [vmem:[#allocation4 + $0x118] sm:$0xff]
    %v5054 = vld [vmem:[#allocation4 + $0x120] sm:$0xff]
    %v5055 = vld [vmem:[#allocation4 + $0x128] sm:$0xff]
    %v5056 = vld [vmem:[#allocation4 + $0x130] sm:$0xff]
    %v5057 = vld [vmem:[#allocation4 + $0x138] sm:$0xff]
    %v5058 = vld [vmem:[#allocation4 + $0x140] sm:$0xff]
    %v5059 = vld [vmem:[#allocation4 + $0x148] sm:$0xff]
    %v5060 = vld [vmem:[#allocation4 + $0x150] sm:$0xff]
    %v5061 = vld [vmem:[#allocation4 + $0x158] sm:$0xff]
    %v5062 = vld [vmem:[#allocation4 + $0x160] sm:$0xff]
    %v5063 = vld [vmem:[#allocation4 + $0x168] sm:$0xff]
    %v5064 = vld [vmem:[#allocation4 + $0x170] sm:$0xff]
    %v5065 = vld [vmem:[#allocation4 + $0x178] sm:$0xff]
    %v5066 = vld [vmem:[#allocation4 + $0x180] sm:$0xff]
    %v5067 = vld [vmem:[#allocation4 + $0x188] sm:$0xff]
    %v5068 = vld [vmem:[#allocation4 + $0x190] sm:$0xff]
    %v5069 = vld [vmem:[#allocation4 + $0x198] sm:$0xff]
    %v5070 = vld [vmem:[#allocation4 + $0x1a0] sm:$0xff]
    %v5071 = vld [vmem:[#allocation4 + $0x1a8] sm:$0xff]
    %v5072 = vld [vmem:[#allocation4 + $0x1b0] sm:$0xff]
    %v5073 = vld [vmem:[#allocation4 + $0x1b8] sm:$0xff]
    %v5074 = vld [vmem:[#allocation4 + $0x1c0] sm:$0xff]
    %v5075 = vld [vmem:[#allocation4 + $0x1c8] sm:$0xff]
    %v5076 = vld [vmem:[#allocation4 + $0x1d0] sm:$0xff]
    %v5077 = vld [vmem:[#allocation4 + $0x1d8] sm:$0xff]
    %v5078 = vld [vmem:[#allocation4 + $0x1e0] sm:$0xff]
    %v5079 = vld [vmem:[#allocation4 + $0x1e8] sm:$0xff]
    %v5080 = vld [vmem:[#allocation4 + $0x1f0] sm:$0xff]
    %v5081 = vld [vmem:[#allocation4 + $0x1f8] sm:$0xff]
    %v5082 = vld [vmem:[#allocation4 + $0x200] sm:$0xff]
    %v5083 = vld [vmem:[#allocation4 + $0x208] sm:$0xff]
    %v5084 = vld [vmem:[#allocation4 + $0x210] sm:$0xff]
    %v5085 = vld [vmem:[#allocation4 + $0x218] sm:$0xff]
    %v5086 = vld [vmem:[#allocation4 + $0x220] sm:$0xff]
    %v5087 = vld [vmem:[#allocation4 + $0x228] sm:$0xff]
    %v5088 = vld [vmem:[#allocation4 + $0x230] sm:$0xff]
    %v5089 = vld [vmem:[#allocation4 + $0x238] sm:$0xff]
    %v5090 = vld [vmem:[%s25] sm:$0xff]
    %v5091 = vld [vmem:[%s25 + $0x8] sm:$0xff]
    %v5092 = vld [vmem:[%s25 + $0x10] sm:$0xff]
    %v5093 = vld [vmem:[%s25 + $0x18] sm:$0xff]
    %v5094 = vld [vmem:[%s25 + $0x20] sm:$0xff]
    %v5095 = vld [vmem:[%s25 + $0x28] sm:$0xff]
    %v5096 = vld [vmem:[%s25 + $0x30] sm:$0xff]
    %v5097 = vld [vmem:[%s25 + $0x38] sm:$0xff]
    %5099 = vset.pattern.permute.xlu0 0
    %5100 = vperm.xlu0 %5099, %v5090
    %v5101 = vpop.permute.xlu0 %5100
    %5104 = vset.pattern.permute.xlu0 0
    %5105 = vperm.xlu0 %5104, %v5091
    %v5106 = vpop.permute.xlu0 %5105
    %5109 = vset.pattern.permute.xlu0 0
    %5110 = vperm.xlu0 %5109, %v5092
    %v5111 = vpop.permute.xlu0 %5110
    %5114 = vset.pattern.permute.xlu0 0
    %5115 = vperm.xlu0 %5114, %v5093
    %v5116 = vpop.permute.xlu0 %5115
    %5119 = vset.pattern.permute.xlu0 0
    %5120 = vperm.xlu0 %5119, %v5094
    %v5121 = vpop.permute.xlu0 %5120
    %5124 = vset.pattern.permute.xlu0 0
    %5125 = vperm.xlu0 %5124, %v5095
    %v5126 = vpop.permute.xlu0 %5125
    %5129 = vset.pattern.permute.xlu0 0
    %5130 = vperm.xlu0 %5129, %v5096
    %v5131 = vpop.permute.xlu0 %5130
    %5134 = vset.pattern.permute.xlu0 0
    %5135 = vperm.xlu0 %5134, %v5097
    %v5136 = vpop.permute.xlu0 %5135
    %vm5138 = vcmask 261120
    %v5140 = vsel %vm5138, %v4996, 0
    %v5143 = vsel %vm5138, %v4999, 0
    %v5146 = vsel %vm5138, %v5002, 0
    %v5149 = vsel %vm5138, %v5005, 0
    %v5152 = vsel %vm5138, %v5008, 0
    %v5155 = vsel %vm5138, %v5011, 0
    %v5158 = vsel %vm5138, %v5014, 0
    %v5161 = vsel %vm5138, %v5017, 0
    %5163 = vmatprep.subr.mxu0 %v5049
    %5164 = vmatpush1.msra.mxu0 %v5048
    %5165 = vmatprep.subr.mxu0 %v5047
    %5166 = vmatpush1.msra.mxu0 %v5046
    %5167 = vmatprep.subr.mxu0 %v5045
    %5168 = vmatpush1.msra.mxu0 %v5044
    %5169 = vmatprep.subr.mxu0 %v5043
    %5170 = vmatpush1.msra.mxu0 %v5042
    %5171 = vmatprep.subr.mxu0 %v5041
    %5172 = vmatpush1.msra.mxu0 %v5040
    %5173 = vmatprep.subr.mxu0 %v5039
    %5174 = vmatpush1.msra.mxu0 %v5038
    %5175 = vmatprep.subr.mxu0 %v5037
    %5176 = vmatpush1.msra.mxu0 %v5036
    %5177 = vmatprep.subr.mxu0 %v5035
    %5178 = vmatpush1.msra.mxu0 %v5034
    %5179 = vmatprep.subr.mxu0 %v5033
    %5180 = vmatpush1.msra.mxu0 %v5032
    %5181 = vmatprep.subr.mxu0 %v5031
    %5182 = vmatpush1.msra.mxu0 %v5030
    %5183 = vmatprep.subr.mxu0 %v5029
    %5184 = vmatpush1.msra.mxu0 %v5028
    %5185 = vmatprep.subr.mxu0 %v5027
    %5186 = vmatpush1.msra.mxu0 %v5026
    %5187 = vmatprep.subr.mxu0 %v5025
    %5188 = vmatpush1.msra.mxu0 %v5024
    %5189 = vmatprep.subr.mxu0 %v5023
    %5190 = vmatpush1.msra.mxu0 %v5022
    %5191 = vmatprep.subr.mxu0 %v5021
    %5192 = vmatpush1.msra.mxu0 %v5020
    %5193 = vmatprep.subr.mxu0 %v5019
    %5194 = vmatpush1.msra.mxu0 %v5018
    %5195 = vmatprep.subr.mxu0 %v5081
    %5196 = vmatpush2.msra.mxu0 %v5080
    %5197 = vmatprep.subr.mxu0 %v5079
    %5198 = vmatpush2.msra.mxu0 %v5078
    %5199 = vmatprep.subr.mxu0 %v5077
    %5200 = vmatpush2.msra.mxu0 %v5076
    %5201 = vmatprep.subr.mxu0 %v5075
    %5202 = vmatpush2.msra.mxu0 %v5074
    %5203 = vmatprep.subr.mxu0 %v5073
    %5204 = vmatpush2.msra.mxu0 %v5072
    %5205 = vmatprep.subr.mxu0 %v5071
    %5206 = vmatpush2.msra.mxu0 %v5070
    %5207 = vmatprep.subr.mxu0 %v5069
    %5208 = vmatpush2.msra.mxu0 %v5068
    %5209 = vmatprep.subr.mxu0 %v5067
    %5210 = vmatpush2.msra.mxu0 %v5066
    %5211 = vmatprep.subr.mxu0 %v5065
    %5212 = vmatpush2.msra.mxu0 %v5064
    %5213 = vmatprep.subr.mxu0 %v5063
    %5214 = vmatpush2.msra.mxu0 %v5062
    %5215 = vmatprep.subr.mxu0 %v5061
    %5216 = vmatpush2.msra.mxu0 %v5060
    %5217 = vmatprep.subr.mxu0 %v5059
    %5218 = vmatpush2.msra.mxu0 %v5058
    %5219 = vmatprep.subr.mxu0 %v5057
    %5220 = vmatpush2.msra.mxu0 %v5056
    %5221 = vmatprep.subr.mxu0 %v5055
    %5222 = vmatpush2.msra.mxu0 %v5054
    %5223 = vmatprep.subr.mxu0 %v5053
    %5224 = vmatpush2.msra.mxu0 %v5052
    %5225 = vmatprep.subr.mxu0 %v5051
    %5226 = vmatpush2.msra.mxu0 %v5050
    %5227 = vmatprep.mubr.f32.mxu0 %v4995
    %5228 = vmatmul.mubr.f32.gmra.mxu0 %v4994
    %v5229 = vpop.f32.mrf.mxu0
    %v5230 = vadd.f32 %v5101, %v5229
    %v5231 = vpop.f32.mrf.mxu0
    %v5232 = vadd.f32 %v5101, %v5231
    %5233 = vmatprep.mubr.f32.mxu0 %v4998
    %5234 = vmatmul.mubr.f32.gmra.mxu0 %v4997
    %v5235 = vpop.f32.mrf.mxu0
    %v5236 = vadd.f32 %v5106, %v5235
    %v5237 = vpop.f32.mrf.mxu0
    %v5238 = vadd.f32 %v5106, %v5237
    %5239 = vmatprep.mubr.f32.mxu0 %v5001
    %5240 = vmatmul.mubr.f32.gmra.mxu0 %v5000
    %v5241 = vpop.f32.mrf.mxu0
    %v5242 = vadd.f32 %v5111, %v5241
    %v5243 = vpop.f32.mrf.mxu0
    %v5244 = vadd.f32 %v5111, %v5243
    %5245 = vmatprep.mubr.f32.mxu0 %v5004
    %5246 = vmatmul.mubr.f32.gmra.mxu0 %v5003
    %v5247 = vpop.f32.mrf.mxu0
    %v5248 = vadd.f32 %v5116, %v5247
    %v5249 = vpop.f32.mrf.mxu0
    %v5250 = vadd.f32 %v5116, %v5249
    %5251 = vmatprep.mubr.f32.mxu0 %v5007
    %5252 = vmatmul.mubr.f32.gmra.mxu0 %v5006
    %v5253 = vpop.f32.mrf.mxu0
    %v5254 = vadd.f32 %v5121, %v5253
    %v5255 = vpop.f32.mrf.mxu0
    %v5256 = vadd.f32 %v5121, %v5255
    %5257 = vmatprep.mubr.f32.mxu0 %v5010
    %5258 = vmatmul.mubr.f32.gmra.mxu0 %v5009
    %v5259 = vpop.f32.mrf.mxu0
    %v5260 = vadd.f32 %v5126, %v5259
    %v5261 = vpop.f32.mrf.mxu0
    %v5262 = vadd.f32 %v5126, %v5261
    %5263 = vmatprep.mubr.f32.mxu0 %v5013
    %5264 = vmatmul.mubr.f32.gmra.mxu0 %v5012
    %v5265 = vpop.f32.mrf.mxu0
    %v5266 = vadd.f32 %v5131, %v5265
    %v5267 = vpop.f32.mrf.mxu0
    %v5268 = vadd.f32 %v5131, %v5267
    %5269 = vmatprep.mubr.f32.mxu0 %v5016
    %5270 = vmatmul.mubr.f32.gmra.mxu0 %v5015
    %v5271 = vpop.f32.mrf.mxu0
    %v5272 = vadd.f32 %v5136, %v5271
    %v5273 = vpop.f32.mrf.mxu0
    %v5274 = vadd.f32 %v5136, %v5273
    %5275 = vdwg.mxu0
    %5276 = vmatprep.subr.mxu0 0.0
    %5277 = vmatpush1.msra.mxu0 0.0
    %5278 = vmatprep.subr.mxu0 0.0
    %5279 = vmatpush1.msra.mxu0 0.0
    %5280 = vmatprep.subr.mxu0 0.0
    %5281 = vmatpush1.msra.mxu0 0.0
    %5282 = vmatprep.subr.mxu0 0.0
    %5283 = vmatpush1.msra.mxu0 0.0
    %5284 = vmatprep.subr.mxu0 0.0
    %5285 = vmatpush1.msra.mxu0 0.0
    %5286 = vmatprep.subr.mxu0 0.0
    %5287 = vmatpush1.msra.mxu0 0.0
    %5288 = vmatprep.subr.mxu0 0.0
    %5289 = vmatpush1.msra.mxu0 0.0
    %5290 = vmatprep.subr.mxu0 0.0
    %5291 = vmatpush1.msra.mxu0 0.0
    %5292 = vmatprep.subr.mxu0 0.0
    %5293 = vmatpush1.msra.mxu0 0.0
    %5294 = vmatprep.subr.mxu0 0.0
    %5295 = vmatpush1.msra.mxu0 0.0
    %5296 = vmatprep.subr.mxu0 0.0
    %5297 = vmatpush1.msra.mxu0 0.0
    %5298 = vmatprep.subr.mxu0 0.0
    %5299 = vmatpush1.msra.mxu0 0.0
    %5300 = vmatprep.subr.mxu0 %v5089
    %5301 = vmatpush1.msra.mxu0 %v5088
    %5302 = vmatprep.subr.mxu0 %v5087
    %5303 = vmatpush1.msra.mxu0 %v5086
    %5304 = vmatprep.subr.mxu0 %v5085
    %5305 = vmatpush1.msra.mxu0 %v5084
    %5306 = vmatprep.subr.mxu0 %v5083
    %5307 = vmatpush1.msra.mxu0 %v5082
    %5308 = vmatprep.subr.mxu0 0.0
    %5309 = vmatpush2.msra.mxu0 0.0
    %5310 = vmatprep.subr.mxu0 0.0
    %5311 = vmatpush2.msra.mxu0 0.0
    %5312 = vmatprep.subr.mxu0 0.0
    %5313 = vmatpush2.msra.mxu0 0.0
    %5314 = vmatprep.subr.mxu0 0.0
    %5315 = vmatpush2.msra.mxu0 0.0
    %5316 = vmatprep.subr.mxu0 0.0
    %5317 = vmatpush2.msra.mxu0 0.0
    %5318 = vmatprep.subr.mxu0 0.0
    %5319 = vmatpush2.msra.mxu0 0.0
    %5320 = vmatprep.subr.mxu0 0.0
    %5321 = vmatpush2.msra.mxu0 0.0
    %5322 = vmatprep.subr.mxu0 0.0
    %5323 = vmatpush2.msra.mxu0 0.0
    %5324 = vmatprep.subr.mxu0 0.0
    %5325 = vmatpush2.msra.mxu0 0.0
    %5326 = vmatprep.subr.mxu0 0.0
    %5327 = vmatpush2.msra.mxu0 0.0
    %5328 = vmatprep.subr.mxu0 0.0
    %5329 = vmatpush2.msra.mxu0 0.0
    %5330 = vmatprep.subr.mxu0 0.0
    %5331 = vmatpush2.msra.mxu0 0.0
    %5332 = vmatprep.subr.mxu0 0.0
    %5333 = vmatpush2.msra.mxu0 0.0
    %5334 = vmatprep.subr.mxu0 0.0
    %5335 = vmatpush2.msra.mxu0 0.0
    %5336 = vmatprep.subr.mxu0 0.0
    %5337 = vmatpush2.msra.mxu0 0.0
    %5338 = vmatprep.subr.mxu0 0.0
    %5339 = vmatpush2.msra.mxu0 0.0
    %5340 = vmatprep.mubr.f32.mxu0 0.0
    %5341 = vmatmul.mubr.f32.gmra.mxu0 %v5140
    %v5342 = vpop.f32.mrf.mxu0
    %v5343 = vadd.f32 %v5230, %v5342
    %v5344 = vpop.f32.mrf.mxu0
    %v5345 = vadd.f32 %v5232, %v5344
    %5346 = vmatprep.mubr.f32.mxu0 0.0
    %5347 = vmatmul.mubr.f32.gmra.mxu0 %v5143
    %v5348 = vpop.f32.mrf.mxu0
    %v5349 = vadd.f32 %v5236, %v5348
    %v5350 = vpop.f32.mrf.mxu0
    %v5351 = vadd.f32 %v5238, %v5350
    %5352 = vmatprep.mubr.f32.mxu0 0.0
    %5353 = vmatmul.mubr.f32.gmra.mxu0 %v5146
    %v5354 = vpop.f32.mrf.mxu0
    %v5355 = vadd.f32 %v5242, %v5354
    %v5356 = vpop.f32.mrf.mxu0
    %v5357 = vadd.f32 %v5244, %v5356
    %5358 = vmatprep.mubr.f32.mxu0 0.0
    %5359 = vmatmul.mubr.f32.gmra.mxu0 %v5149
    %v5360 = vpop.f32.mrf.mxu0
    %v5361 = vadd.f32 %v5248, %v5360
    %v5362 = vpop.f32.mrf.mxu0
    %v5363 = vadd.f32 %v5250, %v5362
    %5364 = vmatprep.mubr.f32.mxu0 0.0
    %5365 = vmatmul.mubr.f32.gmra.mxu0 %v5152
    %v5366 = vpop.f32.mrf.mxu0
    %v5367 = vadd.f32 %v5254, %v5366
    %v5368 = vpop.f32.mrf.mxu0
    %v5369 = vadd.f32 %v5256, %v5368
    %5370 = vmatprep.mubr.f32.mxu0 0.0
    %5371 = vmatmul.mubr.f32.gmra.mxu0 %v5155
    %v5372 = vpop.f32.mrf.mxu0
    %v5373 = vadd.f32 %v5260, %v5372
    %v5374 = vpop.f32.mrf.mxu0
    %v5375 = vadd.f32 %v5262, %v5374
    %5376 = vmatprep.mubr.f32.mxu0 0.0
    %5377 = vmatmul.mubr.f32.gmra.mxu0 %v5158
    %v5378 = vpop.f32.mrf.mxu0
    %v5379 = vadd.f32 %v5266, %v5378
    %v5380 = vpop.f32.mrf.mxu0
    %v5381 = vadd.f32 %v5268, %v5380
    %5382 = vmatprep.mubr.f32.mxu0 0.0
    %5383 = vmatmul.mubr.f32.gmra.mxu0 %v5161
    %v5384 = vpop.f32.mrf.mxu0
    %v5385 = vadd.f32 %v5272, %v5384
    %v5386 = vpop.f32.mrf.mxu0
    %v5387 = vadd.f32 %v5274, %v5386
    %5388 = vdwg.mxu0
    %v5389 = vmax.f32 %v5343, 0.0
    %v5390 = vmax.f32 %v5345, 0.0
    %v5391 = vmax.f32 %v5349, 0.0
    %v5392 = vmax.f32 %v5351, 0.0
    %v5393 = vmax.f32 %v5355, 0.0
    %v5394 = vmax.f32 %v5357, 0.0
    %v5395 = vmax.f32 %v5361, 0.0
    %v5396 = vmax.f32 %v5363, 0.0
    %v5397 = vmax.f32 %v5367, 0.0
    %v5398 = vmax.f32 %v5369, 0.0
    %v5399 = vmax.f32 %v5373, 0.0
    %v5400 = vmax.f32 %v5375, 0.0
    %v5401 = vmax.f32 %v5379, 0.0
    %v5402 = vmax.f32 %v5381, 0.0
    %v5403 = vmax.f32 %v5385, 0.0
    %v5404 = vmax.f32 %v5387, 0.0
    %5405 = vst [vmem:[%s26] sm:$0xff] %v5389
    %5406 = vst [vmem:[%s26 + $0x8] sm:$0xff] %v5390
    %5407 = vst [vmem:[%s26 + $0x10] sm:$0xff] %v5391
    %5408 = vst [vmem:[%s26 + $0x18] sm:$0xff] %v5392
    %5409 = vst [vmem:[%s26 + $0x20] sm:$0xff] %v5393
    %5410 = vst [vmem:[%s26 + $0x28] sm:$0xff] %v5394
    %5411 = vst [vmem:[%s26 + $0x30] sm:$0xff] %v5395
    %5412 = vst [vmem:[%s26 + $0x38] sm:$0xff] %v5396
    %5413 = vst [vmem:[%s26 + $0x40] sm:$0xff] %v5397
    %5414 = vst [vmem:[%s26 + $0x48] sm:$0xff] %v5398
    %5415 = vst [vmem:[%s26 + $0x50] sm:$0xff] %v5399
    %5416 = vst [vmem:[%s26 + $0x58] sm:$0xff] %v5400
    %5417 = vst [vmem:[%s26 + $0x60] sm:$0xff] %v5401
    %5418 = vst [vmem:[%s26 + $0x68] sm:$0xff] %v5402
    %5419 = vst [vmem:[%s26 + $0x70] sm:$0xff] %v5403
    %5420 = vst [vmem:[%s26 + $0x78] sm:$0xff] %v5404
    // Predicated region
    $region162: #{dwt_block_forward.1} parent=1 // pred_check
      _
    $region163: #{dwt_block_forward.1} parent=1 // pred_check_branch
      %5422 = sbr.rel (0) target = $region165
    $region164: #{dwt_block_forward.1} parent=1 // pred_region
      _
    $region165: #{dwt_block_forward.1} parent=1 // pred_fallthru
      _
    // Predicated region
    $region166: #{dwt_block_forward.1} parent=1 // pred_check
      _
    $region167: #{dwt_block_forward.1} parent=1 // pred_check_branch
      %5424 = sbr.rel (0) target = $region169
    $region168: #{dwt_block_forward.1} parent=1 // pred_region
      _
    $region169: #{dwt_block_forward.1} parent=1 // pred_fallthru
      _
    %5425 = vsyncpa [#allocation8], 1
    %5426 = vsyncpa [#allocation11], 1
    %5427 = vsyncpa [#allocation14], 1
    %5428 = vsyncpa [#allocation17], 1
    %5429 = vsyncpa [#allocation20], 1
    %5430 = vsyncpa [#allocation23], 1
    %5431 = vsyncpa [#allocation9], 1
    %5432 = vsyncpa [#allocation26], 1
    %5433 = vsyncpa [#allocation29], 1

</llo_original>
